<compile_context>
chip_gen: v6e
topology: v6e:2x2x1
jax: 0.10.0
libtpu: 0.0.40
codegen_flags: <defaults>
</compile_context>

<pallas_src>
import functools

import jax
import jax.numpy as jnp
from jax.experimental import pallas as pl
from jax.experimental.pallas import tpu as pltpu


def _round_up(x, m):
    return ((x + m - 1) // m) * m


# ----------------------------------------------------------------------------
# Pallas kernel 1: single-shot matmul + bias + optional ReLU.
# Full-K / full-N blocks (K<=576, N<=64 in this model) -> no reduction grid
# axis, no accumulator scratch, no zero padding.  bf16 MXU operands, f32
# accumulation, fused epilogue.  Used for every conv (via im2col) and for the
# batched input->gate projection.
# ----------------------------------------------------------------------------
def _matmul_bias_kernel(a_ref, w_ref, b_ref, o_ref, *, relu):
    out = jnp.dot(a_ref[...], w_ref[...], preferred_element_type=jnp.float32)
    out = out + b_ref[...]                     # (tm, tn) + (1, tn)
    if relu:
        out = jnp.maximum(out, 0.0)
    o_ref[...] = out.astype(o_ref.dtype)


def matmul_bias(a, w, b, relu=False, out_dtype=jnp.float32):
    M, K = a.shape
    K2, N = w.shape
    assert K == K2
    # M tiling: full block for small M (block dim == full array dim needs no
    # 8-divisibility and no padding).  For M > 64 use 16-aligned blocks (bf16
    # sublane packing) and >=2 blocks so v7x megacore can split the M axis;
    # the trailing partial block is handled by Pallas store masking (rows are
    # independent in a matmul, so garbage OOB rows never pollute valid ones).
    if M > 1024:
        tm = 512
    elif M > 64:
        tm = _round_up((M + 1) // 2, 16)
    else:
        tm = M
    tn = N if N <= 128 else 128

    grid = (pl.cdiv(M, tm), pl.cdiv(N, tn))
    return pl.pallas_call(
        functools.partial(_matmul_bias_kernel, relu=relu),
        out_shape=jax.ShapeDtypeStruct((M, N), out_dtype),
        grid=grid,
        in_specs=[
            pl.BlockSpec((tm, K), lambda i, j: (i, 0)),
            pl.BlockSpec((K, tn), lambda i, j: (0, j)),  # weight resident over i
            pl.BlockSpec((1, tn), lambda i, j: (0, j)),
        ],
        out_specs=pl.BlockSpec((tm, tn), lambda i, j: (i, j)),
        compiler_params=pltpu.CompilerParams(
            dimension_semantics=("parallel", "parallel")),
    )(a.astype(jnp.bfloat16), w.astype(jnp.bfloat16),
      b.reshape(1, N).astype(jnp.float32))


# ----------------------------------------------------------------------------
# im2col (JAX glue) + conv2d = im2col + Pallas matmul (cross-correlation,
# matching torch.nn.Conv2d).  x: (B, H, W, Cin) NHWC; w: (kh, kw, Cin, Cout).
# ----------------------------------------------------------------------------
def im2col(x, kh, kw, padding):
    B, H, W, C = x.shape
    if padding > 0:
        x = jnp.pad(x, ((0, 0), (padding, padding), (padding, padding), (0, 0)))
    Hp, Wp = x.shape[1], x.shape[2]
    Ho, Wo = Hp - kh + 1, Wp - kw + 1
    cols = [x[:, di:di + Ho, dj:dj + Wo, :]
            for di in range(kh) for dj in range(kw)]
    patches = jnp.concatenate(cols, axis=-1).reshape(B * Ho * Wo, kh * kw * C)
    return patches, Ho, Wo


def conv2d(x, w, b, padding=0, relu=False, out_dtype=jnp.bfloat16):
    kh, kw, Cin, Cout = w.shape
    B = x.shape[0]
    patches, Ho, Wo = im2col(x, kh, kw, padding)
    out = matmul_bias(patches, w.reshape(kh * kw * Cin, Cout), b,
                      relu=relu, out_dtype=out_dtype)
    return out.reshape(B, Ho, Wo, Cout)


# ----------------------------------------------------------------------------
# Pallas kernel 2: the FULL ConvLSTM recurrence + fc head in one pallas_call.
#   grid=(T,), "arbitrary"; hx/cx carried in VMEM scratch across grid steps.
#   gih_all: (T, B, 4*hidden) f32  precomputed Wih*x + b_ih + b_hh
#   dh/dc:   (T, B, 1)        f32  exp(-time_dis) decays (hoisted out of loop)
#   whh_c:   (hidden, 4*hid)  bf16 center-tap hidden->gate weights
#   fc1/fc2: weights + biases of the head (applied on the last timestep)
# ----------------------------------------------------------------------------
def _recurrence_kernel(gih_ref, dh_ref, dc_ref, whh_ref, w1_ref, b1_ref,
                       w2_ref, b2_ref, out_ref, hx_ref, cx_ref, *, hidden):
    t = pl.program_id(0)

    @pl.when(t == 0)
    def _init():
        hx_ref[...] = jnp.zeros_like(hx_ref)
        cx_ref[...] = jnp.zeros_like(cx_ref)

    # exp(-time_dis) decay of previous hidden / cell state (see TODO at top).
    h_dec = hx_ref[...] * dh_ref[...]
    c_dec = cx_ref[...] * dc_ref[...]

    # Single MXU push for all four gates; gate blocks sliced off the lane axis.
    gates = gih_ref[...] + jnp.dot(h_dec.astype(jnp.bfloat16), whh_ref[...],
                                   preferred_element_type=jnp.float32)
    i_g = jax.nn.sigmoid(gates[:, 0 * hidden:1 * hidden])
    f_g = jax.nn.sigmoid(gates[:, 1 * hidden:2 * hidden])
    g_g = jnp.tanh(gates[:, 2 * hidden:3 * hidden])
    o_g = jax.nn.sigmoid(gates[:, 3 * hidden:4 * hidden])
    c_new = f_g * c_dec + i_g * g_g
    h_new = o_g * jnp.tanh(c_new)
    cx_ref[...] = c_new
    hx_ref[...] = h_new

    # Fused fc1 -> ReLU -> fc2 -> ReLU head on the final timestep only.
    @pl.when(t == pl.num_programs(0) - 1)
    def _head():
        f = jnp.dot(h_new, w1_ref[...], preferred_element_type=jnp.float32)
        f = jnp.maximum(f + b1_ref[...], 0.0)
        o = jnp.dot(f, w2_ref[...], preferred_element_type=jnp.float32)
        out_ref[...] = jnp.maximum(o + b2_ref[...], 0.0)


def lstm_recurrence(gih_all, dh_all, dc_all, whh_c, fc1_w, fc1_b, fc2_w, fc2_b,
                    *, hidden):
    T, B, _ = gih_all.shape
    F2 = fc1_w.shape[1]
    NC = fc2_w.shape[1]
    f32 = jnp.float32
    return pl.pallas_call(
        functools.partial(_recurrence_kernel, hidden=hidden),
        out_shape=jax.ShapeDtypeStruct((B, NC), f32),
        grid=(T,),
        in_specs=[
            pl.BlockSpec((None, B, 4 * hidden), lambda t: (t, 0, 0)),
            pl.BlockSpec((None, B, 1), lambda t: (t, 0, 0)),
            pl.BlockSpec((None, B, 1), lambda t: (t, 0, 0)),
            pl.BlockSpec((hidden, 4 * hidden), lambda t: (0, 0)),
            pl.BlockSpec((hidden, F2), lambda t: (0, 0)),
            pl.BlockSpec((1, F2), lambda t: (0, 0)),
            pl.BlockSpec((F2, NC), lambda t: (0, 0)),
            pl.BlockSpec((1, NC), lambda t: (0, 0)),
        ],
        out_specs=pl.BlockSpec((B, NC), lambda t: (0, 0)),
        scratch_shapes=[pltpu.VMEM((B, hidden), f32),
                        pltpu.VMEM((B, hidden), f32)],
        compiler_params=pltpu.CompilerParams(
            dimension_semantics=("arbitrary",)),
    )(gih_all.astype(f32), dh_all.astype(f32), dc_all.astype(f32),
      whh_c.astype(jnp.bfloat16),
      fc1_w.astype(f32), fc1_b.reshape(1, F2).astype(f32),
      fc2_w.astype(f32), fc2_b.reshape(1, NC).astype(f32))


# ----------------------------------------------------------------------------
# Parameter init (deterministic, in-script).
# ----------------------------------------------------------------------------
def init_params(key, in_channels, hidden, kernel_size, num_classes):
    ks = jax.random.split(key, 16)

    def conv_w(k, cin, cout, ksz):
        scale = 1.0 / jnp.sqrt(jnp.float32(ksz * ksz * cin))
        return jax.random.normal(k, (ksz, ksz, cin, cout), jnp.float32) * scale

    def lin_w(k, fin, fout):
        scale = 1.0 / jnp.sqrt(jnp.float32(fin))
        return jax.random.normal(k, (fin, fout), jnp.float32) * scale

    def bias(k, n):
        return jax.random.normal(k, (n,), jnp.float32) * 0.01

    return {
        "conv1_w": conv_w(ks[0], in_channels, 16, 3), "conv1_b": bias(ks[1], 16),
        "conv2_w": conv_w(ks[2], 16, 32, 3),          "conv2_b": bias(ks[3], 32),
        "conv3_w": conv_w(ks[4], 32, 32, 3),          "conv3_b": bias(ks[5], 32),
        "conv4_w": conv_w(ks[6], 32, 64, 3),          "conv4_b": bias(ks[7], 64),
        "conv5_w": conv_w(ks[8], 64, 64, 3),          "conv5_b": bias(ks[9], 64),
        "wih": conv_w(ks[10], 64, 4 * hidden, kernel_size),
        "b_ih": bias(ks[11], 4 * hidden),
        "whh": conv_w(ks[12], hidden, 4 * hidden, kernel_size),
        "b_hh": jnp.zeros((4 * hidden,), jnp.float32),
        "fc1_w": lin_w(ks[13], hidden, 32),           "fc1_b": bias(ks[14], 32),
        "fc2_w": lin_w(ks[15], 32, num_classes),
        "fc2_b": jnp.zeros((num_classes,), jnp.float32),
    }


# ----------------------------------------------------------------------------
# Full IRCNN forward.
# x: (T, B, C, H, W), time_dis: (B, T)  ->  (B, num_classes)
# ----------------------------------------------------------------------------
def ircnn_forward(params, x, time_dis, *, time_len, hidden, kernel_size):
    T, B, C, H, W = x.shape
    assert T == time_len
    pad_lstm = kernel_size // 2

    # --- non-recurrent conv stack, batched over all T timesteps at once ---
    x_all = jnp.transpose(x.reshape(T * B, C, H, W), (0, 2, 3, 1))  # NCHW->NHWC
    t = conv2d(x_all, params["conv1_w"], params["conv1_b"], padding=1, relu=True)
    t = conv2d(t, params["conv2_w"], params["conv2_b"], padding=1, relu=True)
    t = conv2d(t, params["conv3_w"], params["conv3_b"], padding=1, relu=True)
    t = conv2d(t, params["conv4_w"], params["conv4_b"], padding=1, relu=True)
    t = conv2d(t, params["conv5_w"], params["conv5_b"], padding=0, relu=True)
    # conv5 weights intentionally reused twice, as in the PyTorch reference.
    t = conv2d(t, params["conv5_w"], params["conv5_b"], padding=0, relu=True)
    _, Ho, Wo, _ = t.shape
    # fc1(in_features=hidden) only matches a 1x1 map (H=W=5 input); the fused
    # recurrence below also relies on it (center-tap whh, feat = hx).
    assert Ho == 1 and Wo == 1, (Ho, Wo)

    # --- input->gate projection for ALL timesteps in one matmul ---
    t_patch, _, _ = im2col(t, kernel_size, kernel_size, pad_lstm)   # (T*B, kk*64)
    wih_mat = params["wih"].reshape(-1, 4 * hidden)
    gih_all = matmul_bias(t_patch, wih_mat, params["b_ih"] + params["b_hh"],
                          relu=False, out_dtype=jnp.float32)        # (T*B, 4*hid)
    gih_all = gih_all.reshape(T, B, 4 * hidden)

    # With a 1x1 spatial map, the hidden-state "im2col" (pad=1, k=3) is zero
    # everywhere except the center tap, so only the center-tap whh slice acts.
    # TODO(synk): for spatial maps > 1x1 the fused recurrence would need the
    # full kh*kw-tap hidden im2col (shifted reads) inside the kernel.
    whh_c = params["whh"][kernel_size // 2, kernel_size // 2]        # (hid, 4hid)

    # exp(-time_dis) decays, hoisted out of the recurrence (computed once).
    d_prev = jnp.concatenate([time_dis[:, :1], time_dis[:, :-1]], axis=1)
    dh_all = jnp.exp(-d_prev).T.reshape(T, B, 1)
    dc_all = jnp.exp(-time_dis).T.reshape(T, B, 1)

    return lstm_recurrence(gih_all, dh_all, dc_all, whh_c,
                           params["fc1_w"], params["fc1_b"],
                           params["fc2_w"], params["fc2_b"], hidden=hidden)


if __name__ == "__main__":
    in_channels, out_channels, kernel_size, num_classes, time_len = 4, 8, 3, 5, 3
    B, H, W = 2, 5, 5  # H=W=5: two valid 3x3 convs -> 1x1 map (fc1 in-features = hidden)

    key = jax.random.PRNGKey(0)
    k_x, k_d, k_p = jax.random.split(key, 3)
    x = jax.random.normal(k_x, (time_len, B, in_channels, H, W), jnp.float32)
    time_dis = jax.random.uniform(k_d, (B, time_len), jnp.float32)
    params = init_params(k_p, in_channels, out_channels, kernel_size, num_classes)

    fwd = jax.jit(functools.partial(
        ircnn_forward, time_len=time_len, hidden=out_channels,
        kernel_size=kernel_size))
    out = jax.block_until_ready(fwd(params, x, time_dis))
    assert out.shape == (B, num_classes), out.shape
    assert bool(jnp.all(jnp.isfinite(out)))
    print("KERNEL_OK")
</pallas_src>

<mosaic_0001>
module attributes {stable_mosaic.version = 11 : i64} {
  func.func @_matmul_bias_kernel(%arg0: i32, %arg1: i32, %arg2: memref<80x36xbf16, #tpu.memory_space<vmem>>, %arg3: memref<36x16xbf16, #tpu.memory_space<vmem>>, %arg4: memref<1x16xf32, #tpu.memory_space<vmem>>, %arg5: memref<80x16xbf16, #tpu.memory_space<vmem>>) attributes {dimension_semantics = [#tpu.dimension_semantics<parallel>, #tpu.dimension_semantics<parallel>], iteration_bounds = array<i64: 2, 1>, scalar_prefetch = 0 : i64, scratch_operands = 0 : i64, tpu.core_type = #tpu.core_type<tc>, window_params = [{transform_indices = @transform_0, window_bounds = array<i64: 80, 36>}, {transform_indices = @transform_1, window_bounds = array<i64: 36, 16>}, {transform_indices = @transform_2, window_bounds = array<i64: 1, 16>}, {transform_indices = @transform_3, window_bounds = array<i64: 80, 16>}]} {
    %c0 = arith.constant 0 : index
    %c0_0 = arith.constant 0 : index
    %0 = vector.load %arg2[%c0, %c0_0] : memref<80x36xbf16, #tpu.memory_space<vmem>>, vector<80x36xbf16>
    %c0_1 = arith.constant 0 : index
    %c0_2 = arith.constant 0 : index
    %1 = vector.load %arg3[%c0_1, %c0_2] : memref<36x16xbf16, #tpu.memory_space<vmem>>, vector<36x16xbf16>
    %cst = arith.constant dense<0.000000e+00> : vector<80x16xf32>
    %2 = tpu.matmul %0, %1, %cst {dimension_numbers = #tpu.dot_dimension_numbers<[1], [0], [0], [1], [0, 0, 1, 1], [], []>} : vector<80x36xbf16>, vector<36x16xbf16>, vector<80x16xf32> -> vector<80x16xf32>
    %c0_3 = arith.constant 0 : index
    %c0_4 = arith.constant 0 : index
    %3 = vector.load %arg4[%c0_3, %c0_4] : memref<1x16xf32, #tpu.memory_space<vmem>>, vector<1x16xf32>
    %4 = vector.broadcast %3 : vector<1x16xf32> to vector<80x16xf32>
    %5 = arith.addf %2, %4 : vector<80x16xf32>
    %cst_5 = arith.constant 0.000000e+00 : f32
    %6 = vector.broadcast %cst_5 : f32 to vector<80x16xf32>
    %7 = arith.maximumf %5, %6 : vector<80x16xf32>
    %8 = arith.truncf %7 : vector<80x16xf32> to vector<80x16xbf16>
    %c0_6 = arith.constant 0 : index
    %c0_7 = arith.constant 0 : index
    %9 = vector.load %arg5[%c0_6, %c0_7] : memref<80x16xbf16, #tpu.memory_space<vmem>>, vector<80x16xbf16>
    tpu.vector_store %arg5[%c0_6, %c0_7], %8 {strides = array<i32>} : memref<80x16xbf16, #tpu.memory_space<vmem>>, vector<80x16xbf16>,
    return
  }
  func.func @transform_0(%arg0: i32, %arg1: i32) -> (i32, i32) {
    %c0_i32 = arith.constant 0 : i32
    %c0_i32_0 = arith.constant 0 : i32
    return %arg0, %c0_i32 : i32, i32
  }
  func.func @transform_1(%arg0: i32, %arg1: i32) -> (i32, i32) {
    %c0_i32 = arith.constant 0 : i32
    %c0_i32_0 = arith.constant 0 : i32
    return %c0_i32, %arg1 : i32, i32
  }
  func.func @transform_2(%arg0: i32, %arg1: i32) -> (i32, i32) {
    %c0_i32 = arith.constant 0 : i32
    %c0_i32_0 = arith.constant 0 : i32
    return %c0_i32, %arg1 : i32, i32
  }
  func.func @transform_3(%arg0: i32, %arg1: i32) -> (i32, i32) {
    %c0_i32 = arith.constant 0 : i32
    return %arg0, %arg1 : i32, i32
  }
}

module attributes {stable_mosaic.version = 11 : i64} {
  func.func @_matmul_bias_kernel(%arg0: i32, %arg1: i32, %arg2: memref<80x144xbf16, #tpu.memory_space<vmem>>, %arg3: memref<144x32xbf16, #tpu.memory_space<vmem>>, %arg4: memref<1x32xf32, #tpu.memory_space<vmem>>, %arg5: memref<80x32xbf16, #tpu.memory_space<vmem>>) attributes {dimension_semantics = [#tpu.dimension_semantics<parallel>, #tpu.dimension_semantics<parallel>], iteration_bounds = array<i64: 2, 1>, scalar_prefetch = 0 : i64, scratch_operands = 0 : i64, tpu.core_type = #tpu.core_type<tc>, window_params = [{transform_indices = @transform_0, window_bounds = array<i64: 80, 144>}, {transform_indices = @transform_1, window_bounds = array<i64: 144, 32>}, {transform_indices = @transform_2, window_bounds = array<i64: 1, 32>}, {transform_indices = @transform_3, window_bounds = array<i64: 80, 32>}]} {
    %c0 = arith.constant 0 : index
    %c0_0 = arith.constant 0 : index
    %0 = vector.load %arg2[%c0, %c0_0] : memref<80x144xbf16, #tpu.memory_space<vmem>>, vector<80x144xbf16>
    %c0_1 = arith.constant 0 : index
    %c0_2 = arith.constant 0 : index
    %1 = vector.load %arg3[%c0_1, %c0_2] : memref<144x32xbf16, #tpu.memory_space<vmem>>, vector<144x32xbf16>
    %cst = arith.constant dense<0.000000e+00> : vector<80x32xf32>
    %2 = tpu.matmul %0, %1, %cst {dimension_numbers = #tpu.dot_dimension_numbers<[1], [0], [0], [1], [0, 0, 1, 1], [], []>} : vector<80x144xbf16>, vector<144x32xbf16>, vector<80x32xf32> -> vector<80x32xf32>
    %c0_3 = arith.constant 0 : index
    %c0_4 = arith.constant 0 : index
    %3 = vector.load %arg4[%c0_3, %c0_4] : memref<1x32xf32, #tpu.memory_space<vmem>>, vector<1x32xf32>
    %4 = vector.broadcast %3 : vector<1x32xf32> to vector<80x32xf32>
    %5 = arith.addf %2, %4 : vector<80x32xf32>
    %cst_5 = arith.constant 0.000000e+00 : f32
    %6 = vector.broadcast %cst_5 : f32 to vector<80x32xf32>
    %7 = arith.maximumf %5, %6 : vector<80x32xf32>
    %8 = arith.truncf %7 : vector<80x32xf32> to vector<80x32xbf16>
    %c0_6 = arith.constant 0 : index
    %c0_7 = arith.constant 0 : index
    %9 = vector.load %arg5[%c0_6, %c0_7] : memref<80x32xbf16, #tpu.memory_space<vmem>>, vector<80x32xbf16>
    tpu.vector_store %arg5[%c0_6, %c0_7], %8 {strides = array<i32>} : memref<80x32xbf16, #tpu.memory_space<vmem>>, vector<80x32xbf16>,
    return
  }
  func.func @transform_0(%arg0: i32, %arg1: i32) -> (i32, i32) {
    %c0_i32 = arith.constant 0 : i32
    %c0_i32_0 = arith.constant 0 : i32
    return %arg0, %c0_i32 : i32, i32
  }
  func.func @transform_1(%arg0: i32, %arg1: i32) -> (i32, i32) {
    %c0_i32 = arith.constant 0 : i32
    %c0_i32_0 = arith.constant 0 : i32
    return %c0_i32, %arg1 : i32, i32
  }
  func.func @transform_2(%arg0: i32, %arg1: i32) -> (i32, i32) {
    %c0_i32 = arith.constant 0 : i32
    %c0_i32_0 = arith.constant 0 : i32
    return %c0_i32, %arg1 : i32, i32
  }
  func.func @transform_3(%arg0: i32, %arg1: i32) -> (i32, i32) {
    %c0_i32 = arith.constant 0 : i32
    return %arg0, %arg1 : i32, i32
  }
}

module attributes {stable_mosaic.version = 11 : i64} {
  func.func @_matmul_bias_kernel(%arg0: i32, %arg1: i32, %arg2: memref<80x288xbf16, #tpu.memory_space<vmem>>, %arg3: memref<288x32xbf16, #tpu.memory_space<vmem>>, %arg4: memref<1x32xf32, #tpu.memory_space<vmem>>, %arg5: memref<80x32xbf16, #tpu.memory_space<vmem>>) attributes {dimension_semantics = [#tpu.dimension_semantics<parallel>, #tpu.dimension_semantics<parallel>], iteration_bounds = array<i64: 2, 1>, scalar_prefetch = 0 : i64, scratch_operands = 0 : i64, tpu.core_type = #tpu.core_type<tc>, window_params = [{transform_indices = @transform_0, window_bounds = array<i64: 80, 288>}, {transform_indices = @transform_1, window_bounds = array<i64: 288, 32>}, {transform_indices = @transform_2, window_bounds = array<i64: 1, 32>}, {transform_indices = @transform_3, window_bounds = array<i64: 80, 32>}]} {
    %c0 = arith.constant 0 : index
    %c0_0 = arith.constant 0 : index
    %0 = vector.load %arg2[%c0, %c0_0] : memref<80x288xbf16, #tpu.memory_space<vmem>>, vector<80x288xbf16>
    %c0_1 = arith.constant 0 : index
    %c0_2 = arith.constant 0 : index
    %1 = vector.load %arg3[%c0_1, %c0_2] : memref<288x32xbf16, #tpu.memory_space<vmem>>, vector<288x32xbf16>
    %cst = arith.constant dense<0.000000e+00> : vector<80x32xf32>
    %2 = tpu.matmul %0, %1, %cst {dimension_numbers = #tpu.dot_dimension_numbers<[1], [0], [0], [1], [0, 0, 1, 1], [], []>} : vector<80x288xbf16>, vector<288x32xbf16>, vector<80x32xf32> -> vector<80x32xf32>
    %c0_3 = arith.constant 0 : index
    %c0_4 = arith.constant 0 : index
    %3 = vector.load %arg4[%c0_3, %c0_4] : memref<1x32xf32, #tpu.memory_space<vmem>>, vector<1x32xf32>
    %4 = vector.broadcast %3 : vector<1x32xf32> to vector<80x32xf32>
    %5 = arith.addf %2, %4 : vector<80x32xf32>
    %cst_5 = arith.constant 0.000000e+00 : f32
    %6 = vector.broadcast %cst_5 : f32 to vector<80x32xf32>
    %7 = arith.maximumf %5, %6 : vector<80x32xf32>
    %8 = arith.truncf %7 : vector<80x32xf32> to vector<80x32xbf16>
    %c0_6 = arith.constant 0 : index
    %c0_7 = arith.constant 0 : index
    %9 = vector.load %arg5[%c0_6, %c0_7] : memref<80x32xbf16, #tpu.memory_space<vmem>>, vector<80x32xbf16>
    tpu.vector_store %arg5[%c0_6, %c0_7], %8 {strides = array<i32>} : memref<80x32xbf16, #tpu.memory_space<vmem>>, vector<80x32xbf16>,
    return
  }
  func.func @transform_0(%arg0: i32, %arg1: i32) -> (i32, i32) {
    %c0_i32 = arith.constant 0 : i32
    %c0_i32_0 = arith.constant 0 : i32
    return %arg0, %c0_i32 : i32, i32
  }
  func.func @transform_1(%arg0: i32, %arg1: i32) -> (i32, i32) {
    %c0_i32 = arith.constant 0 : i32
    %c0_i32_0 = arith.constant 0 : i32
    return %c0_i32, %arg1 : i32, i32
  }
  func.func @transform_2(%arg0: i32, %arg1: i32) -> (i32, i32) {
    %c0_i32 = arith.constant 0 : i32
    %c0_i32_0 = arith.constant 0 : i32
    return %c0_i32, %arg1 : i32, i32
  }
  func.func @transform_3(%arg0: i32, %arg1: i32) -> (i32, i32) {
    %c0_i32 = arith.constant 0 : i32
    return %arg0, %arg1 : i32, i32
  }
}

module attributes {stable_mosaic.version = 11 : i64} {
  func.func @_matmul_bias_kernel(%arg0: i32, %arg1: i32, %arg2: memref<80x288xbf16, #tpu.memory_space<vmem>>, %arg3: memref<288x64xbf16, #tpu.memory_space<vmem>>, %arg4: memref<1x64xf32, #tpu.memory_space<vmem>>, %arg5: memref<80x64xbf16, #tpu.memory_space<vmem>>) attributes {dimension_semantics = [#tpu.dimension_semantics<parallel>, #tpu.dimension_semantics<parallel>], iteration_bounds = array<i64: 2, 1>, scalar_prefetch = 0 : i64, scratch_operands = 0 : i64, tpu.core_type = #tpu.core_type<tc>, window_params = [{transform_indices = @transform_0, window_bounds = array<i64: 80, 288>}, {transform_indices = @transform_1, window_bounds = array<i64: 288, 64>}, {transform_indices = @transform_2, window_bounds = array<i64: 1, 64>}, {transform_indices = @transform_3, window_bounds = array<i64: 80, 64>}]} {
    %c0 = arith.constant 0 : index
    %c0_0 = arith.constant 0 : index
    %0 = vector.load %arg2[%c0, %c0_0] : memref<80x288xbf16, #tpu.memory_space<vmem>>, vector<80x288xbf16>
    %c0_1 = arith.constant 0 : index
    %c0_2 = arith.constant 0 : index
    %1 = vector.load %arg3[%c0_1, %c0_2] : memref<288x64xbf16, #tpu.memory_space<vmem>>, vector<288x64xbf16>
    %cst = arith.constant dense<0.000000e+00> : vector<80x64xf32>
    %2 = tpu.matmul %0, %1, %cst {dimension_numbers = #tpu.dot_dimension_numbers<[1], [0], [0], [1], [0, 0, 1, 1], [], []>} : vector<80x288xbf16>, vector<288x64xbf16>, vector<80x64xf32> -> vector<80x64xf32>
    %c0_3 = arith.constant 0 : index
    %c0_4 = arith.constant 0 : index
    %3 = vector.load %arg4[%c0_3, %c0_4] : memref<1x64xf32, #tpu.memory_space<vmem>>, vector<1x64xf32>
    %4 = vector.broadcast %3 : vector<1x64xf32> to vector<80x64xf32>
    %5 = arith.addf %2, %4 : vector<80x64xf32>
    %cst_5 = arith.constant 0.000000e+00 : f32
    %6 = vector.broadcast %cst_5 : f32 to vector<80x64xf32>
    %7 = arith.maximumf %5, %6 : vector<80x64xf32>
    %8 = arith.truncf %7 : vector<80x64xf32> to vector<80x64xbf16>
    %c0_6 = arith.constant 0 : index
    %c0_7 = arith.constant 0 : index
    %9 = vector.load %arg5[%c0_6, %c0_7] : memref<80x64xbf16, #tpu.memory_space<vmem>>, vector<80x64xbf16>
    tpu.vector_store %arg5[%c0_6, %c0_7], %8 {strides = array<i32>} : memref<80x64xbf16, #tpu.memory_space<vmem>>, vector<80x64xbf16>,
    return
  }
  func.func @transform_0(%arg0: i32, %arg1: i32) -> (i32, i32) {
    %c0_i32 = arith.constant 0 : i32
    %c0_i32_0 = arith.constant 0 : i32
    return %arg0, %c0_i32 : i32, i32
  }
  func.func @transform_1(%arg0: i32, %arg1: i32) -> (i32, i32) {
    %c0_i32 = arith.constant 0 : i32
    %c0_i32_0 = arith.constant 0 : i32
    return %c0_i32, %arg1 : i32, i32
  }
  func.func @transform_2(%arg0: i32, %arg1: i32) -> (i32, i32) {
    %c0_i32 = arith.constant 0 : i32
    %c0_i32_0 = arith.constant 0 : i32
    return %c0_i32, %arg1 : i32, i32
  }
  func.func @transform_3(%arg0: i32, %arg1: i32) -> (i32, i32) {
    %c0_i32 = arith.constant 0 : i32
    return %arg0, %arg1 : i32, i32
  }
}

module attributes {stable_mosaic.version = 11 : i64} {
  func.func @_matmul_bias_kernel(%arg0: i32, %arg1: i32, %arg2: memref<54x576xbf16, #tpu.memory_space<vmem>>, %arg3: memref<576x64xbf16, #tpu.memory_space<vmem>>, %arg4: memref<1x64xf32, #tpu.memory_space<vmem>>, %arg5: memref<54x64xbf16, #tpu.memory_space<vmem>>) attributes {dimension_semantics = [#tpu.dimension_semantics<parallel>, #tpu.dimension_semantics<parallel>], iteration_bounds = array<i64: 1, 1>, scalar_prefetch = 0 : i64, scratch_operands = 0 : i64, tpu.core_type = #tpu.core_type<tc>, window_params = [{transform_indices = @transform_0, window_bounds = array<i64: 54, 576>}, {transform_indices = @transform_1, window_bounds = array<i64: 576, 64>}, {transform_indices = @transform_2, window_bounds = array<i64: 1, 64>}, {transform_indices = @transform_3, window_bounds = array<i64: 54, 64>}]} {
    %c0 = arith.constant 0 : index
    %c0_0 = arith.constant 0 : index
    %0 = vector.load %arg2[%c0, %c0_0] : memref<54x576xbf16, #tpu.memory_space<vmem>>, vector<54x576xbf16>
    %c0_1 = arith.constant 0 : index
    %c0_2 = arith.constant 0 : index
    %1 = vector.load %arg3[%c0_1, %c0_2] : memref<576x64xbf16, #tpu.memory_space<vmem>>, vector<576x64xbf16>
    %cst = arith.constant dense<0.000000e+00> : vector<54x64xf32>
    %2 = tpu.matmul %0, %1, %cst {dimension_numbers = #tpu.dot_dimension_numbers<[1], [0], [0], [1], [0, 0, 1, 1], [], []>} : vector<54x576xbf16>, vector<576x64xbf16>, vector<54x64xf32> -> vector<54x64xf32>
    %c0_3 = arith.constant 0 : index
    %c0_4 = arith.constant 0 : index
    %3 = vector.load %arg4[%c0_3, %c0_4] : memref<1x64xf32, #tpu.memory_space<vmem>>, vector<1x64xf32>
    %4 = vector.broadcast %3 : vector<1x64xf32> to vector<54x64xf32>
    %5 = arith.addf %2, %4 : vector<54x64xf32>
    %cst_5 = arith.constant 0.000000e+00 : f32
    %6 = vector.broadcast %cst_5 : f32 to vector<54x64xf32>
    %7 = arith.maximumf %5, %6 : vector<54x64xf32>
    %8 = arith.truncf %7 : vector<54x64xf32> to vector<54x64xbf16>
    %c0_6 = arith.constant 0 : index
    %c0_7 = arith.constant 0 : index
    %9 = vector.load %arg5[%c0_6, %c0_7] : memref<54x64xbf16, #tpu.memory_space<vmem>>, vector<54x64xbf16>
    tpu.vector_store %arg5[%c0_6, %c0_7], %8 {strides = array<i32>} : memref<54x64xbf16, #tpu.memory_space<vmem>>, vector<54x64xbf16>,
    return
  }
  func.func @transform_0(%arg0: i32, %arg1: i32) -> (i32, i32) {
    %c0_i32 = arith.constant 0 : i32
    %c0_i32_0 = arith.constant 0 : i32
    return %arg0, %c0_i32 : i32, i32
  }
  func.func @transform_1(%arg0: i32, %arg1: i32) -> (i32, i32) {
    %c0_i32 = arith.constant 0 : i32
    %c0_i32_0 = arith.constant 0 : i32
    return %c0_i32, %arg1 : i32, i32
  }
  func.func @transform_2(%arg0: i32, %arg1: i32) -> (i32, i32) {
    %c0_i32 = arith.constant 0 : i32
    %c0_i32_0 = arith.constant 0 : i32
    return %c0_i32, %arg1 : i32, i32
  }
  func.func @transform_3(%arg0: i32, %arg1: i32) -> (i32, i32) {
    %c0_i32 = arith.constant 0 : i32
    return %arg0, %arg1 : i32, i32
  }
}

module attributes {stable_mosaic.version = 11 : i64} {
  func.func @_matmul_bias_kernel(%arg0: i32, %arg1: i32, %arg2: memref<6x576xbf16, #tpu.memory_space<vmem>>, %arg3: memref<576x64xbf16, #tpu.memory_space<vmem>>, %arg4: memref<1x64xf32, #tpu.memory_space<vmem>>, %arg5: memref<6x64xbf16, #tpu.memory_space<vmem>>) attributes {dimension_semantics = [#tpu.dimension_semantics<parallel>, #tpu.dimension_semantics<parallel>], iteration_bounds = array<i64: 1, 1>, scalar_prefetch = 0 : i64, scratch_operands = 0 : i64, tpu.core_type = #tpu.core_type<tc>, window_params = [{transform_indices = @transform_0, window_bounds = array<i64: 6, 576>}, {transform_indices = @transform_1, window_bounds = array<i64: 576, 64>}, {transform_indices = @transform_2, window_bounds = array<i64: 1, 64>}, {transform_indices = @transform_3, window_bounds = array<i64: 6, 64>}]} {
    %c0 = arith.constant 0 : index
    %c0_0 = arith.constant 0 : index
    %0 = vector.load %arg2[%c0, %c0_0] : memref<6x576xbf16, #tpu.memory_space<vmem>>, vector<6x576xbf16>
    %c0_1 = arith.constant 0 : index
    %c0_2 = arith.constant 0 : index
    %1 = vector.load %arg3[%c0_1, %c0_2] : memref<576x64xbf16, #tpu.memory_space<vmem>>, vector<576x64xbf16>
    %cst = arith.constant dense<0.000000e+00> : vector<6x64xf32>
    %2 = tpu.matmul %0, %1, %cst {dimension_numbers = #tpu.dot_dimension_numbers<[1], [0], [0], [1], [0, 0, 1, 1], [], []>} : vector<6x576xbf16>, vector<576x64xbf16>, vector<6x64xf32> -> vector<6x64xf32>
    %c0_3 = arith.constant 0 : index
    %c0_4 = arith.constant 0 : index
    %3 = vector.load %arg4[%c0_3, %c0_4] : memref<1x64xf32, #tpu.memory_space<vmem>>, vector<1x64xf32>
    %4 = vector.broadcast %3 : vector<1x64xf32> to vector<6x64xf32>
    %5 = arith.addf %2, %4 : vector<6x64xf32>
    %cst_5 = arith.constant 0.000000e+00 : f32
    %6 = vector.broadcast %cst_5 : f32 to vector<6x64xf32>
    %7 = arith.maximumf %5, %6 : vector<6x64xf32>
    %8 = arith.truncf %7 : vector<6x64xf32> to vector<6x64xbf16>
    %c0_6 = arith.constant 0 : index
    %c0_7 = arith.constant 0 : index
    %9 = vector.load %arg5[%c0_6, %c0_7] : memref<6x64xbf16, #tpu.memory_space<vmem>>, vector<6x64xbf16>
    tpu.vector_store %arg5[%c0_6, %c0_7], %8 {strides = array<i32>} : memref<6x64xbf16, #tpu.memory_space<vmem>>, vector<6x64xbf16>,
    return
  }
  func.func @transform_0(%arg0: i32, %arg1: i32) -> (i32, i32) {
    %c0_i32 = arith.constant 0 : i32
    %c0_i32_0 = arith.constant 0 : i32
    return %arg0, %c0_i32 : i32, i32
  }
  func.func @transform_1(%arg0: i32, %arg1: i32) -> (i32, i32) {
    %c0_i32 = arith.constant 0 : i32
    %c0_i32_0 = arith.constant 0 : i32
    return %c0_i32, %arg1 : i32, i32
  }
  func.func @transform_2(%arg0: i32, %arg1: i32) -> (i32, i32) {
    %c0_i32 = arith.constant 0 : i32
    %c0_i32_0 = arith.constant 0 : i32
    return %c0_i32, %arg1 : i32, i32
  }
  func.func @transform_3(%arg0: i32, %arg1: i32) -> (i32, i32) {
    %c0_i32 = arith.constant 0 : i32
    return %arg0, %arg1 : i32, i32
  }
}

module attributes {stable_mosaic.version = 11 : i64} {
  func.func @_matmul_bias_kernel(%arg0: i32, %arg1: i32, %arg2: memref<6x576xbf16, #tpu.memory_space<vmem>>, %arg3: memref<576x32xbf16, #tpu.memory_space<vmem>>, %arg4: memref<1x32xf32, #tpu.memory_space<vmem>>, %arg5: memref<6x32xf32, #tpu.memory_space<vmem>>) attributes {dimension_semantics = [#tpu.dimension_semantics<parallel>, #tpu.dimension_semantics<parallel>], iteration_bounds = array<i64: 1, 1>, scalar_prefetch = 0 : i64, scratch_operands = 0 : i64, tpu.core_type = #tpu.core_type<tc>, window_params = [{transform_indices = @transform_0, window_bounds = array<i64: 6, 576>}, {transform_indices = @transform_1, window_bounds = array<i64: 576, 32>}, {transform_indices = @transform_2, window_bounds = array<i64: 1, 32>}, {transform_indices = @transform_3, window_bounds = array<i64: 6, 32>}]} {
    %c0 = arith.constant 0 : index
    %c0_0 = arith.constant 0 : index
    %0 = vector.load %arg2[%c0, %c0_0] : memref<6x576xbf16, #tpu.memory_space<vmem>>, vector<6x576xbf16>
    %c0_1 = arith.constant 0 : index
    %c0_2 = arith.constant 0 : index
    %1 = vector.load %arg3[%c0_1, %c0_2] : memref<576x32xbf16, #tpu.memory_space<vmem>>, vector<576x32xbf16>
    %cst = arith.constant dense<0.000000e+00> : vector<6x32xf32>
    %2 = tpu.matmul %0, %1, %cst {dimension_numbers = #tpu.dot_dimension_numbers<[1], [0], [0], [1], [0, 0, 1, 1], [], []>} : vector<6x576xbf16>, vector<576x32xbf16>, vector<6x32xf32> -> vector<6x32xf32>
    %c0_3 = arith.constant 0 : index
    %c0_4 = arith.constant 0 : index
    %3 = vector.load %arg4[%c0_3, %c0_4] : memref<1x32xf32, #tpu.memory_space<vmem>>, vector<1x32xf32>
    %4 = vector.broadcast %3 : vector<1x32xf32> to vector<6x32xf32>
    %5 = arith.addf %2, %4 : vector<6x32xf32>
    %c0_5 = arith.constant 0 : index
    %c0_6 = arith.constant 0 : index
    %6 = vector.load %arg5[%c0_5, %c0_6] : memref<6x32xf32, #tpu.memory_space<vmem>>, vector<6x32xf32>
    tpu.vector_store %arg5[%c0_5, %c0_6], %5 {strides = array<i32>} : memref<6x32xf32, #tpu.memory_space<vmem>>, vector<6x32xf32>,
    return
  }
  func.func @transform_0(%arg0: i32, %arg1: i32) -> (i32, i32) {
    %c0_i32 = arith.constant 0 : i32
    %c0_i32_0 = arith.constant 0 : i32
    return %arg0, %c0_i32 : i32, i32
  }
  func.func @transform_1(%arg0: i32, %arg1: i32) -> (i32, i32) {
    %c0_i32 = arith.constant 0 : i32
    %c0_i32_0 = arith.constant 0 : i32
    return %c0_i32, %arg1 : i32, i32
  }
  func.func @transform_2(%arg0: i32, %arg1: i32) -> (i32, i32) {
    %c0_i32 = arith.constant 0 : i32
    %c0_i32_0 = arith.constant 0 : i32
    return %c0_i32, %arg1 : i32, i32
  }
  func.func @transform_3(%arg0: i32, %arg1: i32) -> (i32, i32) {
    %c0_i32 = arith.constant 0 : i32
    return %arg0, %arg1 : i32, i32
  }
}

module attributes {stable_mosaic.version = 11 : i64} {
  func.func @_recurrence_kernel(%arg0: i32, %arg1: memref<1x2x32xf32, #tpu.memory_space<vmem>>, %arg2: memref<1x2x1xf32, #tpu.memory_space<vmem>>, %arg3: memref<1x2x1xf32, #tpu.memory_space<vmem>>, %arg4: memref<8x32xbf16, #tpu.memory_space<vmem>>, %arg5: memref<8x32xf32, #tpu.memory_space<vmem>>, %arg6: memref<1x32xf32, #tpu.memory_space<vmem>>, %arg7: memref<32x5xf32, #tpu.memory_space<vmem>>, %arg8: memref<1x5xf32, #tpu.memory_space<vmem>>, %arg9: memref<2x5xf32, #tpu.memory_space<vmem>>, %arg10: memref<2x8xf32, #tpu.memory_space<vmem>>, %arg11: memref<2x8xf32, #tpu.memory_space<vmem>>) attributes {dimension_semantics = [#tpu.dimension_semantics<arbitrary>], iteration_bounds = array<i64: 3>, scalar_prefetch = 0 : i64, scratch_operands = 2 : i64, tpu.core_type = #tpu.core_type<tc>, window_params = [{transform_indices = @transform_0, window_bounds = array<i64: 1, 2, 32>}, {transform_indices = @transform_1, window_bounds = array<i64: 1, 2, 1>}, {transform_indices = @transform_2, window_bounds = array<i64: 1, 2, 1>}, {pipeline_mode = #tpu.pipeline_mode<synchronous>, transform_indices = @transform_3, window_bounds = array<i64: 8, 32>}, {pipeline_mode = #tpu.pipeline_mode<synchronous>, transform_indices = @transform_4, window_bounds = array<i64: 8, 32>}, {pipeline_mode = #tpu.pipeline_mode<synchronous>, transform_indices = @transform_5, window_bounds = array<i64: 1, 32>}, {pipeline_mode = #tpu.pipeline_mode<synchronous>, transform_indices = @transform_6, window_bounds = array<i64: 32, 5>}, {pipeline_mode = #tpu.pipeline_mode<synchronous>, transform_indices = @transform_7, window_bounds = array<i64: 1, 5>}, {pipeline_mode = #tpu.pipeline_mode<synchronous>, transform_indices = @transform_8, window_bounds = array<i64: 2, 5>}]} {
    %c0_i32 = arith.constant 0 : i32
    %0 = arith.cmpi eq, %arg0, %c0_i32 : i32
    %1 = arith.extui %0 : i1 to i32
    %c0_i32_0 = arith.constant 0 : i32
    %2 = arith.cmpi ne, %1, %c0_i32_0 : i32
    scf.if %2 {
      %cst_23 = arith.constant 0.000000e+00 : f32
      %49 = vector.broadcast %cst_23 : f32 to vector<2x8xf32>
      %c0_24 = arith.constant 0 : index
      %c0_25 = arith.constant 0 : index
      %50 = vector.load %arg10[%c0_24, %c0_25] : memref<2x8xf32, #tpu.memory_space<vmem>>, vector<2x8xf32>
      tpu.vector_store %arg10[%c0_24, %c0_25], %49 {strides = array<i32>} : memref<2x8xf32, #tpu.memory_space<vmem>>, vector<2x8xf32>,
      %cst_26 = arith.constant 0.000000e+00 : f32
      %51 = vector.broadcast %cst_26 : f32 to vector<2x8xf32>
      %c0_27 = arith.constant 0 : index
      %c0_28 = arith.constant 0 : index
      %52 = vector.load %arg11[%c0_27, %c0_28] : memref<2x8xf32, #tpu.memory_space<vmem>>, vector<2x8xf32>
      tpu.vector_store %arg11[%c0_27, %c0_28], %51 {strides = array<i32>} : memref<2x8xf32, #tpu.memory_space<vmem>>, vector<2x8xf32>,
    } else {
    }
    %c0 = arith.constant 0 : index
    %c0_1 = arith.constant 0 : index
    %3 = vector.load %arg10[%c0, %c0_1] : memref<2x8xf32, #tpu.memory_space<vmem>>, vector<2x8xf32>
    %c0_2 = arith.constant 0 : index
    %c0_3 = arith.constant 0 : index
    %c0_4 = arith.constant 0 : index
    %4 = vector.load %arg2[%c0_2, %c0_3, %c0_4] : memref<1x2x1xf32, #tpu.memory_space<vmem>>, vector<1x2x1xf32>
    %5 = vector.shape_cast %4 : vector<1x2x1xf32> to vector<2x1xf32>
    %6 = vector.broadcast %5 : vector<2x1xf32> to vector<2x8xf32>
    %7 = arith.mulf %3, %6 : vector<2x8xf32>
    %c0_5 = arith.constant 0 : index
    %c0_6 = arith.constant 0 : index
    %8 = vector.load %arg11[%c0_5, %c0_6] : memref<2x8xf32, #tpu.memory_space<vmem>>, vector<2x8xf32>
    %c0_7 = arith.constant 0 : index
    %c0_8 = arith.constant 0 : index
    %c0_9 = arith.constant 0 : index
    %9 = vector.load %arg3[%c0_7, %c0_8, %c0_9] : memref<1x2x1xf32, #tpu.memory_space<vmem>>, vector<1x2x1xf32>
    %10 = vector.shape_cast %9 : vector<1x2x1xf32> to vector<2x1xf32>
    %11 = vector.broadcast %10 : vector<2x1xf32> to vector<2x8xf32>
    %12 = arith.mulf %8, %11 : vector<2x8xf32>
    %c0_10 = arith.constant 0 : index
    %c0_11 = arith.constant 0 : index
    %c0_12 = arith.constant 0 : index
    %13 = vector.load %arg1[%c0_10, %c0_11, %c0_12] : memref<1x2x32xf32, #tpu.memory_space<vmem>>, vector<1x2x32xf32>
    %14 = vector.shape_cast %13 : vector<1x2x32xf32> to vector<2x32xf32>
    %15 = arith.truncf %7 : vector<2x8xf32> to vector<2x8xbf16>
    %c0_13 = arith.constant 0 : index
    %c0_14 = arith.constant 0 : index
    %16 = vector.load %arg4[%c0_13, %c0_14] : memref<8x32xbf16, #tpu.memory_space<vmem>>, vector<8x32xbf16>
    %cst = arith.constant dense<0.000000e+00> : vector<2x32xf32>
    %17 = tpu.matmul %15, %16, %cst {dimension_numbers = #tpu.dot_dimension_numbers<[1], [0], [0], [1], [0, 0, 1, 1], [], []>} : vector<2x8xbf16>, vector<8x32xbf16>, vector<2x32xf32> -> vector<2x32xf32>
    %18 = arith.addf %14, %17 : vector<2x32xf32>
    %19 = vector.extract_strided_slice %18 {offsets = [0, 0], sizes = [2, 8], strides = [1, 1]} : vector<2x32xf32> to vector<2x8xf32>
    %20 = arith.negf %19 : vector<2x8xf32>
    %21 = math.exp %20 : vector<2x8xf32>
    %cst_15 = arith.constant 1.000000e+00 : f32
    %22 = vector.broadcast %cst_15 : f32 to vector<2x8xf32>
    %23 = arith.addf %22, %21 : vector<2x8xf32>
    %24 = arith.divf %22, %23 : vector<2x8xf32>
    %25 = vector.extract_strided_slice %18 {offsets = [0, 8], sizes = [2, 8], strides = [1, 1]} : vector<2x32xf32> to vector<2x8xf32>
    %26 = arith.negf %25 : vector<2x8xf32>
    %27 = math.exp %26 : vector<2x8xf32>
    %cst_16 = arith.constant 1.000000e+00 : f32
    %28 = vector.broadcast %cst_16 : f32 to vector<2x8xf32>
    %29 = arith.addf %28, %27 : vector<2x8xf32>
    %30 = arith.divf %28, %29 : vector<2x8xf32>
    %31 = vector.extract_strided_slice %18 {offsets = [0, 16], sizes = [2, 8], strides = [1, 1]} : vector<2x32xf32> to vector<2x8xf32>
    %32 = math.tanh %31 : vector<2x8xf32>
    %33 = vector.extract_strided_slice %18 {offsets = [0, 24], sizes = [2, 8], strides = [1, 1]} : vector<2x32xf32> to vector<2x8xf32>
    %34 = arith.negf %33 : vector<2x8xf32>
    %35 = math.exp %34 : vector<2x8xf32>
    %cst_17 = arith.constant 1.000000e+00 : f32
    %36 = vector.broadcast %cst_17 : f32 to vector<2x8xf32>
    %37 = arith.addf %36, %35 : vector<2x8xf32>
    %38 = arith.divf %36, %37 : vector<2x8xf32>
    %39 = arith.mulf %30, %12 : vector<2x8xf32>
    %40 = arith.mulf %24, %32 : vector<2x8xf32>
    %41 = arith.addf %39, %40 : vector<2x8xf32>
    %42 = math.tanh %41 : vector<2x8xf32>
    %43 = arith.mulf %38, %42 : vector<2x8xf32>
    %c0_18 = arith.constant 0 : index
    %c0_19 = arith.constant 0 : index
    %44 = vector.load %arg11[%c0_18, %c0_19] : memref<2x8xf32, #tpu.memory_space<vmem>>, vector<2x8xf32>
    tpu.vector_store %arg11[%c0_18, %c0_19], %41 {strides = array<i32>} : memref<2x8xf32, #tpu.memory_space<vmem>>, vector<2x8xf32>,
    %c0_20 = arith.constant 0 : index
    %c0_21 = arith.constant 0 : index
    %45 = vector.load %arg10[%c0_20, %c0_21] : memref<2x8xf32, #tpu.memory_space<vmem>>, vector<2x8xf32>
    tpu.vector_store %arg10[%c0_20, %c0_21], %43 {strides = array<i32>} : memref<2x8xf32, #tpu.memory_space<vmem>>, vector<2x8xf32>,
    %c2_i32 = arith.constant 2 : i32
    %46 = arith.cmpi eq, %arg0, %c2_i32 : i32
    %47 = arith.extui %46 : i1 to i32
    %c0_i32_22 = arith.constant 0 : i32
    %48 = arith.cmpi ne, %47, %c0_i32_22 : i32
    scf.if %48 {
      %c0_23 = arith.constant 0 : index
      %c0_24 = arith.constant 0 : index
      %49 = vector.load %arg5[%c0_23, %c0_24] : memref<8x32xf32, #tpu.memory_space<vmem>>, vector<8x32xf32>
      %cst_25 = arith.constant dense<0.000000e+00> : vector<2x32xf32>
      %50 = tpu.matmul %43, %49, %cst_25 {dimension_numbers = #tpu.dot_dimension_numbers<[1], [0], [0], [1], [0, 0, 1, 1], [], []>} : vector<2x8xf32>, vector<8x32xf32>, vector<2x32xf32> -> vector<2x32xf32>
      %c0_26 = arith.constant 0 : index
      %c0_27 = arith.constant 0 : index
      %51 = vector.load %arg6[%c0_26, %c0_27] : memref<1x32xf32, #tpu.memory_space<vmem>>, vector<1x32xf32>
      %52 = vector.broadcast %51 : vector<1x32xf32> to vector<2x32xf32>
      %53 = arith.addf %50, %52 : vector<2x32xf32>
      %cst_28 = arith.constant 0.000000e+00 : f32
      %54 = vector.broadcast %cst_28 : f32 to vector<2x32xf32>
      %55 = arith.maximumf %53, %54 : vector<2x32xf32>
      %c0_29 = arith.constant 0 : index
      %c0_30 = arith.constant 0 : index
      %56 = vector.load %arg7[%c0_29, %c0_30] : memref<32x5xf32, #tpu.memory_space<vmem>>, vector<32x5xf32>
      %cst_31 = arith.constant dense<0.000000e+00> : vector<2x5xf32>
      %57 = tpu.matmul %55, %56, %cst_31 {dimension_numbers = #tpu.dot_dimension_numbers<[1], [0], [0], [1], [0, 0, 1, 1], [], []>} : vector<2x32xf32>, vector<32x5xf32>, vector<2x5xf32> -> vector<2x5xf32>
      %c0_32 = arith.constant 0 : index
      %c0_33 = arith.constant 0 : index
      %58 = vector.load %arg8[%c0_32, %c0_33] : memref<1x5xf32, #tpu.memory_space<vmem>>, vector<1x5xf32>
      %59 = vector.broadcast %58 : vector<1x5xf32> to vector<2x5xf32>
      %60 = arith.addf %57, %59 : vector<2x5xf32>
      %cst_34 = arith.constant 0.000000e+00 : f32
      %61 = vector.broadcast %cst_34 : f32 to vector<2x5xf32>
      %62 = arith.maximumf %60, %61 : vector<2x5xf32>
      %c0_35 = arith.constant 0 : index
      %c0_36 = arith.constant 0 : index
      %63 = vector.load %arg9[%c0_35, %c0_36] : memref<2x5xf32, #tpu.memory_space<vmem>>, vector<2x5xf32>
      tpu.vector_store %arg9[%c0_35, %c0_36], %62 {strides = array<i32>} : memref<2x5xf32, #tpu.memory_space<vmem>>, vector<2x5xf32>,
    } else {
    }
    return
  }
  func.func @transform_0(%arg0: i32) -> (i32, i32, i32) {
    %c0_i32 = arith.constant 0 : i32
    %c0_i32_0 = arith.constant 0 : i32
    %c0_i32_1 = arith.constant 0 : i32
    return %arg0, %c0_i32, %c0_i32_0 : i32, i32, i32
  }
  func.func @transform_1(%arg0: i32) -> (i32, i32, i32) {
    %c0_i32 = arith.constant 0 : i32
    %c0_i32_0 = arith.constant 0 : i32
    %c0_i32_1 = arith.constant 0 : i32
    return %arg0, %c0_i32, %c0_i32_0 : i32, i32, i32
  }
  func.func @transform_2(%arg0: i32) -> (i32, i32, i32) {
    %c0_i32 = arith.constant 0 : i32
    %c0_i32_0 = arith.constant 0 : i32
    %c0_i32_1 = arith.constant 0 : i32
    return %arg0, %c0_i32, %c0_i32_0 : i32, i32, i32
  }
  func.func @transform_3(%arg0: i32) -> (i32, i32) {
    %c0_i32 = arith.constant 0 : i32
    %c0_i32_0 = arith.constant 0 : i32
    %c0_i32_1 = arith.constant 0 : i32
    return %c0_i32, %c0_i32_0 : i32, i32
  }
  func.func @transform_4(%arg0: i32) -> (i32, i32) {
    %c0_i32 = arith.constant 0 : i32
    %c0_i32_0 = arith.constant 0 : i32
    %c0_i32_1 = arith.constant 0 : i32
    return %c0_i32, %c0_i32_0 : i32, i32
  }
  func.func @transform_5(%arg0: i32) -> (i32, i32) {
    %c0_i32 = arith.constant 0 : i32
    %c0_i32_0 = arith.constant 0 : i32
    %c0_i32_1 = arith.constant 0 : i32
    return %c0_i32, %c0_i32_0 : i32, i32
  }
  func.func @transform_6(%arg0: i32) -> (i32, i32) {
    %c0_i32 = arith.constant 0 : i32
    %c0_i32_0 = arith.constant 0 : i32
    %c0_i32_1 = arith.constant 0 : i32
    return %c0_i32, %c0_i32_0 : i32, i32
  }
  func.func @transform_7(%arg0: i32) -> (i32, i32) {
    %c0_i32 = arith.constant 0 : i32
    %c0_i32_0 = arith.constant 0 : i32
    %c0_i32_1 = arith.constant 0 : i32
    return %c0_i32, %c0_i32_0 : i32, i32
  }
  func.func @transform_8(%arg0: i32) -> (i32, i32) {
    %c0_i32 = arith.constant 0 : i32
    %c0_i32_0 = arith.constant 0 : i32
    %c0_i32_1 = arith.constant 0 : i32
    return %c0_i32, %c0_i32_0 : i32, i32
  }
}

</mosaic_0001>

<llo_original>
// kernel: ircnn_forward.8
$region0: #{ircnn_forward.8}
  #allocation0 [shape = 'u32[]', space=smem, size = 0x4, offset = 0x4, fixed_abs, tag = 'smem constant byte address 0x4 - core index']
  #allocation1 [shape = 'u32[144,128]{1,0:T(1,128)}', space=vmem, size = 0x12000, scoped, tag = 'internal scratch']
  %s0 = inlined_call_operand.vmem [shape: bf16[150,36], index: 0, kind: input, shape index: {}]
  %s1 = inlined_call_operand.vmem [shape: bf16[36,16], index: 1, kind: input, shape index: {}]
  %s2 = inlined_call_operand.vmem [shape: f32[1,16], index: 2, kind: input, shape index: {}]
  %s3 = inlined_call_operand.vmem [shape: bf16[150,16], index: 3, kind: output, shape index: {}]
  %s4 = sld [smem:[#allocation0]]
  $region89: #{ircnn_forward.8} parent=0
    _
  %s6 = ssub.s32 1, %s4
  %s7 = scalar_select 0, %s6, %s4
  $region1: #{ircnn_forward.8} parent=0
    #allocation2 [shape = 'u8[40960]{0}', space=vmem, size = 0xa000, scoped, tag = 'output window, operand 0']
    loop: start=0, step=1, limit=4
    $region2: #{ircnn_forward.8} parent=1 // loop_pre_header
      _
    $region3: #{ircnn_forward.8} parent=1 // loop_header
      %s9 = sphi 0, %s13
      %p10 = scmp.ge.s32.totalorder %s9, 4
      %s16 = sphi 0, %s28
      %s17 = sphi 0, %s24
      %s18 = sphi 0, %s16
      %s19 = sphi 0, %s17
      %s20 = sphi 0, %s18
      %s21 = sphi 0, %s19
      %s31 = sphi 0, %s33
      %s34 = sphi 0, %s31
      %s35 = sphi 0, %s34
      %s51 = sphi 0, %s35
      %s57 = sphi 0, %s59
      %s60 = sphi 0, %s57
      %s61 = sphi 0, %s60
      %s77 = sphi 0, %s61
      %s83 = sphi 0, %s85
      %s86 = sphi 0, %s83
      %s87 = sphi 0, %s86
      %s103 = sphi 0, %s87
      %s111 = sphi 0, %s113
      %s114 = sphi 0, %s111
      %s115 = sphi 0, %s114
      %s131 = sphi 0, %s115
    $region4: #{ircnn_forward.8} parent=1 // loop_header_branch
      %12 = sbr.rel (%p10) target = $region8
    $region5: #{ircnn_forward.8} parent=1 // loop_body
      %s14 = ssub.s32 %s9, 1
      %s15 = ssub.s32 %s9, 2
      %s22 = sadd.s32 1, %s17
      %p23 = scmp.ge.s32.totalorder %s22, 1
      %s24 = scalar_select %p23, 0, %s22
      %s25 = sadd.s32 1, %s16
      %s26 = scalar_select %p23, %s25, %s16
      %p27 = scmp.ge.s32.totalorder %s26, 2
      %s28 = scalar_select %p27, 0, %s26
      %s29 = ssub.s32 %s16, %s28
      %p30 = scmp.eq.s32.totalorder %s29, 0
      %s32 = sadd.s32 %s31, 1
      %s33 = scalar_select %p30, %s31, %s32
      %p36 = pneg %p30
      %p37 = scmp.eq.s32.totalorder %s9, 1
      %p38 = por %p36, %p37
      %p39 = scmp.ne.s32.totalorder %s31, %s34
      %p40 = scmp.eq.s32.totalorder %s9, 0
      %p41 = por %p39, %p40
      %p42 = scmp.ne.s32.totalorder %s31, %s34
      %p43 = scmp.eq.s32.totalorder %s14, 1
      %p44 = por %p42, %p43
      %p45 = scmp.ne.s32.totalorder %s34, %s35
      %p46 = scmp.eq.s32.totalorder %s14, 0
      %p47 = por %p45, %p46
      %p48 = scmp.ne.s32.totalorder %s34, %s35
      %p49 = scmp.eq.s32.totalorder %s15, 1
      %p50 = por %p48, %p49
      %p52 = scmp.ne.s32.totalorder %s35, %s51
      %p53 = scmp.eq.s32.totalorder %s15, 0
      %p54 = por %p52, %p53
      %s55 = ssub.s32 %s17, %s24
      %p56 = scmp.eq.s32.totalorder %s55, 0
      %s58 = sadd.s32 %s57, 1
      %s59 = scalar_select %p56, %s57, %s58
      %p62 = pneg %p56
      %p63 = scmp.eq.s32.totalorder %s9, 1
      %p64 = por %p62, %p63
      %p65 = scmp.ne.s32.totalorder %s57, %s60
      %p66 = scmp.eq.s32.totalorder %s9, 0
      %p67 = por %p65, %p66
      %p68 = scmp.ne.s32.totalorder %s57, %s60
      %p69 = scmp.eq.s32.totalorder %s14, 1
      %p70 = por %p68, %p69
      %p71 = scmp.ne.s32.totalorder %s60, %s61
      %p72 = scmp.eq.s32.totalorder %s14, 0
      %p73 = por %p71, %p72
      %p74 = scmp.ne.s32.totalorder %s60, %s61
      %p75 = scmp.eq.s32.totalorder %s15, 1
      %p76 = por %p74, %p75
      %p78 = scmp.ne.s32.totalorder %s61, %s77
      %p79 = scmp.eq.s32.totalorder %s15, 0
      %p80 = por %p78, %p79
      %s81 = ssub.s32 %s17, %s24
      %p82 = scmp.eq.s32.totalorder %s81, 0
      %s84 = sadd.s32 %s83, 1
      %s85 = scalar_select %p82, %s83, %s84
      %p88 = pneg %p82
      %p89 = scmp.eq.s32.totalorder %s9, 1
      %p90 = por %p88, %p89
      %p91 = scmp.ne.s32.totalorder %s83, %s86
      %p92 = scmp.eq.s32.totalorder %s9, 0
      %p93 = por %p91, %p92
      %p94 = scmp.ne.s32.totalorder %s83, %s86
      %p95 = scmp.eq.s32.totalorder %s14, 1
      %p96 = por %p94, %p95
      %p97 = scmp.ne.s32.totalorder %s86, %s87
      %p98 = scmp.eq.s32.totalorder %s14, 0
      %p99 = por %p97, %p98
      %p100 = scmp.ne.s32.totalorder %s86, %s87
      %p101 = scmp.eq.s32.totalorder %s15, 1
      %p102 = por %p100, %p101
      %p104 = scmp.ne.s32.totalorder %s87, %s103
      %p105 = scmp.eq.s32.totalorder %s15, 0
      %p106 = por %p104, %p105
      %s107 = ssub.s32 %s16, %s28
      %s108 = ssub.s32 %s17, %s24
      %s109 = sor.u32 %s107, %s108
      %p110 = scmp.eq.s32.totalorder %s109, 0
      %s112 = sadd.s32 %s111, 1
      %s113 = scalar_select %p110, %s111, %s112
      %p116 = pneg %p110
      %p117 = scmp.eq.s32.totalorder %s9, 1
      %p118 = por %p116, %p117
      %p119 = scmp.ne.s32.totalorder %s111, %s114
      %p120 = scmp.eq.s32.totalorder %s9, 0
      %p121 = por %p119, %p120
      %p122 = scmp.ne.s32.totalorder %s111, %s114
      %p123 = scmp.eq.s32.totalorder %s14, 1
      %p124 = por %p122, %p123
      %p125 = scmp.ne.s32.totalorder %s114, %s115
      %p126 = scmp.eq.s32.totalorder %s14, 0
      %p127 = por %p125, %p126
      %p128 = scmp.ne.s32.totalorder %s114, %s115
      %p129 = scmp.eq.s32.totalorder %s15, 1
      %p130 = por %p128, %p129
      %p132 = scmp.ne.s32.totalorder %s115, %s131
      %p133 = scmp.eq.s32.totalorder %s15, 0
      %p134 = por %p132, %p133
      %p135 = scmp.le.s32.totalorder 1, %s9
      %p136 = scmp.lt.s32.totalorder %s9, 3
      %p137 = pnand %p135, %p136
      %p138 = pneg %p137
      // Predicated region
      $region9: #{ircnn_forward.8} parent=5 // pred_check
        _
      $region10: #{ircnn_forward.8} parent=5 // pred_check_branch
        %140 = sbr.rel (%p137) target = $region12
      $region11: #{ircnn_forward.8} parent=5 // pred_region
        %s141 = ssub.s32 %s9, 1
        // Predicated region
        $region13: #{ircnn_forward.8} parent=11 // pred_check
          %p142 = pneg %p73
        $region14: #{ircnn_forward.8} parent=11 // pred_check_branch
          %144 = sbr.rel (%p142) target = $region16
        $region15: #{ircnn_forward.8} parent=11 // pred_region
          %p145 = scmp.lt.s32.totalorder %s19, 0
          %s146 = scalar_select %p145, %s19, 0
          %s147 = smul.addr %s146, 4
          %s148 = scalar_lea.vmem %s1, %s147
        $region16: #{ircnn_forward.8} parent=11 // pred_fallthru
          _
        // Predicated region
        $region17: #{ircnn_forward.8} parent=11 // pred_check
          %p149 = pneg %p99
        $region18: #{ircnn_forward.8} parent=11 // pred_check_branch
          %151 = sbr.rel (%p149) target = $region20
        $region19: #{ircnn_forward.8} parent=11 // pred_region
          %p152 = scmp.lt.s32.totalorder %s19, 0
          %s153 = scalar_select %p152, %s19, 0
          %s154 = scalar_lea.vmem %s2, %s153
        $region20: #{ircnn_forward.8} parent=11 // pred_fallthru
          _
      $region12: #{ircnn_forward.8} parent=5 // pred_fallthru
        _
      %p155 = scmp.lt.s32.totalorder %s9, 2
      // Predicated region
      $region21: #{ircnn_forward.8} parent=5 // pred_check
        %p156 = pneg %p155
      $region22: #{ircnn_forward.8} parent=5 // pred_check_branch
        %158 = sbr.rel (%p156) target = $region24
      $region23: #{ircnn_forward.8} parent=5 // pred_region
        // Predicated region
        $region25: #{ircnn_forward.8} parent=23 // pred_check
          %p159 = pneg %p41
        $region26: #{ircnn_forward.8} parent=23 // pred_check_branch
          %161 = sbr.rel (%p159) target = $region28
        $region27: #{ircnn_forward.8} parent=23 // pred_region
          %s162 = smul.u32 10, %s16
          %s163 = ssub.s32 19, %s162
          %p164 = scmp.lt.s32.totalorder %s163, 10
          %s165 = scalar_select %p164, %s163, 10
          %s166 = smul.u32 64, %s165
          %p167 = scmp.lt.s32.totalorder %s162, 18
          %s168 = scalar_select %p167, %s162, 18
          %s169 = smul.addr %s168, 4
          %s170 = scalar_lea.vmem %s0, %s169
          %s171 = smul.u32 10, %s16
          %s172 = ssub.s32 19, %s171
          %p173 = scmp.lt.s32.totalorder %s172, 10
          %s174 = scalar_select %p173, %s172, 10
          %s175 = smul.u32 64, %s174
        $region28: #{ircnn_forward.8} parent=23 // pred_fallthru
          _
      $region24: #{ircnn_forward.8} parent=5 // pred_fallthru
        _
      %p176 = scmp.le.s32.totalorder 1, %s9
      %p177 = scmp.lt.s32.totalorder %s9, 3
      %p178 = pnand %p176, %p177
      %p179 = pneg %p178
      // Predicated region
      $region29: #{ircnn_forward.8} parent=5 // pred_check
        _
      $region30: #{ircnn_forward.8} parent=5 // pred_check_branch
        %181 = sbr.rel (%p178) target = $region32
      $region31: #{ircnn_forward.8} parent=5 // pred_region
        %s182 = ssub.s32 %s9, 1
        %s183 = smul.u32 10, %s18
        %s184 = ssub.s32 19, %s183
        %p185 = scmp.lt.s32.totalorder %s184, 10
        %s186 = scalar_select %p185, %s184, 10
        %s187 = smul.u32 64, %s186
        %p188 = scmp.lt.s32.totalorder %s183, 18
        %s189 = scalar_select %p188, %s183, 18
        %s190 = smul.addr %s189, 4
        %s191 = scalar_lea.vmem %s0, %s190
        %p192 = pneg %p47
        %p193 = pneg %p44
        %p194 = scmp.lt.s32.totalorder %s19, 0
        %s195 = scalar_select %p194, %s19, 0
        %s196 = smul.addr %s195, 4
        %s197 = scalar_lea.vmem %s1, %s196
        %p198 = pneg %p73
        %p199 = pneg %p70
        %p200 = scmp.lt.s32.totalorder %s19, 0
        %s201 = scalar_select %p200, %s19, 0
        %s202 = scalar_lea.vmem %s2, %s201
        %p203 = pneg %p99
        %p204 = pneg %p96
        %p205 = pneg %p127
        %p206 = pneg %p124
        %s207 = sand.u32 %s114, 1
        %s208 = sand.u32 %s114, 1
        %s209 = smul.addr %s208, 40
        %s210 = scalar_lea.vmem [#allocation2], %s209
        %s211 = smul.u32 10, %s18
        %s212 = ssub.s32 19, %s211
        %p213 = scmp.lt.s32.totalorder %s212, 10
        %s214 = scalar_select %p213, %s212, 10
        %s215 = smul.u32 64, %s214
        %p216 = scmp.lt.s32.totalorder %s211, 18
        %s217 = scalar_select %p216, %s211, 18
        %s218 = smul.addr %s217, 4
        %s219 = scalar_lea.vmem %s0, %s218
        %s220 = smul.u32 10, %s18
        %s221 = ssub.s32 19, %s220
        %p222 = scmp.lt.s32.totalorder %s221, 10
        %s223 = scalar_select %p222, %s221, 10
        %s224 = smul.u32 64, %s223
        %p225 = scmp.lt.s32.totalorder %s19, 0
        %s226 = scalar_select %p225, %s19, 0
        %s227 = smul.addr %s226, 4
        %s228 = scalar_lea.vmem %s1, %s227
        %p229 = scmp.lt.s32.totalorder %s19, 0
        %s230 = scalar_select %p229, %s19, 0
        %s231 = scalar_lea.vmem %s2, %s230
        %s232 = smul.u32 10, %s18
        %s233 = ssub.s32 19, %s232
        %p234 = scmp.lt.s32.totalorder %s233, 10
        %s235 = scalar_select %p234, %s233, 10
        %s236 = smul.u32 64, %s235
        %v238 = vld [vmem:[%s219] sm:$0xf]
        %v239 = vld [vmem:[%s219 + $0x4] sm:$0xf]
        %v240 = vld [vmem:[%s219 + $0x8] sm:$0xf]
        %v241 = vld [vmem:[%s219 + $0xc] sm:$0xf]
        %v242 = vld [vmem:[%s219 + $0x10] sm:$0xf]
        %v243 = vld [vmem:[%s219 + $0x14] sm:$0xf]
        %v244 = vld [vmem:[%s219 + $0x18] sm:$0xf]
        %v245 = vld [vmem:[%s219 + $0x1c] sm:$0xf]
        %v246 = vld [vmem:[%s219 + $0x20] sm:$0xf]
        %v247 = vld [vmem:[%s219 + $0x24] sm:$0xf]
        %v248 = vld [vmem:[%s228] sm:$0xf]
        %v249 = vld [vmem:[%s228 + $0x4] sm:$0xf]
        %v250 = vld [vmem:[%s228 + $0x8] sm:$0xf]
        %v251 = vld [vmem:[%s228 + $0xc] sm:$0xf]
        %v252 = vld [vmem:[%s228 + $0x10] sm:$0x3]
        %v253 = vld [vmem:[%s231] sm:$0x1]
        %v255 = vlaneseq
        %v256 = vshrl.u32 %v255, 7
        %v257 = vsub.s32 0, %v256
        %v258 = vrot.slane %v253, %v257
        %v270 = vunpack.c.l.b16 %v238
        %v271 = vunpack.c.l.b16 %v239
        %v272 = vunpack.c.l.b16 %v240
        %v273 = vunpack.c.l.b16 %v241
        %v274 = vunpack.c.l.b16 %v242
        %v275 = vunpack.c.l.b16 %v243
        %v276 = vunpack.c.l.b16 %v244
        %v277 = vunpack.c.l.b16 %v245
        %v278 = vunpack.c.l.b16 %v246
        %v279 = vunpack.c.l.b16 %v247
        %v280 = vpack.c.b16 %v271, %v270
        %v281 = vpack.c.b16 %v273, %v272
        %v282 = vpack.c.b16 %v275, %v274
        %v283 = vpack.c.b16 %v277, %v276
        %v284 = vpack.c.b16 %v279, %v278
        %v290 = vunpack.c.l.b16 %v248
        %v291 = vunpack.c.l.b16 %v249
        %v292 = vunpack.c.l.b16 %v250
        %v293 = vunpack.c.l.b16 %v251
        %v294 = vunpack.c.l.b16 %v252
        %v295 = vpack.c.b16 %v291, %v290
        %v296 = vpack.c.b16 %v293, %v292
        %v297 = vpack.c.b16 %v294, %v294
        %vm300 = vcmask 293888
        %v302 = vsel %vm300, %v280, 0
        %v305 = vsel %vm300, %v281, 0
        %v308 = vsel %vm300, %v282, 0
        %v311 = vsel %vm300, %v283, 0
        %v314 = vsel %vm300, %v284, 0
        %vm316 = vcmask 1041408
        %v318 = vsel %vm316, %v297, 0
        %320 = vmatprep.subr.bf16.mxu0 0
        %321 = vmatpush1.bf16.msra.mxu0 0
        %322 = vmatprep.subr.bf16.mxu0 0
        %323 = vmatpush1.bf16.msra.mxu0 0
        %324 = vmatprep.subr.bf16.mxu0 0
        %325 = vmatpush1.bf16.msra.mxu0 0
        %326 = vmatprep.subr.bf16.mxu0 0
        %327 = vmatpush1.bf16.msra.mxu0 0
        %328 = vmatprep.subr.bf16.mxu0 0
        %329 = vmatpush1.bf16.msra.mxu0 0
        %330 = vmatprep.subr.bf16.mxu0 0
        %331 = vmatpush1.bf16.msra.mxu0 %v318
        %332 = vmatprep.subr.bf16.mxu0 0
        %333 = vmatpush1.bf16.msra.mxu0 %v296
        %334 = vmatprep.subr.bf16.mxu0 0
        %335 = vmatpush1.bf16.msra.mxu0 %v295
        %336 = vmatprep.subr.bf16.mxu0 0
        %337 = vmatpush2.bf16.msra.mxu0 0
        %338 = vmatprep.subr.bf16.mxu0 0
        %339 = vmatpush2.bf16.msra.mxu0 0
        %340 = vmatprep.subr.bf16.mxu0 0
        %341 = vmatpush2.bf16.msra.mxu0 0
        %342 = vmatprep.subr.bf16.mxu0 0
        %343 = vmatpush2.bf16.msra.mxu0 0
        %344 = vmatprep.subr.bf16.mxu0 0
        %345 = vmatpush2.bf16.msra.mxu0 0
        %346 = vmatprep.subr.bf16.mxu0 0
        %347 = vmatpush2.bf16.msra.mxu0 0
        %348 = vmatprep.subr.bf16.mxu0 0
        %349 = vmatpush2.bf16.msra.mxu0 0
        %350 = vmatprep.subr.bf16.mxu0 0
        %351 = vmatpush2.bf16.msra.mxu0 0
        %352 = vmatprep.mubr.bf16.mxu0 0
        %353 = vmatmul.mubr.bf16.gmra.mxu0 %v302
        %v354 = vpop.f32.mrf.mxu0
        %v355 = vadd.f32 %v258, %v354
        %v356 = vpop.f32.mrf.mxu0
        %v357 = vpop.f32.mrf.mxu0
        %v358 = vadd.f32 %v258, %v357
        %v359 = vpop.f32.mrf.mxu0
        %360 = vmatprep.mubr.bf16.mxu0 0
        %361 = vmatmul.mubr.bf16.gmra.mxu0 %v305
        %v362 = vpop.f32.mrf.mxu0
        %v363 = vadd.f32 %v258, %v362
        %v364 = vpop.f32.mrf.mxu0
        %v365 = vpop.f32.mrf.mxu0
        %v366 = vadd.f32 %v258, %v365
        %v367 = vpop.f32.mrf.mxu0
        %368 = vmatprep.mubr.bf16.mxu0 0
        %369 = vmatmul.mubr.bf16.gmra.mxu0 %v308
        %v370 = vpop.f32.mrf.mxu0
        %v371 = vadd.f32 %v258, %v370
        %v372 = vpop.f32.mrf.mxu0
        %v373 = vpop.f32.mrf.mxu0
        %v374 = vadd.f32 %v258, %v373
        %v375 = vpop.f32.mrf.mxu0
        %376 = vmatprep.mubr.bf16.mxu0 0
        %377 = vmatmul.mubr.bf16.gmra.mxu0 %v311
        %v378 = vpop.f32.mrf.mxu0
        %v379 = vadd.f32 %v258, %v378
        %v380 = vpop.f32.mrf.mxu0
        %v381 = vpop.f32.mrf.mxu0
        %v382 = vadd.f32 %v258, %v381
        %v383 = vpop.f32.mrf.mxu0
        %384 = vmatprep.mubr.bf16.mxu0 0
        %385 = vmatmul.mubr.bf16.gmra.mxu0 %v314
        %v386 = vpop.f32.mrf.mxu0
        %v387 = vadd.f32 %v258, %v386
        %v388 = vpop.f32.mrf.mxu0
        %v389 = vpop.f32.mrf.mxu0
        %v390 = vadd.f32 %v258, %v389
        %v391 = vpop.f32.mrf.mxu0
        %392 = vdwg.mxu0
        %v393 = vmax.f32 %v355, 0.0
        %v394 = vmax.f32 %v358, 0.0
        %v395 = vmax.f32 %v363, 0.0
        %v396 = vmax.f32 %v366, 0.0
        %v397 = vmax.f32 %v371, 0.0
        %v398 = vmax.f32 %v374, 0.0
        %v399 = vmax.f32 %v379, 0.0
        %v400 = vmax.f32 %v382, 0.0
        %v401 = vmax.f32 %v387, 0.0
        %v402 = vmax.f32 %v390, 0.0
        %v403 = vpack.c.bf16 %v394, %v393
        %v404 = vpack.c.bf16 %v396, %v395
        %v405 = vpack.c.bf16 %v398, %v397
        %v406 = vpack.c.bf16 %v400, %v399
        %v407 = vpack.c.bf16 %v402, %v401
        %v413 = vunpack.c.l.b16 %v403
        %v414 = vunpack.c.h.b16 %v403
        %v415 = vunpack.c.l.b16 %v404
        %v416 = vunpack.c.h.b16 %v404
        %v417 = vunpack.c.l.b16 %v405
        %v418 = vunpack.c.h.b16 %v405
        %v419 = vunpack.c.l.b16 %v406
        %v420 = vunpack.c.h.b16 %v406
        %v421 = vunpack.c.l.b16 %v407
        %v422 = vunpack.c.h.b16 %v407
        %v423 = vpack.c.b16 %v413, %v413
        %v424 = vpack.c.b16 %v414, %v414
        %v425 = vpack.c.b16 %v415, %v415
        %v426 = vpack.c.b16 %v416, %v416
        %v427 = vpack.c.b16 %v417, %v417
        %v428 = vpack.c.b16 %v418, %v418
        %v429 = vpack.c.b16 %v419, %v419
        %v430 = vpack.c.b16 %v420, %v420
        %v431 = vpack.c.b16 %v421, %v421
        %v432 = vpack.c.b16 %v422, %v422
        %vm443 = vcmask 125952
        %444 = vst.msk [vmem:[%s210] sm:$0xf] %vm443, %v423
        %445 = vst.msk [vmem:[%s210 + $0x4] sm:$0xf] %vm443, %v424
        %446 = vst.msk [vmem:[%s210 + $0x8] sm:$0xf] %vm443, %v425
        %447 = vst.msk [vmem:[%s210 + $0xc] sm:$0xf] %vm443, %v426
        %448 = vst.msk [vmem:[%s210 + $0x10] sm:$0xf] %vm443, %v427
        %449 = vst.msk [vmem:[%s210 + $0x14] sm:$0xf] %vm443, %v428
        %450 = vst.msk [vmem:[%s210 + $0x18] sm:$0xf] %vm443, %v429
        %451 = vst.msk [vmem:[%s210 + $0x1c] sm:$0xf] %vm443, %v430
        %452 = vst.msk [vmem:[%s210 + $0x20] sm:$0xf] %vm443, %v431
        %453 = vst.msk [vmem:[%s210 + $0x24] sm:$0xf] %vm443, %v432
        %s454 = sand.u32 %s114, 1
        %s455 = sand.u32 %s114, 1
        %s456 = smul.addr %s455, 40
        %s457 = scalar_lea.vmem [#allocation2], %s456
        // Predicated region
        $region33: #{ircnn_forward.8} parent=31 // pred_check
          %p458 = pneg %p124
        $region34: #{ircnn_forward.8} parent=31 // pred_check_branch
          %460 = sbr.rel (%p458) target = $region36
        $region35: #{ircnn_forward.8} parent=31 // pred_region
          %s461 = smul.u32 10, %s18
          %s462 = ssub.s32 19, %s461
          %p463 = scmp.lt.s32.totalorder %s462, 10
          %s464 = scalar_select %p463, %s462, 10
          %s465 = smul.u32 64, %s464
          %p466 = scmp.ne.s32.totalorder 0, %s465
          %s467 = sadd.s32 %s19, %s461
          %s468 = smul.addr %s467, 4
          %s469 = scalar_lea.vmem %s3, %s468
          // Predicated region
          $region37: #{ircnn_forward.8} parent=35 // pred_check
            %p470 = pneg %p466
          $region38: #{ircnn_forward.8} parent=35 // pred_check_branch
            %472 = sbr.rel (%p470) target = $region40
          $region39: #{ircnn_forward.8} parent=35 // pred_region
            // Predicated region
            $region41: #{ircnn_forward.8} parent=39 // pred_check
              _
            $region42: #{ircnn_forward.8} parent=39 // pred_check_branch
              %474 = sbr.rel target = $region44
            $region43: #{ircnn_forward.8} parent=39 // pred_region
              // Predicated region
              $region63: #{ircnn_forward.8} parent=43 // pred_check
                _
              $region64: #{ircnn_forward.8} parent=43 // pred_check_branch
                %543 = sbr.rel (0) target = $region66
              $region65: #{ircnn_forward.8} parent=43 // pred_region
                %s545 = ssub.s32 16, 1
                %s546 = sdiv.u32.pop %s464, 10
                %s547 = srem.u32.pop %s464, 10
                // While loop
                $region67: #{ircnn_forward.8} parent=65 // loop_pre_header
                  _
                $region68: #{ircnn_forward.8} parent=65 // loop_header
                  %s549 = sphi 0, %s551
                  %p550 = scmp.ge.s32.totalorder %s549, %s546
                  %s554 = sphi 0, %s579
                  %s555 = sphi %s457, %s582
                  %s556 = sphi %s469, %s583
                $region69: #{ircnn_forward.8} parent=65 // loop_header_branch
                  %553 = sbr.rel (%p550) target = $region73
                $region70: #{ircnn_forward.8} parent=65 // loop_body
                  %v557 = vld [vmem:[%s555] sm:%s545]
                  %558 = vst [vmem:[%s556] sm:%s545] %v557
                  %v559 = vld [vmem:[%s555 + $0x4] sm:%s545]
                  %560 = vst [vmem:[%s556 + $0x4] sm:%s545] %v559
                  %v561 = vld [vmem:[%s555 + $0x8] sm:%s545]
                  %562 = vst [vmem:[%s556 + $0x8] sm:%s545] %v561
                  %v563 = vld [vmem:[%s555 + $0xc] sm:%s545]
                  %564 = vst [vmem:[%s556 + $0xc] sm:%s545] %v563
                  %v565 = vld [vmem:[%s555 + $0x10] sm:%s545]
                  %566 = vst [vmem:[%s556 + $0x10] sm:%s545] %v565
                  %v567 = vld [vmem:[%s555 + $0x14] sm:%s545]
                  %568 = vst [vmem:[%s556 + $0x14] sm:%s545] %v567
                  %v569 = vld [vmem:[%s555 + $0x18] sm:%s545]
                  %570 = vst [vmem:[%s556 + $0x18] sm:%s545] %v569
                  %v571 = vld [vmem:[%s555 + $0x1c] sm:%s545]
                  %572 = vst [vmem:[%s556 + $0x1c] sm:%s545] %v571
                  %v573 = vld [vmem:[%s555 + $0x20] sm:%s545]
                  %574 = vst [vmem:[%s556 + $0x20] sm:%s545] %v573
                  %v575 = vld [vmem:[%s555 + $0x24] sm:%s545]
                  %576 = vst [vmem:[%s556 + $0x24] sm:%s545] %v575
                  %s577 = sadd.s32 1, %s554
                  %p578 = scmp.ge.s32.totalorder %s577, %s546
                  %s579 = scalar_select %p578, 0, %s577
                  %s580 = smul.u32 %s579, 40
                  %s581 = smul.u32 %s579, 40
                  %s582 = scalar_lea.vmem %s457, %s580 [#allocation2]
                  %s583 = scalar_lea.vmem %s469, %s581
                $region71: #{ircnn_forward.8} parent=65 // loop_footer
                  %s551 = sadd.s32 %s549, 1
                $region72: #{ircnn_forward.8} parent=65 // loop_footer_branch
                  %548 = sbr.rel target = $region68
                $region73: #{ircnn_forward.8} parent=65 // loop_exit
                  _
                %s584 = sdiv.u32.pop %s464, 10
                %s585 = srem.u32.pop %s464, 10
                %s586 = smul.u32 %s584, 10
                %s587 = smul.u32 4, %s586
                %s588 = scalar_lea.vmem %s457, %s587 [#allocation2]
                %s589 = smul.u32 4, %s586
                %s590 = scalar_lea.vmem %s469, %s589
                // While loop
                $region74: #{ircnn_forward.8} parent=65 // loop_pre_header
                  _
                $region75: #{ircnn_forward.8} parent=65 // loop_header
                  %s592 = sphi 0, %s594
                  %p593 = scmp.ge.s32.totalorder %s592, %s585
                  %s597 = sphi 0, %s604
                  %s598 = sphi %s588, %s607
                  %s599 = sphi %s590, %s608
                $region76: #{ircnn_forward.8} parent=65 // loop_header_branch
                  %596 = sbr.rel (%p593) target = $region80
                $region77: #{ircnn_forward.8} parent=65 // loop_body
                  %v600 = vld [vmem:[%s598] sm:%s545]
                  %601 = vst [vmem:[%s599] sm:%s545] %v600
                  %s602 = sadd.s32 1, %s597
                  %p603 = scmp.ge.s32.totalorder %s602, %s585
                  %s604 = scalar_select %p603, 0, %s602
                  %s605 = smul.u32 %s604, 4
                  %s606 = smul.u32 %s604, 4
                  %s607 = scalar_lea.vmem %s588, %s605 [#allocation2]
                  %s608 = scalar_lea.vmem %s590, %s606
                $region78: #{ircnn_forward.8} parent=65 // loop_footer
                  %s594 = sadd.s32 %s592, 1
                $region79: #{ircnn_forward.8} parent=65 // loop_footer_branch
                  %591 = sbr.rel target = $region75
                $region80: #{ircnn_forward.8} parent=65 // loop_exit
                  _
              $region66: #{ircnn_forward.8} parent=43 // pred_fallthru
                _
            $region44: #{ircnn_forward.8} parent=39 // pred_fallthru
              _
            // Predicated region
            $region45: #{ircnn_forward.8} parent=39 // pred_check
              _
            $region46: #{ircnn_forward.8} parent=39 // pred_check_branch
              %476 = sbr.rel (0) target = $region48
            $region47: #{ircnn_forward.8} parent=39 // pred_region
              %s478 = ssub.s32 16, 1
              %s479 = sdiv.u32.pop %s464, 10
              %s480 = srem.u32.pop %s464, 10
              // While loop
              $region49: #{ircnn_forward.8} parent=47 // loop_pre_header
                _
              $region50: #{ircnn_forward.8} parent=47 // loop_header
                %s482 = sphi 0, %s484
                %p483 = scmp.ge.s32.totalorder %s482, %s479
                %s487 = sphi 0, %s512
                %s488 = sphi %s457, %s515
                %s489 = sphi %s469, %s516
              $region51: #{ircnn_forward.8} parent=47 // loop_header_branch
                %486 = sbr.rel (%p483) target = $region55
              $region52: #{ircnn_forward.8} parent=47 // loop_body
                %v490 = vld [vmem:[%s488] sm:%s478]
                %491 = vst [vmem:[%s489] sm:%s478] %v490
                %v492 = vld [vmem:[%s488 + $0x4] sm:%s478]
                %493 = vst [vmem:[%s489 + $0x4] sm:%s478] %v492
                %v494 = vld [vmem:[%s488 + $0x8] sm:%s478]
                %495 = vst [vmem:[%s489 + $0x8] sm:%s478] %v494
                %v496 = vld [vmem:[%s488 + $0xc] sm:%s478]
                %497 = vst [vmem:[%s489 + $0xc] sm:%s478] %v496
                %v498 = vld [vmem:[%s488 + $0x10] sm:%s478]
                %499 = vst [vmem:[%s489 + $0x10] sm:%s478] %v498
                %v500 = vld [vmem:[%s488 + $0x14] sm:%s478]
                %501 = vst [vmem:[%s489 + $0x14] sm:%s478] %v500
                %v502 = vld [vmem:[%s488 + $0x18] sm:%s478]
                %503 = vst [vmem:[%s489 + $0x18] sm:%s478] %v502
                %v504 = vld [vmem:[%s488 + $0x1c] sm:%s478]
                %505 = vst [vmem:[%s489 + $0x1c] sm:%s478] %v504
                %v506 = vld [vmem:[%s488 + $0x20] sm:%s478]
                %507 = vst [vmem:[%s489 + $0x20] sm:%s478] %v506
                %v508 = vld [vmem:[%s488 + $0x24] sm:%s478]
                %509 = vst [vmem:[%s489 + $0x24] sm:%s478] %v508
                %s510 = sadd.s32 1, %s487
                %p511 = scmp.ge.s32.totalorder %s510, %s479
                %s512 = scalar_select %p511, 0, %s510
                %s513 = smul.u32 %s512, 40
                %s514 = smul.u32 %s512, 40
                %s515 = scalar_lea.vmem %s457, %s513 [#allocation2]
                %s516 = scalar_lea.vmem %s469, %s514
              $region53: #{ircnn_forward.8} parent=47 // loop_footer
                %s484 = sadd.s32 %s482, 1
              $region54: #{ircnn_forward.8} parent=47 // loop_footer_branch
                %481 = sbr.rel target = $region50
              $region55: #{ircnn_forward.8} parent=47 // loop_exit
                _
              %s517 = sdiv.u32.pop %s464, 10
              %s518 = srem.u32.pop %s464, 10
              %s519 = smul.u32 %s517, 10
              %s520 = smul.u32 4, %s519
              %s521 = scalar_lea.vmem %s457, %s520 [#allocation2]
              %s522 = smul.u32 4, %s519
              %s523 = scalar_lea.vmem %s469, %s522
              // While loop
              $region56: #{ircnn_forward.8} parent=47 // loop_pre_header
                _
              $region57: #{ircnn_forward.8} parent=47 // loop_header
                %s525 = sphi 0, %s527
                %p526 = scmp.ge.s32.totalorder %s525, %s518
                %s530 = sphi 0, %s537
                %s531 = sphi %s521, %s540
                %s532 = sphi %s523, %s541
              $region58: #{ircnn_forward.8} parent=47 // loop_header_branch
                %529 = sbr.rel (%p526) target = $region62
              $region59: #{ircnn_forward.8} parent=47 // loop_body
                %v533 = vld [vmem:[%s531] sm:%s478]
                %534 = vst [vmem:[%s532] sm:%s478] %v533
                %s535 = sadd.s32 1, %s530
                %p536 = scmp.ge.s32.totalorder %s535, %s518
                %s537 = scalar_select %p536, 0, %s535
                %s538 = smul.u32 %s537, 4
                %s539 = smul.u32 %s537, 4
                %s540 = scalar_lea.vmem %s521, %s538 [#allocation2]
                %s541 = scalar_lea.vmem %s523, %s539
              $region60: #{ircnn_forward.8} parent=47 // loop_footer
                %s527 = sadd.s32 %s525, 1
              $region61: #{ircnn_forward.8} parent=47 // loop_footer_branch
                %524 = sbr.rel target = $region57
              $region62: #{ircnn_forward.8} parent=47 // loop_exit
                _
            $region48: #{ircnn_forward.8} parent=39 // pred_fallthru
              _
          $region40: #{ircnn_forward.8} parent=35 // pred_fallthru
            _
          %609 = vnop
        $region36: #{ircnn_forward.8} parent=31 // pred_fallthru
          _
      $region32: #{ircnn_forward.8} parent=5 // pred_fallthru
        _
      %p610 = scmp.le.s32.totalorder 2, %s9
      // Predicated region
      $region81: #{ircnn_forward.8} parent=5 // pred_check
        %p611 = pneg %p610
      $region82: #{ircnn_forward.8} parent=5 // pred_check_branch
        %613 = sbr.rel (%p611) target = $region84
      $region83: #{ircnn_forward.8} parent=5 // pred_region
        %s614 = ssub.s32 %s9, 2
        // Predicated region
        $region85: #{ircnn_forward.8} parent=83 // pred_check
          %p615 = pneg %p130
        $region86: #{ircnn_forward.8} parent=83 // pred_check_branch
          %617 = sbr.rel (%p615) target = $region88
        $region87: #{ircnn_forward.8} parent=83 // pred_region
          %s618 = sand.u32 %s115, 1
          %s619 = sand.u32 %s115, 1
          %s620 = smul.addr %s619, 40
          %s621 = scalar_lea.vmem [#allocation2], %s620
        $region88: #{ircnn_forward.8} parent=83 // pred_fallthru
          _
      $region84: #{ircnn_forward.8} parent=5 // pred_fallthru
        _
    $region6: #{ircnn_forward.8} parent=1 // loop_footer
      %s13 = sadd.s32 1, %s9
    $region7: #{ircnn_forward.8} parent=1 // loop_footer_branch
      %8 = sbr.rel target = $region3
    $region8: #{ircnn_forward.8} parent=1 // loop_exit
      _

// kernel: ircnn_forward.9
$region0: #{ircnn_forward.9}
  #allocation0 [shape = 'u32[]', space=smem, size = 0x4, offset = 0x4, fixed_abs, tag = 'smem constant byte address 0x4 - core index']
  #allocation1 [shape = 'u32[144,128]{1,0:T(1,128)}', space=vmem, size = 0x12000, scoped, tag = 'internal scratch']
  %s0 = inlined_call_operand.vmem [shape: bf16[150,144], index: 0, kind: input, shape index: {}]
  %s1 = inlined_call_operand.vmem [shape: bf16[144,32], index: 1, kind: input, shape index: {}]
  %s2 = inlined_call_operand.vmem [shape: f32[1,32], index: 2, kind: input, shape index: {}]
  %s3 = inlined_call_operand.vmem [shape: bf16[150,32], index: 3, kind: output, shape index: {}]
  %s4 = sld [smem:[#allocation0]]
  $region89: #{ircnn_forward.9} parent=0
    _
  %s6 = ssub.s32 1, %s4
  %s7 = scalar_select 0, %s6, %s4
  $region1: #{ircnn_forward.9} parent=0
    #allocation2 [shape = 'u8[40960]{0}', space=vmem, size = 0xa000, scoped, tag = 'output window, operand 0']
    loop: start=0, step=1, limit=4
    $region2: #{ircnn_forward.9} parent=1 // loop_pre_header
      _
    $region3: #{ircnn_forward.9} parent=1 // loop_header
      %s9 = sphi 0, %s13
      %p10 = scmp.ge.s32.totalorder %s9, 4
      %s16 = sphi 0, %s28
      %s17 = sphi 0, %s24
      %s18 = sphi 0, %s16
      %s19 = sphi 0, %s17
      %s20 = sphi 0, %s18
      %s21 = sphi 0, %s19
      %s31 = sphi 0, %s33
      %s34 = sphi 0, %s31
      %s35 = sphi 0, %s34
      %s51 = sphi 0, %s35
      %s57 = sphi 0, %s59
      %s60 = sphi 0, %s57
      %s61 = sphi 0, %s60
      %s77 = sphi 0, %s61
      %s83 = sphi 0, %s85
      %s86 = sphi 0, %s83
      %s87 = sphi 0, %s86
      %s103 = sphi 0, %s87
      %s111 = sphi 0, %s113
      %s114 = sphi 0, %s111
      %s115 = sphi 0, %s114
      %s131 = sphi 0, %s115
    $region4: #{ircnn_forward.9} parent=1 // loop_header_branch
      %12 = sbr.rel (%p10) target = $region8
    $region5: #{ircnn_forward.9} parent=1 // loop_body
      %s14 = ssub.s32 %s9, 1
      %s15 = ssub.s32 %s9, 2
      %s22 = sadd.s32 1, %s17
      %p23 = scmp.ge.s32.totalorder %s22, 1
      %s24 = scalar_select %p23, 0, %s22
      %s25 = sadd.s32 1, %s16
      %s26 = scalar_select %p23, %s25, %s16
      %p27 = scmp.ge.s32.totalorder %s26, 2
      %s28 = scalar_select %p27, 0, %s26
      %s29 = ssub.s32 %s16, %s28
      %p30 = scmp.eq.s32.totalorder %s29, 0
      %s32 = sadd.s32 %s31, 1
      %s33 = scalar_select %p30, %s31, %s32
      %p36 = pneg %p30
      %p37 = scmp.eq.s32.totalorder %s9, 1
      %p38 = por %p36, %p37
      %p39 = scmp.ne.s32.totalorder %s31, %s34
      %p40 = scmp.eq.s32.totalorder %s9, 0
      %p41 = por %p39, %p40
      %p42 = scmp.ne.s32.totalorder %s31, %s34
      %p43 = scmp.eq.s32.totalorder %s14, 1
      %p44 = por %p42, %p43
      %p45 = scmp.ne.s32.totalorder %s34, %s35
      %p46 = scmp.eq.s32.totalorder %s14, 0
      %p47 = por %p45, %p46
      %p48 = scmp.ne.s32.totalorder %s34, %s35
      %p49 = scmp.eq.s32.totalorder %s15, 1
      %p50 = por %p48, %p49
      %p52 = scmp.ne.s32.totalorder %s35, %s51
      %p53 = scmp.eq.s32.totalorder %s15, 0
      %p54 = por %p52, %p53
      %s55 = ssub.s32 %s17, %s24
      %p56 = scmp.eq.s32.totalorder %s55, 0
      %s58 = sadd.s32 %s57, 1
      %s59 = scalar_select %p56, %s57, %s58
      %p62 = pneg %p56
      %p63 = scmp.eq.s32.totalorder %s9, 1
      %p64 = por %p62, %p63
      %p65 = scmp.ne.s32.totalorder %s57, %s60
      %p66 = scmp.eq.s32.totalorder %s9, 0
      %p67 = por %p65, %p66
      %p68 = scmp.ne.s32.totalorder %s57, %s60
      %p69 = scmp.eq.s32.totalorder %s14, 1
      %p70 = por %p68, %p69
      %p71 = scmp.ne.s32.totalorder %s60, %s61
      %p72 = scmp.eq.s32.totalorder %s14, 0
      %p73 = por %p71, %p72
      %p74 = scmp.ne.s32.totalorder %s60, %s61
      %p75 = scmp.eq.s32.totalorder %s15, 1
      %p76 = por %p74, %p75
      %p78 = scmp.ne.s32.totalorder %s61, %s77
      %p79 = scmp.eq.s32.totalorder %s15, 0
      %p80 = por %p78, %p79
      %s81 = ssub.s32 %s17, %s24
      %p82 = scmp.eq.s32.totalorder %s81, 0
      %s84 = sadd.s32 %s83, 1
      %s85 = scalar_select %p82, %s83, %s84
      %p88 = pneg %p82
      %p89 = scmp.eq.s32.totalorder %s9, 1
      %p90 = por %p88, %p89
      %p91 = scmp.ne.s32.totalorder %s83, %s86
      %p92 = scmp.eq.s32.totalorder %s9, 0
      %p93 = por %p91, %p92
      %p94 = scmp.ne.s32.totalorder %s83, %s86
      %p95 = scmp.eq.s32.totalorder %s14, 1
      %p96 = por %p94, %p95
      %p97 = scmp.ne.s32.totalorder %s86, %s87
      %p98 = scmp.eq.s32.totalorder %s14, 0
      %p99 = por %p97, %p98
      %p100 = scmp.ne.s32.totalorder %s86, %s87
      %p101 = scmp.eq.s32.totalorder %s15, 1
      %p102 = por %p100, %p101
      %p104 = scmp.ne.s32.totalorder %s87, %s103
      %p105 = scmp.eq.s32.totalorder %s15, 0
      %p106 = por %p104, %p105
      %s107 = ssub.s32 %s16, %s28
      %s108 = ssub.s32 %s17, %s24
      %s109 = sor.u32 %s107, %s108
      %p110 = scmp.eq.s32.totalorder %s109, 0
      %s112 = sadd.s32 %s111, 1
      %s113 = scalar_select %p110, %s111, %s112
      %p116 = pneg %p110
      %p117 = scmp.eq.s32.totalorder %s9, 1
      %p118 = por %p116, %p117
      %p119 = scmp.ne.s32.totalorder %s111, %s114
      %p120 = scmp.eq.s32.totalorder %s9, 0
      %p121 = por %p119, %p120
      %p122 = scmp.ne.s32.totalorder %s111, %s114
      %p123 = scmp.eq.s32.totalorder %s14, 1
      %p124 = por %p122, %p123
      %p125 = scmp.ne.s32.totalorder %s114, %s115
      %p126 = scmp.eq.s32.totalorder %s14, 0
      %p127 = por %p125, %p126
      %p128 = scmp.ne.s32.totalorder %s114, %s115
      %p129 = scmp.eq.s32.totalorder %s15, 1
      %p130 = por %p128, %p129
      %p132 = scmp.ne.s32.totalorder %s115, %s131
      %p133 = scmp.eq.s32.totalorder %s15, 0
      %p134 = por %p132, %p133
      %p135 = scmp.le.s32.totalorder 1, %s9
      %p136 = scmp.lt.s32.totalorder %s9, 3
      %p137 = pnand %p135, %p136
      %p138 = pneg %p137
      // Predicated region
      $region9: #{ircnn_forward.9} parent=5 // pred_check
        _
      $region10: #{ircnn_forward.9} parent=5 // pred_check_branch
        %140 = sbr.rel (%p137) target = $region12
      $region11: #{ircnn_forward.9} parent=5 // pred_region
        %s141 = ssub.s32 %s9, 1
        // Predicated region
        $region13: #{ircnn_forward.9} parent=11 // pred_check
          %p142 = pneg %p73
        $region14: #{ircnn_forward.9} parent=11 // pred_check_branch
          %144 = sbr.rel (%p142) target = $region16
        $region15: #{ircnn_forward.9} parent=11 // pred_region
          %p145 = scmp.lt.s32.totalorder %s19, 0
          %s146 = scalar_select %p145, %s19, 0
          %s147 = smul.addr %s146, 4
          %s148 = scalar_lea.vmem %s1, %s147
        $region16: #{ircnn_forward.9} parent=11 // pred_fallthru
          _
        // Predicated region
        $region17: #{ircnn_forward.9} parent=11 // pred_check
          %p149 = pneg %p99
        $region18: #{ircnn_forward.9} parent=11 // pred_check_branch
          %151 = sbr.rel (%p149) target = $region20
        $region19: #{ircnn_forward.9} parent=11 // pred_region
          %p152 = scmp.lt.s32.totalorder %s19, 0
          %s153 = scalar_select %p152, %s19, 0
          %s154 = scalar_lea.vmem %s2, %s153
        $region20: #{ircnn_forward.9} parent=11 // pred_fallthru
          _
      $region12: #{ircnn_forward.9} parent=5 // pred_fallthru
        _
      %p155 = scmp.lt.s32.totalorder %s9, 2
      // Predicated region
      $region21: #{ircnn_forward.9} parent=5 // pred_check
        %p156 = pneg %p155
      $region22: #{ircnn_forward.9} parent=5 // pred_check_branch
        %158 = sbr.rel (%p156) target = $region24
      $region23: #{ircnn_forward.9} parent=5 // pred_region
        // Predicated region
        $region25: #{ircnn_forward.9} parent=23 // pred_check
          %p159 = pneg %p41
        $region26: #{ircnn_forward.9} parent=23 // pred_check_branch
          %161 = sbr.rel (%p159) target = $region28
        $region27: #{ircnn_forward.9} parent=23 // pred_region
          %s162 = smul.u32 10, %s16
          %s163 = ssub.s32 19, %s162
          %p164 = scmp.lt.s32.totalorder %s163, 10
          %s165 = scalar_select %p164, %s163, 10
          %s166 = smul.u32 64, %s165
          %s167 = smul.u32 %s166, 2
          %p168 = scmp.lt.s32.totalorder %s162, 18
          %s169 = scalar_select %p168, %s162, 18
          %s170 = smul.addr %s169, 2
          %s171 = smul.addr %s170, 4
          %s172 = scalar_lea.vmem %s0, %s171
          %s173 = smul.u32 10, %s16
          %s174 = ssub.s32 19, %s173
          %p175 = scmp.lt.s32.totalorder %s174, 10
          %s176 = scalar_select %p175, %s174, 10
          %s177 = smul.u32 64, %s176
          %s178 = smul.u32 %s177, 2
        $region28: #{ircnn_forward.9} parent=23 // pred_fallthru
          _
      $region24: #{ircnn_forward.9} parent=5 // pred_fallthru
        _
      %p179 = scmp.le.s32.totalorder 1, %s9
      %p180 = scmp.lt.s32.totalorder %s9, 3
      %p181 = pnand %p179, %p180
      %p182 = pneg %p181
      // Predicated region
      $region29: #{ircnn_forward.9} parent=5 // pred_check
        _
      $region30: #{ircnn_forward.9} parent=5 // pred_check_branch
        %184 = sbr.rel (%p181) target = $region32
      $region31: #{ircnn_forward.9} parent=5 // pred_region
        %s185 = ssub.s32 %s9, 1
        %s186 = smul.u32 10, %s18
        %s187 = ssub.s32 19, %s186
        %p188 = scmp.lt.s32.totalorder %s187, 10
        %s189 = scalar_select %p188, %s187, 10
        %s190 = smul.u32 64, %s189
        %s191 = smul.u32 %s190, 2
        %p192 = scmp.lt.s32.totalorder %s186, 18
        %s193 = scalar_select %p192, %s186, 18
        %s194 = smul.addr %s193, 2
        %s195 = smul.addr %s194, 4
        %s196 = scalar_lea.vmem %s0, %s195
        %p197 = pneg %p47
        %p198 = pneg %p44
        %p199 = scmp.lt.s32.totalorder %s19, 0
        %s200 = scalar_select %p199, %s19, 0
        %s201 = smul.addr %s200, 4
        %s202 = scalar_lea.vmem %s1, %s201
        %p203 = pneg %p73
        %p204 = pneg %p70
        %p205 = scmp.lt.s32.totalorder %s19, 0
        %s206 = scalar_select %p205, %s19, 0
        %s207 = scalar_lea.vmem %s2, %s206
        %p208 = pneg %p99
        %p209 = pneg %p96
        %p210 = pneg %p127
        %p211 = pneg %p124
        %s212 = sand.u32 %s114, 1
        %s213 = sand.u32 %s114, 1
        %s214 = smul.addr %s213, 40
        %s215 = scalar_lea.vmem [#allocation2], %s214
        %s216 = smul.u32 10, %s18
        %s217 = ssub.s32 19, %s216
        %p218 = scmp.lt.s32.totalorder %s217, 10
        %s219 = scalar_select %p218, %s217, 10
        %s220 = smul.u32 64, %s219
        %s221 = smul.u32 %s220, 2
        %p222 = scmp.lt.s32.totalorder %s216, 18
        %s223 = scalar_select %p222, %s216, 18
        %s224 = smul.addr %s223, 2
        %s225 = smul.addr %s224, 4
        %s226 = scalar_lea.vmem %s0, %s225
        %s227 = smul.u32 10, %s18
        %s228 = ssub.s32 19, %s227
        %p229 = scmp.lt.s32.totalorder %s228, 10
        %s230 = scalar_select %p229, %s228, 10
        %s231 = smul.u32 64, %s230
        %s232 = smul.u32 %s231, 2
        %p233 = scmp.lt.s32.totalorder %s19, 0
        %s234 = scalar_select %p233, %s19, 0
        %s235 = smul.addr %s234, 4
        %s236 = scalar_lea.vmem %s1, %s235
        %p237 = scmp.lt.s32.totalorder %s19, 0
        %s238 = scalar_select %p237, %s19, 0
        %s239 = scalar_lea.vmem %s2, %s238
        %s240 = smul.u32 10, %s18
        %s241 = ssub.s32 19, %s240
        %p242 = scmp.lt.s32.totalorder %s241, 10
        %s243 = scalar_select %p242, %s241, 10
        %s244 = smul.u32 64, %s243
        %v246 = vld [vmem:[%s226] sm:$0xff]
        %v247 = vld [vmem:[%s226 + $0x8] sm:$0xff]
        %v248 = vld [vmem:[%s226 + $0x10] sm:$0xff]
        %v249 = vld [vmem:[%s226 + $0x18] sm:$0xff]
        %v250 = vld [vmem:[%s226 + $0x20] sm:$0xff]
        %v251 = vld [vmem:[%s226 + $0x28] sm:$0xff]
        %v252 = vld [vmem:[%s226 + $0x30] sm:$0xff]
        %v253 = vld [vmem:[%s226 + $0x38] sm:$0xff]
        %v254 = vld [vmem:[%s226 + $0x40] sm:$0xff]
        %v255 = vld [vmem:[%s226 + $0x48] sm:$0xff]
        %v256 = vld [vmem:[%s236] sm:$0xf]
        %v257 = vld [vmem:[%s236 + $0x4] sm:$0xf]
        %v258 = vld [vmem:[%s236 + $0x8] sm:$0xf]
        %v259 = vld [vmem:[%s236 + $0xc] sm:$0xf]
        %v260 = vld [vmem:[%s236 + $0x10] sm:$0xf]
        %v261 = vld [vmem:[%s236 + $0x14] sm:$0xf]
        %v262 = vld [vmem:[%s236 + $0x18] sm:$0xf]
        %v263 = vld [vmem:[%s236 + $0x1c] sm:$0xf]
        %v264 = vld [vmem:[%s236 + $0x20] sm:$0xf]
        %v265 = vld [vmem:[%s236 + $0x24] sm:$0xf]
        %v266 = vld [vmem:[%s236 + $0x28] sm:$0xf]
        %v267 = vld [vmem:[%s236 + $0x2c] sm:$0xf]
        %v268 = vld [vmem:[%s236 + $0x30] sm:$0xf]
        %v269 = vld [vmem:[%s236 + $0x34] sm:$0xf]
        %v270 = vld [vmem:[%s236 + $0x38] sm:$0xf]
        %v271 = vld [vmem:[%s236 + $0x3c] sm:$0xf]
        %v272 = vld [vmem:[%s236 + $0x40] sm:$0xf]
        %v273 = vld [vmem:[%s236 + $0x44] sm:$0xf]
        %v274 = vld [vmem:[%s239] sm:$0x1]
        %v276 = vlaneseq
        %v277 = vshrl.u32 %v276, 7
        %v278 = vsub.s32 0, %v277
        %v279 = vrot.slane %v274, %v278
        %v291 = vunpack.c.l.b16 %v246
        %v292 = vunpack.c.h.b16 %v246
        %v293 = vunpack.c.l.b16 %v247
        %v294 = vunpack.c.h.b16 %v247
        %v295 = vunpack.c.l.b16 %v248
        %v296 = vunpack.c.h.b16 %v248
        %v297 = vunpack.c.l.b16 %v249
        %v298 = vunpack.c.h.b16 %v249
        %v299 = vunpack.c.l.b16 %v250
        %v300 = vunpack.c.h.b16 %v250
        %v301 = vunpack.c.l.b16 %v251
        %v302 = vunpack.c.h.b16 %v251
        %v303 = vunpack.c.l.b16 %v252
        %v304 = vunpack.c.h.b16 %v252
        %v305 = vunpack.c.l.b16 %v253
        %v306 = vunpack.c.h.b16 %v253
        %v307 = vunpack.c.l.b16 %v254
        %v308 = vunpack.c.h.b16 %v254
        %v309 = vunpack.c.l.b16 %v255
        %v310 = vunpack.c.h.b16 %v255
        %v311 = vpack.c.b16 %v293, %v291
        %v312 = vpack.c.b16 %v294, %v292
        %v313 = vpack.c.b16 %v297, %v295
        %v314 = vpack.c.b16 %v298, %v296
        %v315 = vpack.c.b16 %v301, %v299
        %v316 = vpack.c.b16 %v302, %v300
        %v317 = vpack.c.b16 %v305, %v303
        %v318 = vpack.c.b16 %v306, %v304
        %v319 = vpack.c.b16 %v309, %v307
        %v320 = vpack.c.b16 %v310, %v308
        %v344 = vunpack.c.l.b16 %v256
        %v345 = vunpack.c.l.b16 %v257
        %v346 = vunpack.c.l.b16 %v258
        %v347 = vunpack.c.l.b16 %v259
        %v348 = vunpack.c.l.b16 %v260
        %v349 = vunpack.c.l.b16 %v261
        %v350 = vunpack.c.l.b16 %v262
        %v351 = vunpack.c.l.b16 %v263
        %v352 = vunpack.c.l.b16 %v264
        %v353 = vunpack.c.l.b16 %v265
        %v354 = vunpack.c.l.b16 %v266
        %v355 = vunpack.c.l.b16 %v267
        %v356 = vunpack.c.l.b16 %v268
        %v357 = vunpack.c.l.b16 %v269
        %v358 = vunpack.c.l.b16 %v270
        %v359 = vunpack.c.l.b16 %v271
        %v360 = vunpack.c.l.b16 %v272
        %v361 = vunpack.c.l.b16 %v273
        %v362 = vpack.c.b16 %v345, %v344
        %v363 = vpack.c.b16 %v347, %v346
        %v364 = vpack.c.b16 %v349, %v348
        %v365 = vpack.c.b16 %v351, %v350
        %v366 = vpack.c.b16 %v353, %v352
        %v367 = vpack.c.b16 %v355, %v354
        %v368 = vpack.c.b16 %v357, %v356
        %v369 = vpack.c.b16 %v359, %v358
        %v370 = vpack.c.b16 %v361, %v360
        %vm380 = vcmask 130048
        %v382 = vsel %vm380, %v312, 0
        %v385 = vsel %vm380, %v314, 0
        %v388 = vsel %vm380, %v316, 0
        %v391 = vsel %vm380, %v318, 0
        %v394 = vsel %vm380, %v320, 0
        %396 = vmatprep.subr.bf16.mxu0 0
        %397 = vmatpush1.bf16.msra.mxu0 %v369
        %398 = vmatprep.subr.bf16.mxu0 0
        %399 = vmatpush1.bf16.msra.mxu0 %v368
        %400 = vmatprep.subr.bf16.mxu0 0
        %401 = vmatpush1.bf16.msra.mxu0 %v367
        %402 = vmatprep.subr.bf16.mxu0 0
        %403 = vmatpush1.bf16.msra.mxu0 %v366
        %404 = vmatprep.subr.bf16.mxu0 0
        %405 = vmatpush1.bf16.msra.mxu0 %v365
        %406 = vmatprep.subr.bf16.mxu0 0
        %407 = vmatpush1.bf16.msra.mxu0 %v364
        %408 = vmatprep.subr.bf16.mxu0 0
        %409 = vmatpush1.bf16.msra.mxu0 %v363
        %410 = vmatprep.subr.bf16.mxu0 0
        %411 = vmatpush1.bf16.msra.mxu0 %v362
        %412 = vmatprep.subr.bf16.mxu0 0
        %413 = vmatpush2.bf16.msra.mxu0 0
        %414 = vmatprep.subr.bf16.mxu0 0
        %415 = vmatpush2.bf16.msra.mxu0 0
        %416 = vmatprep.subr.bf16.mxu0 0
        %417 = vmatpush2.bf16.msra.mxu0 0
        %418 = vmatprep.subr.bf16.mxu0 0
        %419 = vmatpush2.bf16.msra.mxu0 0
        %420 = vmatprep.subr.bf16.mxu0 0
        %421 = vmatpush2.bf16.msra.mxu0 0
        %422 = vmatprep.subr.bf16.mxu0 0
        %423 = vmatpush2.bf16.msra.mxu0 0
        %424 = vmatprep.subr.bf16.mxu0 0
        %425 = vmatpush2.bf16.msra.mxu0 0
        %426 = vmatprep.subr.bf16.mxu0 0
        %427 = vmatpush2.bf16.msra.mxu0 %v370
        %428 = vmatprep.mubr.bf16.mxu0 %v382
        %429 = vmatmul.mubr.bf16.gmra.mxu0 %v311
        %v430 = vpop.f32.mrf.mxu0
        %v431 = vadd.f32 %v279, %v430
        %v432 = vpop.f32.mrf.mxu0
        %v433 = vpop.f32.mrf.mxu0
        %v434 = vadd.f32 %v279, %v433
        %v435 = vpop.f32.mrf.mxu0
        %436 = vmatprep.mubr.bf16.mxu0 %v385
        %437 = vmatmul.mubr.bf16.gmra.mxu0 %v313
        %v438 = vpop.f32.mrf.mxu0
        %v439 = vadd.f32 %v279, %v438
        %v440 = vpop.f32.mrf.mxu0
        %v441 = vpop.f32.mrf.mxu0
        %v442 = vadd.f32 %v279, %v441
        %v443 = vpop.f32.mrf.mxu0
        %444 = vmatprep.mubr.bf16.mxu0 %v388
        %445 = vmatmul.mubr.bf16.gmra.mxu0 %v315
        %v446 = vpop.f32.mrf.mxu0
        %v447 = vadd.f32 %v279, %v446
        %v448 = vpop.f32.mrf.mxu0
        %v449 = vpop.f32.mrf.mxu0
        %v450 = vadd.f32 %v279, %v449
        %v451 = vpop.f32.mrf.mxu0
        %452 = vmatprep.mubr.bf16.mxu0 %v391
        %453 = vmatmul.mubr.bf16.gmra.mxu0 %v317
        %v454 = vpop.f32.mrf.mxu0
        %v455 = vadd.f32 %v279, %v454
        %v456 = vpop.f32.mrf.mxu0
        %v457 = vpop.f32.mrf.mxu0
        %v458 = vadd.f32 %v279, %v457
        %v459 = vpop.f32.mrf.mxu0
        %460 = vmatprep.mubr.bf16.mxu0 %v394
        %461 = vmatmul.mubr.bf16.gmra.mxu0 %v319
        %v462 = vpop.f32.mrf.mxu0
        %v463 = vadd.f32 %v279, %v462
        %v464 = vpop.f32.mrf.mxu0
        %v465 = vpop.f32.mrf.mxu0
        %v466 = vadd.f32 %v279, %v465
        %v467 = vpop.f32.mrf.mxu0
        %468 = vdwg.mxu0
        %v469 = vmax.f32 %v431, 0.0
        %v470 = vmax.f32 %v434, 0.0
        %v471 = vmax.f32 %v439, 0.0
        %v472 = vmax.f32 %v442, 0.0
        %v473 = vmax.f32 %v447, 0.0
        %v474 = vmax.f32 %v450, 0.0
        %v475 = vmax.f32 %v455, 0.0
        %v476 = vmax.f32 %v458, 0.0
        %v477 = vmax.f32 %v463, 0.0
        %v478 = vmax.f32 %v466, 0.0
        %v479 = vpack.c.bf16 %v470, %v469
        %v480 = vpack.c.bf16 %v472, %v471
        %v481 = vpack.c.bf16 %v474, %v473
        %v482 = vpack.c.bf16 %v476, %v475
        %v483 = vpack.c.bf16 %v478, %v477
        %v489 = vunpack.c.l.b16 %v479
        %v490 = vunpack.c.h.b16 %v479
        %v491 = vunpack.c.l.b16 %v480
        %v492 = vunpack.c.h.b16 %v480
        %v493 = vunpack.c.l.b16 %v481
        %v494 = vunpack.c.h.b16 %v481
        %v495 = vunpack.c.l.b16 %v482
        %v496 = vunpack.c.h.b16 %v482
        %v497 = vunpack.c.l.b16 %v483
        %v498 = vunpack.c.h.b16 %v483
        %v499 = vpack.c.b16 %v489, %v489
        %v500 = vpack.c.b16 %v490, %v490
        %v501 = vpack.c.b16 %v491, %v491
        %v502 = vpack.c.b16 %v492, %v492
        %v503 = vpack.c.b16 %v493, %v493
        %v504 = vpack.c.b16 %v494, %v494
        %v505 = vpack.c.b16 %v495, %v495
        %v506 = vpack.c.b16 %v496, %v496
        %v507 = vpack.c.b16 %v497, %v497
        %v508 = vpack.c.b16 %v498, %v498
        %vm519 = vcmask 257024
        %520 = vst.msk [vmem:[%s215] sm:$0xf] %vm519, %v499
        %521 = vst.msk [vmem:[%s215 + $0x4] sm:$0xf] %vm519, %v500
        %522 = vst.msk [vmem:[%s215 + $0x8] sm:$0xf] %vm519, %v501
        %523 = vst.msk [vmem:[%s215 + $0xc] sm:$0xf] %vm519, %v502
        %524 = vst.msk [vmem:[%s215 + $0x10] sm:$0xf] %vm519, %v503
        %525 = vst.msk [vmem:[%s215 + $0x14] sm:$0xf] %vm519, %v504
        %526 = vst.msk [vmem:[%s215 + $0x18] sm:$0xf] %vm519, %v505
        %527 = vst.msk [vmem:[%s215 + $0x1c] sm:$0xf] %vm519, %v506
        %528 = vst.msk [vmem:[%s215 + $0x20] sm:$0xf] %vm519, %v507
        %529 = vst.msk [vmem:[%s215 + $0x24] sm:$0xf] %vm519, %v508
        %s530 = sand.u32 %s114, 1
        %s531 = sand.u32 %s114, 1
        %s532 = smul.addr %s531, 40
        %s533 = scalar_lea.vmem [#allocation2], %s532
        // Predicated region
        $region33: #{ircnn_forward.9} parent=31 // pred_check
          %p534 = pneg %p124
        $region34: #{ircnn_forward.9} parent=31 // pred_check_branch
          %536 = sbr.rel (%p534) target = $region36
        $region35: #{ircnn_forward.9} parent=31 // pred_region
          %s537 = smul.u32 10, %s18
          %s538 = ssub.s32 19, %s537
          %p539 = scmp.lt.s32.totalorder %s538, 10
          %s540 = scalar_select %p539, %s538, 10
          %s541 = smul.u32 64, %s540
          %p542 = scmp.ne.s32.totalorder 0, %s541
          %s543 = sadd.s32 %s19, %s537
          %s544 = smul.addr %s543, 4
          %s545 = scalar_lea.vmem %s3, %s544
          // Predicated region
          $region37: #{ircnn_forward.9} parent=35 // pred_check
            %p546 = pneg %p542
          $region38: #{ircnn_forward.9} parent=35 // pred_check_branch
            %548 = sbr.rel (%p546) target = $region40
          $region39: #{ircnn_forward.9} parent=35 // pred_region
            // Predicated region
            $region41: #{ircnn_forward.9} parent=39 // pred_check
              _
            $region42: #{ircnn_forward.9} parent=39 // pred_check_branch
              %550 = sbr.rel target = $region44
            $region43: #{ircnn_forward.9} parent=39 // pred_region
              // Predicated region
              $region63: #{ircnn_forward.9} parent=43 // pred_check
                _
              $region64: #{ircnn_forward.9} parent=43 // pred_check_branch
                %619 = sbr.rel (0) target = $region66
              $region65: #{ircnn_forward.9} parent=43 // pred_region
                %s621 = ssub.s32 16, 1
                %s622 = sdiv.u32.pop %s540, 10
                %s623 = srem.u32.pop %s540, 10
                // While loop
                $region67: #{ircnn_forward.9} parent=65 // loop_pre_header
                  _
                $region68: #{ircnn_forward.9} parent=65 // loop_header
                  %s625 = sphi 0, %s627
                  %p626 = scmp.ge.s32.totalorder %s625, %s622
                  %s630 = sphi 0, %s655
                  %s631 = sphi %s533, %s658
                  %s632 = sphi %s545, %s659
                $region69: #{ircnn_forward.9} parent=65 // loop_header_branch
                  %629 = sbr.rel (%p626) target = $region73
                $region70: #{ircnn_forward.9} parent=65 // loop_body
                  %v633 = vld [vmem:[%s631] sm:%s621]
                  %634 = vst [vmem:[%s632] sm:%s621] %v633
                  %v635 = vld [vmem:[%s631 + $0x4] sm:%s621]
                  %636 = vst [vmem:[%s632 + $0x4] sm:%s621] %v635
                  %v637 = vld [vmem:[%s631 + $0x8] sm:%s621]
                  %638 = vst [vmem:[%s632 + $0x8] sm:%s621] %v637
                  %v639 = vld [vmem:[%s631 + $0xc] sm:%s621]
                  %640 = vst [vmem:[%s632 + $0xc] sm:%s621] %v639
                  %v641 = vld [vmem:[%s631 + $0x10] sm:%s621]
                  %642 = vst [vmem:[%s632 + $0x10] sm:%s621] %v641
                  %v643 = vld [vmem:[%s631 + $0x14] sm:%s621]
                  %644 = vst [vmem:[%s632 + $0x14] sm:%s621] %v643
                  %v645 = vld [vmem:[%s631 + $0x18] sm:%s621]
                  %646 = vst [vmem:[%s632 + $0x18] sm:%s621] %v645
                  %v647 = vld [vmem:[%s631 + $0x1c] sm:%s621]
                  %648 = vst [vmem:[%s632 + $0x1c] sm:%s621] %v647
                  %v649 = vld [vmem:[%s631 + $0x20] sm:%s621]
                  %650 = vst [vmem:[%s632 + $0x20] sm:%s621] %v649
                  %v651 = vld [vmem:[%s631 + $0x24] sm:%s621]
                  %652 = vst [vmem:[%s632 + $0x24] sm:%s621] %v651
                  %s653 = sadd.s32 1, %s630
                  %p654 = scmp.ge.s32.totalorder %s653, %s622
                  %s655 = scalar_select %p654, 0, %s653
                  %s656 = smul.u32 %s655, 40
                  %s657 = smul.u32 %s655, 40
                  %s658 = scalar_lea.vmem %s533, %s656 [#allocation2]
                  %s659 = scalar_lea.vmem %s545, %s657
                $region71: #{ircnn_forward.9} parent=65 // loop_footer
                  %s627 = sadd.s32 %s625, 1
                $region72: #{ircnn_forward.9} parent=65 // loop_footer_branch
                  %624 = sbr.rel target = $region68
                $region73: #{ircnn_forward.9} parent=65 // loop_exit
                  _
                %s660 = sdiv.u32.pop %s540, 10
                %s661 = srem.u32.pop %s540, 10
                %s662 = smul.u32 %s660, 10
                %s663 = smul.u32 4, %s662
                %s664 = scalar_lea.vmem %s533, %s663 [#allocation2]
                %s665 = smul.u32 4, %s662
                %s666 = scalar_lea.vmem %s545, %s665
                // While loop
                $region74: #{ircnn_forward.9} parent=65 // loop_pre_header
                  _
                $region75: #{ircnn_forward.9} parent=65 // loop_header
                  %s668 = sphi 0, %s670
                  %p669 = scmp.ge.s32.totalorder %s668, %s661
                  %s673 = sphi 0, %s680
                  %s674 = sphi %s664, %s683
                  %s675 = sphi %s666, %s684
                $region76: #{ircnn_forward.9} parent=65 // loop_header_branch
                  %672 = sbr.rel (%p669) target = $region80
                $region77: #{ircnn_forward.9} parent=65 // loop_body
                  %v676 = vld [vmem:[%s674] sm:%s621]
                  %677 = vst [vmem:[%s675] sm:%s621] %v676
                  %s678 = sadd.s32 1, %s673
                  %p679 = scmp.ge.s32.totalorder %s678, %s661
                  %s680 = scalar_select %p679, 0, %s678
                  %s681 = smul.u32 %s680, 4
                  %s682 = smul.u32 %s680, 4
                  %s683 = scalar_lea.vmem %s664, %s681 [#allocation2]
                  %s684 = scalar_lea.vmem %s666, %s682
                $region78: #{ircnn_forward.9} parent=65 // loop_footer
                  %s670 = sadd.s32 %s668, 1
                $region79: #{ircnn_forward.9} parent=65 // loop_footer_branch
                  %667 = sbr.rel target = $region75
                $region80: #{ircnn_forward.9} parent=65 // loop_exit
                  _
              $region66: #{ircnn_forward.9} parent=43 // pred_fallthru
                _
            $region44: #{ircnn_forward.9} parent=39 // pred_fallthru
              _
            // Predicated region
            $region45: #{ircnn_forward.9} parent=39 // pred_check
              _
            $region46: #{ircnn_forward.9} parent=39 // pred_check_branch
              %552 = sbr.rel (0) target = $region48
            $region47: #{ircnn_forward.9} parent=39 // pred_region
              %s554 = ssub.s32 16, 1
              %s555 = sdiv.u32.pop %s540, 10
              %s556 = srem.u32.pop %s540, 10
              // While loop
              $region49: #{ircnn_forward.9} parent=47 // loop_pre_header
                _
              $region50: #{ircnn_forward.9} parent=47 // loop_header
                %s558 = sphi 0, %s560
                %p559 = scmp.ge.s32.totalorder %s558, %s555
                %s563 = sphi 0, %s588
                %s564 = sphi %s533, %s591
                %s565 = sphi %s545, %s592
              $region51: #{ircnn_forward.9} parent=47 // loop_header_branch
                %562 = sbr.rel (%p559) target = $region55
              $region52: #{ircnn_forward.9} parent=47 // loop_body
                %v566 = vld [vmem:[%s564] sm:%s554]
                %567 = vst [vmem:[%s565] sm:%s554] %v566
                %v568 = vld [vmem:[%s564 + $0x4] sm:%s554]
                %569 = vst [vmem:[%s565 + $0x4] sm:%s554] %v568
                %v570 = vld [vmem:[%s564 + $0x8] sm:%s554]
                %571 = vst [vmem:[%s565 + $0x8] sm:%s554] %v570
                %v572 = vld [vmem:[%s564 + $0xc] sm:%s554]
                %573 = vst [vmem:[%s565 + $0xc] sm:%s554] %v572
                %v574 = vld [vmem:[%s564 + $0x10] sm:%s554]
                %575 = vst [vmem:[%s565 + $0x10] sm:%s554] %v574
                %v576 = vld [vmem:[%s564 + $0x14] sm:%s554]
                %577 = vst [vmem:[%s565 + $0x14] sm:%s554] %v576
                %v578 = vld [vmem:[%s564 + $0x18] sm:%s554]
                %579 = vst [vmem:[%s565 + $0x18] sm:%s554] %v578
                %v580 = vld [vmem:[%s564 + $0x1c] sm:%s554]
                %581 = vst [vmem:[%s565 + $0x1c] sm:%s554] %v580
                %v582 = vld [vmem:[%s564 + $0x20] sm:%s554]
                %583 = vst [vmem:[%s565 + $0x20] sm:%s554] %v582
                %v584 = vld [vmem:[%s564 + $0x24] sm:%s554]
                %585 = vst [vmem:[%s565 + $0x24] sm:%s554] %v584
                %s586 = sadd.s32 1, %s563
                %p587 = scmp.ge.s32.totalorder %s586, %s555
                %s588 = scalar_select %p587, 0, %s586
                %s589 = smul.u32 %s588, 40
                %s590 = smul.u32 %s588, 40
                %s591 = scalar_lea.vmem %s533, %s589 [#allocation2]
                %s592 = scalar_lea.vmem %s545, %s590
              $region53: #{ircnn_forward.9} parent=47 // loop_footer
                %s560 = sadd.s32 %s558, 1
              $region54: #{ircnn_forward.9} parent=47 // loop_footer_branch
                %557 = sbr.rel target = $region50
              $region55: #{ircnn_forward.9} parent=47 // loop_exit
                _
              %s593 = sdiv.u32.pop %s540, 10
              %s594 = srem.u32.pop %s540, 10
              %s595 = smul.u32 %s593, 10
              %s596 = smul.u32 4, %s595
              %s597 = scalar_lea.vmem %s533, %s596 [#allocation2]
              %s598 = smul.u32 4, %s595
              %s599 = scalar_lea.vmem %s545, %s598
              // While loop
              $region56: #{ircnn_forward.9} parent=47 // loop_pre_header
                _
              $region57: #{ircnn_forward.9} parent=47 // loop_header
                %s601 = sphi 0, %s603
                %p602 = scmp.ge.s32.totalorder %s601, %s594
                %s606 = sphi 0, %s613
                %s607 = sphi %s597, %s616
                %s608 = sphi %s599, %s617
              $region58: #{ircnn_forward.9} parent=47 // loop_header_branch
                %605 = sbr.rel (%p602) target = $region62
              $region59: #{ircnn_forward.9} parent=47 // loop_body
                %v609 = vld [vmem:[%s607] sm:%s554]
                %610 = vst [vmem:[%s608] sm:%s554] %v609
                %s611 = sadd.s32 1, %s606
                %p612 = scmp.ge.s32.totalorder %s611, %s594
                %s613 = scalar_select %p612, 0, %s611
                %s614 = smul.u32 %s613, 4
                %s615 = smul.u32 %s613, 4
                %s616 = scalar_lea.vmem %s597, %s614 [#allocation2]
                %s617 = scalar_lea.vmem %s599, %s615
              $region60: #{ircnn_forward.9} parent=47 // loop_footer
                %s603 = sadd.s32 %s601, 1
              $region61: #{ircnn_forward.9} parent=47 // loop_footer_branch
                %600 = sbr.rel target = $region57
              $region62: #{ircnn_forward.9} parent=47 // loop_exit
                _
            $region48: #{ircnn_forward.9} parent=39 // pred_fallthru
              _
          $region40: #{ircnn_forward.9} parent=35 // pred_fallthru
            _
          %685 = vnop
        $region36: #{ircnn_forward.9} parent=31 // pred_fallthru
          _
      $region32: #{ircnn_forward.9} parent=5 // pred_fallthru
        _
      %p686 = scmp.le.s32.totalorder 2, %s9
      // Predicated region
      $region81: #{ircnn_forward.9} parent=5 // pred_check
        %p687 = pneg %p686
      $region82: #{ircnn_forward.9} parent=5 // pred_check_branch
        %689 = sbr.rel (%p687) target = $region84
      $region83: #{ircnn_forward.9} parent=5 // pred_region
        %s690 = ssub.s32 %s9, 2
        // Predicated region
        $region85: #{ircnn_forward.9} parent=83 // pred_check
          %p691 = pneg %p130
        $region86: #{ircnn_forward.9} parent=83 // pred_check_branch
          %693 = sbr.rel (%p691) target = $region88
        $region87: #{ircnn_forward.9} parent=83 // pred_region
          %s694 = sand.u32 %s115, 1
          %s695 = sand.u32 %s115, 1
          %s696 = smul.addr %s695, 40
          %s697 = scalar_lea.vmem [#allocation2], %s696
        $region88: #{ircnn_forward.9} parent=83 // pred_fallthru
          _
      $region84: #{ircnn_forward.9} parent=5 // pred_fallthru
        _
    $region6: #{ircnn_forward.9} parent=1 // loop_footer
      %s13 = sadd.s32 1, %s9
    $region7: #{ircnn_forward.9} parent=1 // loop_footer_branch
      %8 = sbr.rel target = $region3
    $region8: #{ircnn_forward.9} parent=1 // loop_exit
      _

// kernel: ircnn_forward.10
$region0: #{ircnn_forward.10}
  #allocation0 [shape = 'u32[]', space=smem, size = 0x4, offset = 0x4, fixed_abs, tag = 'smem constant byte address 0x4 - core index']
  #allocation1 [shape = 'u32[144,128]{1,0:T(1,128)}', space=vmem, size = 0x12000, scoped, tag = 'internal scratch']
  %s0 = inlined_call_operand.vmem [shape: bf16[150,288], index: 0, kind: input, shape index: {}]
  %s1 = inlined_call_operand.vmem [shape: bf16[288,32], index: 1, kind: input, shape index: {}]
  %s2 = inlined_call_operand.vmem [shape: f32[1,32], index: 2, kind: input, shape index: {}]
  %s3 = inlined_call_operand.vmem [shape: bf16[150,32], index: 3, kind: output, shape index: {}]
  %s4 = sld [smem:[#allocation0]]
  $region89: #{ircnn_forward.10} parent=0
    _
  %s6 = ssub.s32 1, %s4
  %s7 = scalar_select 0, %s6, %s4
  $region1: #{ircnn_forward.10} parent=0
    #allocation2 [shape = 'u8[40960]{0}', space=vmem, size = 0xa000, scoped, tag = 'output window, operand 0']
    loop: start=0, step=1, limit=4
    $region2: #{ircnn_forward.10} parent=1 // loop_pre_header
      _
    $region3: #{ircnn_forward.10} parent=1 // loop_header
      %s9 = sphi 0, %s13
      %p10 = scmp.ge.s32.totalorder %s9, 4
      %s16 = sphi 0, %s28
      %s17 = sphi 0, %s24
      %s18 = sphi 0, %s16
      %s19 = sphi 0, %s17
      %s20 = sphi 0, %s18
      %s21 = sphi 0, %s19
      %s31 = sphi 0, %s33
      %s34 = sphi 0, %s31
      %s35 = sphi 0, %s34
      %s51 = sphi 0, %s35
      %s57 = sphi 0, %s59
      %s60 = sphi 0, %s57
      %s61 = sphi 0, %s60
      %s77 = sphi 0, %s61
      %s83 = sphi 0, %s85
      %s86 = sphi 0, %s83
      %s87 = sphi 0, %s86
      %s103 = sphi 0, %s87
      %s111 = sphi 0, %s113
      %s114 = sphi 0, %s111
      %s115 = sphi 0, %s114
      %s131 = sphi 0, %s115
    $region4: #{ircnn_forward.10} parent=1 // loop_header_branch
      %12 = sbr.rel (%p10) target = $region8
    $region5: #{ircnn_forward.10} parent=1 // loop_body
      %s14 = ssub.s32 %s9, 1
      %s15 = ssub.s32 %s9, 2
      %s22 = sadd.s32 1, %s17
      %p23 = scmp.ge.s32.totalorder %s22, 1
      %s24 = scalar_select %p23, 0, %s22
      %s25 = sadd.s32 1, %s16
      %s26 = scalar_select %p23, %s25, %s16
      %p27 = scmp.ge.s32.totalorder %s26, 2
      %s28 = scalar_select %p27, 0, %s26
      %s29 = ssub.s32 %s16, %s28
      %p30 = scmp.eq.s32.totalorder %s29, 0
      %s32 = sadd.s32 %s31, 1
      %s33 = scalar_select %p30, %s31, %s32
      %p36 = pneg %p30
      %p37 = scmp.eq.s32.totalorder %s9, 1
      %p38 = por %p36, %p37
      %p39 = scmp.ne.s32.totalorder %s31, %s34
      %p40 = scmp.eq.s32.totalorder %s9, 0
      %p41 = por %p39, %p40
      %p42 = scmp.ne.s32.totalorder %s31, %s34
      %p43 = scmp.eq.s32.totalorder %s14, 1
      %p44 = por %p42, %p43
      %p45 = scmp.ne.s32.totalorder %s34, %s35
      %p46 = scmp.eq.s32.totalorder %s14, 0
      %p47 = por %p45, %p46
      %p48 = scmp.ne.s32.totalorder %s34, %s35
      %p49 = scmp.eq.s32.totalorder %s15, 1
      %p50 = por %p48, %p49
      %p52 = scmp.ne.s32.totalorder %s35, %s51
      %p53 = scmp.eq.s32.totalorder %s15, 0
      %p54 = por %p52, %p53
      %s55 = ssub.s32 %s17, %s24
      %p56 = scmp.eq.s32.totalorder %s55, 0
      %s58 = sadd.s32 %s57, 1
      %s59 = scalar_select %p56, %s57, %s58
      %p62 = pneg %p56
      %p63 = scmp.eq.s32.totalorder %s9, 1
      %p64 = por %p62, %p63
      %p65 = scmp.ne.s32.totalorder %s57, %s60
      %p66 = scmp.eq.s32.totalorder %s9, 0
      %p67 = por %p65, %p66
      %p68 = scmp.ne.s32.totalorder %s57, %s60
      %p69 = scmp.eq.s32.totalorder %s14, 1
      %p70 = por %p68, %p69
      %p71 = scmp.ne.s32.totalorder %s60, %s61
      %p72 = scmp.eq.s32.totalorder %s14, 0
      %p73 = por %p71, %p72
      %p74 = scmp.ne.s32.totalorder %s60, %s61
      %p75 = scmp.eq.s32.totalorder %s15, 1
      %p76 = por %p74, %p75
      %p78 = scmp.ne.s32.totalorder %s61, %s77
      %p79 = scmp.eq.s32.totalorder %s15, 0
      %p80 = por %p78, %p79
      %s81 = ssub.s32 %s17, %s24
      %p82 = scmp.eq.s32.totalorder %s81, 0
      %s84 = sadd.s32 %s83, 1
      %s85 = scalar_select %p82, %s83, %s84
      %p88 = pneg %p82
      %p89 = scmp.eq.s32.totalorder %s9, 1
      %p90 = por %p88, %p89
      %p91 = scmp.ne.s32.totalorder %s83, %s86
      %p92 = scmp.eq.s32.totalorder %s9, 0
      %p93 = por %p91, %p92
      %p94 = scmp.ne.s32.totalorder %s83, %s86
      %p95 = scmp.eq.s32.totalorder %s14, 1
      %p96 = por %p94, %p95
      %p97 = scmp.ne.s32.totalorder %s86, %s87
      %p98 = scmp.eq.s32.totalorder %s14, 0
      %p99 = por %p97, %p98
      %p100 = scmp.ne.s32.totalorder %s86, %s87
      %p101 = scmp.eq.s32.totalorder %s15, 1
      %p102 = por %p100, %p101
      %p104 = scmp.ne.s32.totalorder %s87, %s103
      %p105 = scmp.eq.s32.totalorder %s15, 0
      %p106 = por %p104, %p105
      %s107 = ssub.s32 %s16, %s28
      %s108 = ssub.s32 %s17, %s24
      %s109 = sor.u32 %s107, %s108
      %p110 = scmp.eq.s32.totalorder %s109, 0
      %s112 = sadd.s32 %s111, 1
      %s113 = scalar_select %p110, %s111, %s112
      %p116 = pneg %p110
      %p117 = scmp.eq.s32.totalorder %s9, 1
      %p118 = por %p116, %p117
      %p119 = scmp.ne.s32.totalorder %s111, %s114
      %p120 = scmp.eq.s32.totalorder %s9, 0
      %p121 = por %p119, %p120
      %p122 = scmp.ne.s32.totalorder %s111, %s114
      %p123 = scmp.eq.s32.totalorder %s14, 1
      %p124 = por %p122, %p123
      %p125 = scmp.ne.s32.totalorder %s114, %s115
      %p126 = scmp.eq.s32.totalorder %s14, 0
      %p127 = por %p125, %p126
      %p128 = scmp.ne.s32.totalorder %s114, %s115
      %p129 = scmp.eq.s32.totalorder %s15, 1
      %p130 = por %p128, %p129
      %p132 = scmp.ne.s32.totalorder %s115, %s131
      %p133 = scmp.eq.s32.totalorder %s15, 0
      %p134 = por %p132, %p133
      %p135 = scmp.le.s32.totalorder 1, %s9
      %p136 = scmp.lt.s32.totalorder %s9, 3
      %p137 = pnand %p135, %p136
      %p138 = pneg %p137
      // Predicated region
      $region9: #{ircnn_forward.10} parent=5 // pred_check
        _
      $region10: #{ircnn_forward.10} parent=5 // pred_check_branch
        %140 = sbr.rel (%p137) target = $region12
      $region11: #{ircnn_forward.10} parent=5 // pred_region
        %s141 = ssub.s32 %s9, 1
        // Predicated region
        $region13: #{ircnn_forward.10} parent=11 // pred_check
          %p142 = pneg %p73
        $region14: #{ircnn_forward.10} parent=11 // pred_check_branch
          %144 = sbr.rel (%p142) target = $region16
        $region15: #{ircnn_forward.10} parent=11 // pred_region
          %p145 = scmp.lt.s32.totalorder %s19, 0
          %s146 = scalar_select %p145, %s19, 0
          %s147 = smul.addr %s146, 4
          %s148 = scalar_lea.vmem %s1, %s147
        $region16: #{ircnn_forward.10} parent=11 // pred_fallthru
          _
        // Predicated region
        $region17: #{ircnn_forward.10} parent=11 // pred_check
          %p149 = pneg %p99
        $region18: #{ircnn_forward.10} parent=11 // pred_check_branch
          %151 = sbr.rel (%p149) target = $region20
        $region19: #{ircnn_forward.10} parent=11 // pred_region
          %p152 = scmp.lt.s32.totalorder %s19, 0
          %s153 = scalar_select %p152, %s19, 0
          %s154 = scalar_lea.vmem %s2, %s153
        $region20: #{ircnn_forward.10} parent=11 // pred_fallthru
          _
      $region12: #{ircnn_forward.10} parent=5 // pred_fallthru
        _
      %p155 = scmp.lt.s32.totalorder %s9, 2
      // Predicated region
      $region21: #{ircnn_forward.10} parent=5 // pred_check
        %p156 = pneg %p155
      $region22: #{ircnn_forward.10} parent=5 // pred_check_branch
        %158 = sbr.rel (%p156) target = $region24
      $region23: #{ircnn_forward.10} parent=5 // pred_region
        // Predicated region
        $region25: #{ircnn_forward.10} parent=23 // pred_check
          %p159 = pneg %p41
        $region26: #{ircnn_forward.10} parent=23 // pred_check_branch
          %161 = sbr.rel (%p159) target = $region28
        $region27: #{ircnn_forward.10} parent=23 // pred_region
          %s162 = smul.u32 10, %s16
          %s163 = ssub.s32 19, %s162
          %p164 = scmp.lt.s32.totalorder %s163, 10
          %s165 = scalar_select %p164, %s163, 10
          %s166 = smul.u32 64, %s165
          %s167 = smul.u32 %s166, 3
          %p168 = scmp.lt.s32.totalorder %s162, 18
          %s169 = scalar_select %p168, %s162, 18
          %s170 = smul.addr %s169, 3
          %s171 = smul.addr %s170, 4
          %s172 = scalar_lea.vmem %s0, %s171
          %s173 = smul.u32 10, %s16
          %s174 = ssub.s32 19, %s173
          %p175 = scmp.lt.s32.totalorder %s174, 10
          %s176 = scalar_select %p175, %s174, 10
          %s177 = smul.u32 64, %s176
          %s178 = smul.u32 %s177, 3
        $region28: #{ircnn_forward.10} parent=23 // pred_fallthru
          _
      $region24: #{ircnn_forward.10} parent=5 // pred_fallthru
        _
      %p179 = scmp.le.s32.totalorder 1, %s9
      %p180 = scmp.lt.s32.totalorder %s9, 3
      %p181 = pnand %p179, %p180
      %p182 = pneg %p181
      // Predicated region
      $region29: #{ircnn_forward.10} parent=5 // pred_check
        _
      $region30: #{ircnn_forward.10} parent=5 // pred_check_branch
        %184 = sbr.rel (%p181) target = $region32
      $region31: #{ircnn_forward.10} parent=5 // pred_region
        %s185 = ssub.s32 %s9, 1
        %s186 = smul.u32 10, %s18
        %s187 = ssub.s32 19, %s186
        %p188 = scmp.lt.s32.totalorder %s187, 10
        %s189 = scalar_select %p188, %s187, 10
        %s190 = smul.u32 64, %s189
        %s191 = smul.u32 %s190, 3
        %p192 = scmp.lt.s32.totalorder %s186, 18
        %s193 = scalar_select %p192, %s186, 18
        %s194 = smul.addr %s193, 3
        %s195 = smul.addr %s194, 4
        %s196 = scalar_lea.vmem %s0, %s195
        %p197 = pneg %p47
        %p198 = pneg %p44
        %p199 = scmp.lt.s32.totalorder %s19, 0
        %s200 = scalar_select %p199, %s19, 0
        %s201 = smul.addr %s200, 4
        %s202 = scalar_lea.vmem %s1, %s201
        %p203 = pneg %p73
        %p204 = pneg %p70
        %p205 = scmp.lt.s32.totalorder %s19, 0
        %s206 = scalar_select %p205, %s19, 0
        %s207 = scalar_lea.vmem %s2, %s206
        %p208 = pneg %p99
        %p209 = pneg %p96
        %p210 = pneg %p127
        %p211 = pneg %p124
        %s212 = sand.u32 %s114, 1
        %s213 = sand.u32 %s114, 1
        %s214 = smul.addr %s213, 40
        %s215 = scalar_lea.vmem [#allocation2], %s214
        %s216 = smul.u32 10, %s18
        %s217 = ssub.s32 19, %s216
        %p218 = scmp.lt.s32.totalorder %s217, 10
        %s219 = scalar_select %p218, %s217, 10
        %s220 = smul.u32 64, %s219
        %s221 = smul.u32 %s220, 3
        %p222 = scmp.lt.s32.totalorder %s216, 18
        %s223 = scalar_select %p222, %s216, 18
        %s224 = smul.addr %s223, 3
        %s225 = smul.addr %s224, 4
        %s226 = scalar_lea.vmem %s0, %s225
        %s227 = smul.u32 10, %s18
        %s228 = ssub.s32 19, %s227
        %p229 = scmp.lt.s32.totalorder %s228, 10
        %s230 = scalar_select %p229, %s228, 10
        %s231 = smul.u32 64, %s230
        %s232 = smul.u32 %s231, 3
        %p233 = scmp.lt.s32.totalorder %s19, 0
        %s234 = scalar_select %p233, %s19, 0
        %s235 = smul.addr %s234, 4
        %s236 = scalar_lea.vmem %s1, %s235
        %p237 = scmp.lt.s32.totalorder %s19, 0
        %s238 = scalar_select %p237, %s19, 0
        %s239 = scalar_lea.vmem %s2, %s238
        %s240 = smul.u32 10, %s18
        %s241 = ssub.s32 19, %s240
        %p242 = scmp.lt.s32.totalorder %s241, 10
        %s243 = scalar_select %p242, %s241, 10
        %s244 = smul.u32 64, %s243
        %v246 = vld [vmem:[%s226] sm:$0xff]
        %v247 = vld [vmem:[%s226 + $0x8] sm:$0xf]
        %v248 = vld [vmem:[%s226 + $0xc] sm:$0xff]
        %v249 = vld [vmem:[%s226 + $0x14] sm:$0xf]
        %v250 = vld [vmem:[%s226 + $0x18] sm:$0xff]
        %v251 = vld [vmem:[%s226 + $0x20] sm:$0xf]
        %v252 = vld [vmem:[%s226 + $0x24] sm:$0xff]
        %v253 = vld [vmem:[%s226 + $0x2c] sm:$0xf]
        %v254 = vld [vmem:[%s226 + $0x30] sm:$0xff]
        %v255 = vld [vmem:[%s226 + $0x38] sm:$0xf]
        %v256 = vld [vmem:[%s226 + $0x3c] sm:$0xff]
        %v257 = vld [vmem:[%s226 + $0x44] sm:$0xf]
        %v258 = vld [vmem:[%s226 + $0x48] sm:$0xff]
        %v259 = vld [vmem:[%s226 + $0x50] sm:$0xf]
        %v260 = vld [vmem:[%s226 + $0x54] sm:$0xff]
        %v261 = vld [vmem:[%s226 + $0x5c] sm:$0xf]
        %v262 = vld [vmem:[%s226 + $0x60] sm:$0xff]
        %v263 = vld [vmem:[%s226 + $0x68] sm:$0xf]
        %v264 = vld [vmem:[%s226 + $0x6c] sm:$0xff]
        %v265 = vld [vmem:[%s226 + $0x74] sm:$0xf]
        %v266 = vld [vmem:[%s236] sm:$0xf]
        %v267 = vld [vmem:[%s236 + $0x4] sm:$0xf]
        %v268 = vld [vmem:[%s236 + $0x8] sm:$0xf]
        %v269 = vld [vmem:[%s236 + $0xc] sm:$0xf]
        %v270 = vld [vmem:[%s236 + $0x10] sm:$0xf]
        %v271 = vld [vmem:[%s236 + $0x14] sm:$0xf]
        %v272 = vld [vmem:[%s236 + $0x18] sm:$0xf]
        %v273 = vld [vmem:[%s236 + $0x1c] sm:$0xf]
        %v274 = vld [vmem:[%s236 + $0x20] sm:$0xf]
        %v275 = vld [vmem:[%s236 + $0x24] sm:$0xf]
        %v276 = vld [vmem:[%s236 + $0x28] sm:$0xf]
        %v277 = vld [vmem:[%s236 + $0x2c] sm:$0xf]
        %v278 = vld [vmem:[%s236 + $0x30] sm:$0xf]
        %v279 = vld [vmem:[%s236 + $0x34] sm:$0xf]
        %v280 = vld [vmem:[%s236 + $0x38] sm:$0xf]
        %v281 = vld [vmem:[%s236 + $0x3c] sm:$0xf]
        %v282 = vld [vmem:[%s236 + $0x40] sm:$0xf]
        %v283 = vld [vmem:[%s236 + $0x44] sm:$0xf]
        %v284 = vld [vmem:[%s236 + $0x48] sm:$0xf]
        %v285 = vld [vmem:[%s236 + $0x4c] sm:$0xf]
        %v286 = vld [vmem:[%s236 + $0x50] sm:$0xf]
        %v287 = vld [vmem:[%s236 + $0x54] sm:$0xf]
        %v288 = vld [vmem:[%s236 + $0x58] sm:$0xf]
        %v289 = vld [vmem:[%s236 + $0x5c] sm:$0xf]
        %v290 = vld [vmem:[%s236 + $0x60] sm:$0xf]
        %v291 = vld [vmem:[%s236 + $0x64] sm:$0xf]
        %v292 = vld [vmem:[%s236 + $0x68] sm:$0xf]
        %v293 = vld [vmem:[%s236 + $0x6c] sm:$0xf]
        %v294 = vld [vmem:[%s236 + $0x70] sm:$0xf]
        %v295 = vld [vmem:[%s236 + $0x74] sm:$0xf]
        %v296 = vld [vmem:[%s236 + $0x78] sm:$0xf]
        %v297 = vld [vmem:[%s236 + $0x7c] sm:$0xf]
        %v298 = vld [vmem:[%s236 + $0x80] sm:$0xf]
        %v299 = vld [vmem:[%s236 + $0x84] sm:$0xf]
        %v300 = vld [vmem:[%s236 + $0x88] sm:$0xf]
        %v301 = vld [vmem:[%s236 + $0x8c] sm:$0xf]
        %v302 = vld [vmem:[%s239] sm:$0x1]
        %v304 = vlaneseq
        %v305 = vshrl.u32 %v304, 7
        %v306 = vsub.s32 0, %v305
        %v307 = vrot.slane %v302, %v306
        %v329 = vunpack.c.l.b16 %v246
        %v330 = vunpack.c.h.b16 %v246
        %v331 = vunpack.c.l.b16 %v247
        %v332 = vunpack.c.l.b16 %v248
        %v333 = vunpack.c.h.b16 %v248
        %v334 = vunpack.c.l.b16 %v249
        %v335 = vunpack.c.l.b16 %v250
        %v336 = vunpack.c.h.b16 %v250
        %v337 = vunpack.c.l.b16 %v251
        %v338 = vunpack.c.l.b16 %v252
        %v339 = vunpack.c.h.b16 %v252
        %v340 = vunpack.c.l.b16 %v253
        %v341 = vunpack.c.l.b16 %v254
        %v342 = vunpack.c.h.b16 %v254
        %v343 = vunpack.c.l.b16 %v255
        %v344 = vunpack.c.l.b16 %v256
        %v345 = vunpack.c.h.b16 %v256
        %v346 = vunpack.c.l.b16 %v257
        %v347 = vunpack.c.l.b16 %v258
        %v348 = vunpack.c.h.b16 %v258
        %v349 = vunpack.c.l.b16 %v259
        %v350 = vunpack.c.l.b16 %v260
        %v351 = vunpack.c.h.b16 %v260
        %v352 = vunpack.c.l.b16 %v261
        %v353 = vunpack.c.l.b16 %v262
        %v354 = vunpack.c.h.b16 %v262
        %v355 = vunpack.c.l.b16 %v263
        %v356 = vunpack.c.l.b16 %v264
        %v357 = vunpack.c.h.b16 %v264
        %v358 = vunpack.c.l.b16 %v265
        %v359 = vpack.c.b16 %v332, %v329
        %v360 = vpack.c.b16 %v333, %v330
        %v361 = vpack.c.b16 %v334, %v331
        %v362 = vpack.c.b16 %v338, %v335
        %v363 = vpack.c.b16 %v339, %v336
        %v364 = vpack.c.b16 %v340, %v337
        %v365 = vpack.c.b16 %v344, %v341
        %v366 = vpack.c.b16 %v345, %v342
        %v367 = vpack.c.b16 %v346, %v343
        %v368 = vpack.c.b16 %v350, %v347
        %v369 = vpack.c.b16 %v351, %v348
        %v370 = vpack.c.b16 %v352, %v349
        %v371 = vpack.c.b16 %v356, %v353
        %v372 = vpack.c.b16 %v357, %v354
        %v373 = vpack.c.b16 %v358, %v355
        %v420 = vunpack.c.l.b16 %v266
        %v421 = vunpack.c.l.b16 %v267
        %v422 = vunpack.c.l.b16 %v268
        %v423 = vunpack.c.l.b16 %v269
        %v424 = vunpack.c.l.b16 %v270
        %v425 = vunpack.c.l.b16 %v271
        %v426 = vunpack.c.l.b16 %v272
        %v427 = vunpack.c.l.b16 %v273
        %v428 = vunpack.c.l.b16 %v274
        %v429 = vunpack.c.l.b16 %v275
        %v430 = vunpack.c.l.b16 %v276
        %v431 = vunpack.c.l.b16 %v277
        %v432 = vunpack.c.l.b16 %v278
        %v433 = vunpack.c.l.b16 %v279
        %v434 = vunpack.c.l.b16 %v280
        %v435 = vunpack.c.l.b16 %v281
        %v436 = vunpack.c.l.b16 %v282
        %v437 = vunpack.c.l.b16 %v283
        %v438 = vunpack.c.l.b16 %v284
        %v439 = vunpack.c.l.b16 %v285
        %v440 = vunpack.c.l.b16 %v286
        %v441 = vunpack.c.l.b16 %v287
        %v442 = vunpack.c.l.b16 %v288
        %v443 = vunpack.c.l.b16 %v289
        %v444 = vunpack.c.l.b16 %v290
        %v445 = vunpack.c.l.b16 %v291
        %v446 = vunpack.c.l.b16 %v292
        %v447 = vunpack.c.l.b16 %v293
        %v448 = vunpack.c.l.b16 %v294
        %v449 = vunpack.c.l.b16 %v295
        %v450 = vunpack.c.l.b16 %v296
        %v451 = vunpack.c.l.b16 %v297
        %v452 = vunpack.c.l.b16 %v298
        %v453 = vunpack.c.l.b16 %v299
        %v454 = vunpack.c.l.b16 %v300
        %v455 = vunpack.c.l.b16 %v301
        %v456 = vpack.c.b16 %v421, %v420
        %v457 = vpack.c.b16 %v423, %v422
        %v458 = vpack.c.b16 %v425, %v424
        %v459 = vpack.c.b16 %v427, %v426
        %v460 = vpack.c.b16 %v429, %v428
        %v461 = vpack.c.b16 %v431, %v430
        %v462 = vpack.c.b16 %v433, %v432
        %v463 = vpack.c.b16 %v435, %v434
        %v464 = vpack.c.b16 %v437, %v436
        %v465 = vpack.c.b16 %v439, %v438
        %v466 = vpack.c.b16 %v441, %v440
        %v467 = vpack.c.b16 %v443, %v442
        %v468 = vpack.c.b16 %v445, %v444
        %v469 = vpack.c.b16 %v447, %v446
        %v470 = vpack.c.b16 %v449, %v448
        %v471 = vpack.c.b16 %v451, %v450
        %v472 = vpack.c.b16 %v453, %v452
        %v473 = vpack.c.b16 %v455, %v454
        %vm492 = vcmask 261120
        %v494 = vsel %vm492, %v361, 0
        %v497 = vsel %vm492, %v364, 0
        %v500 = vsel %vm492, %v367, 0
        %v503 = vsel %vm492, %v370, 0
        %v506 = vsel %vm492, %v373, 0
        %508 = vmatprep.subr.bf16.mxu0 0
        %509 = vmatpush1.bf16.msra.mxu0 %v463
        %510 = vmatprep.subr.bf16.mxu0 0
        %511 = vmatpush1.bf16.msra.mxu0 %v462
        %512 = vmatprep.subr.bf16.mxu0 0
        %513 = vmatpush1.bf16.msra.mxu0 %v461
        %514 = vmatprep.subr.bf16.mxu0 0
        %515 = vmatpush1.bf16.msra.mxu0 %v460
        %516 = vmatprep.subr.bf16.mxu0 0
        %517 = vmatpush1.bf16.msra.mxu0 %v459
        %518 = vmatprep.subr.bf16.mxu0 0
        %519 = vmatpush1.bf16.msra.mxu0 %v458
        %520 = vmatprep.subr.bf16.mxu0 0
        %521 = vmatpush1.bf16.msra.mxu0 %v457
        %522 = vmatprep.subr.bf16.mxu0 0
        %523 = vmatpush1.bf16.msra.mxu0 %v456
        %524 = vmatprep.subr.bf16.mxu0 0
        %525 = vmatpush2.bf16.msra.mxu0 %v471
        %526 = vmatprep.subr.bf16.mxu0 0
        %527 = vmatpush2.bf16.msra.mxu0 %v470
        %528 = vmatprep.subr.bf16.mxu0 0
        %529 = vmatpush2.bf16.msra.mxu0 %v469
        %530 = vmatprep.subr.bf16.mxu0 0
        %531 = vmatpush2.bf16.msra.mxu0 %v468
        %532 = vmatprep.subr.bf16.mxu0 0
        %533 = vmatpush2.bf16.msra.mxu0 %v467
        %534 = vmatprep.subr.bf16.mxu0 0
        %535 = vmatpush2.bf16.msra.mxu0 %v466
        %536 = vmatprep.subr.bf16.mxu0 0
        %537 = vmatpush2.bf16.msra.mxu0 %v465
        %538 = vmatprep.subr.bf16.mxu0 0
        %539 = vmatpush2.bf16.msra.mxu0 %v464
        %540 = vmatprep.mubr.bf16.mxu0 %v360
        %541 = vmatmul.mubr.bf16.gmra.mxu0 %v359
        %v542 = vpop.f32.mrf.mxu0
        %v543 = vadd.f32 %v307, %v542
        %v544 = vpop.f32.mrf.mxu0
        %v545 = vpop.f32.mrf.mxu0
        %v546 = vadd.f32 %v307, %v545
        %v547 = vpop.f32.mrf.mxu0
        %548 = vmatprep.mubr.bf16.mxu0 %v363
        %549 = vmatmul.mubr.bf16.gmra.mxu0 %v362
        %v550 = vpop.f32.mrf.mxu0
        %v551 = vadd.f32 %v307, %v550
        %v552 = vpop.f32.mrf.mxu0
        %v553 = vpop.f32.mrf.mxu0
        %v554 = vadd.f32 %v307, %v553
        %v555 = vpop.f32.mrf.mxu0
        %556 = vmatprep.mubr.bf16.mxu0 %v366
        %557 = vmatmul.mubr.bf16.gmra.mxu0 %v365
        %v558 = vpop.f32.mrf.mxu0
        %v559 = vadd.f32 %v307, %v558
        %v560 = vpop.f32.mrf.mxu0
        %v561 = vpop.f32.mrf.mxu0
        %v562 = vadd.f32 %v307, %v561
        %v563 = vpop.f32.mrf.mxu0
        %564 = vmatprep.mubr.bf16.mxu0 %v369
        %565 = vmatmul.mubr.bf16.gmra.mxu0 %v368
        %v566 = vpop.f32.mrf.mxu0
        %v567 = vadd.f32 %v307, %v566
        %v568 = vpop.f32.mrf.mxu0
        %v569 = vpop.f32.mrf.mxu0
        %v570 = vadd.f32 %v307, %v569
        %v571 = vpop.f32.mrf.mxu0
        %572 = vmatprep.mubr.bf16.mxu0 %v372
        %573 = vmatmul.mubr.bf16.gmra.mxu0 %v371
        %v574 = vpop.f32.mrf.mxu0
        %v575 = vadd.f32 %v307, %v574
        %v576 = vpop.f32.mrf.mxu0
        %v577 = vpop.f32.mrf.mxu0
        %v578 = vadd.f32 %v307, %v577
        %v579 = vpop.f32.mrf.mxu0
        %580 = vdwg.mxu0
        %581 = vmatprep.subr.bf16.mxu0 0
        %582 = vmatpush1.bf16.msra.mxu0 0
        %583 = vmatprep.subr.bf16.mxu0 0
        %584 = vmatpush1.bf16.msra.mxu0 0
        %585 = vmatprep.subr.bf16.mxu0 0
        %586 = vmatpush1.bf16.msra.mxu0 0
        %587 = vmatprep.subr.bf16.mxu0 0
        %588 = vmatpush1.bf16.msra.mxu0 0
        %589 = vmatprep.subr.bf16.mxu0 0
        %590 = vmatpush1.bf16.msra.mxu0 0
        %591 = vmatprep.subr.bf16.mxu0 0
        %592 = vmatpush1.bf16.msra.mxu0 0
        %593 = vmatprep.subr.bf16.mxu0 0
        %594 = vmatpush1.bf16.msra.mxu0 %v473
        %595 = vmatprep.subr.bf16.mxu0 0
        %596 = vmatpush1.bf16.msra.mxu0 %v472
        %597 = vmatprep.subr.bf16.mxu0 0
        %598 = vmatpush2.bf16.msra.mxu0 0
        %599 = vmatprep.subr.bf16.mxu0 0
        %600 = vmatpush2.bf16.msra.mxu0 0
        %601 = vmatprep.subr.bf16.mxu0 0
        %602 = vmatpush2.bf16.msra.mxu0 0
        %603 = vmatprep.subr.bf16.mxu0 0
        %604 = vmatpush2.bf16.msra.mxu0 0
        %605 = vmatprep.subr.bf16.mxu0 0
        %606 = vmatpush2.bf16.msra.mxu0 0
        %607 = vmatprep.subr.bf16.mxu0 0
        %608 = vmatpush2.bf16.msra.mxu0 0
        %609 = vmatprep.subr.bf16.mxu0 0
        %610 = vmatpush2.bf16.msra.mxu0 0
        %611 = vmatprep.subr.bf16.mxu0 0
        %612 = vmatpush2.bf16.msra.mxu0 0
        %613 = vmatprep.mubr.bf16.mxu0 0
        %614 = vmatmul.mubr.bf16.gmra.mxu0 %v494
        %v615 = vpop.f32.mrf.mxu0
        %v616 = vadd.f32 %v543, %v615
        %v617 = vpop.f32.mrf.mxu0
        %v618 = vpop.f32.mrf.mxu0
        %v619 = vadd.f32 %v546, %v618
        %v620 = vpop.f32.mrf.mxu0
        %621 = vmatprep.mubr.bf16.mxu0 0
        %622 = vmatmul.mubr.bf16.gmra.mxu0 %v497
        %v623 = vpop.f32.mrf.mxu0
        %v624 = vadd.f32 %v551, %v623
        %v625 = vpop.f32.mrf.mxu0
        %v626 = vpop.f32.mrf.mxu0
        %v627 = vadd.f32 %v554, %v626
        %v628 = vpop.f32.mrf.mxu0
        %629 = vmatprep.mubr.bf16.mxu0 0
        %630 = vmatmul.mubr.bf16.gmra.mxu0 %v500
        %v631 = vpop.f32.mrf.mxu0
        %v632 = vadd.f32 %v559, %v631
        %v633 = vpop.f32.mrf.mxu0
        %v634 = vpop.f32.mrf.mxu0
        %v635 = vadd.f32 %v562, %v634
        %v636 = vpop.f32.mrf.mxu0
        %637 = vmatprep.mubr.bf16.mxu0 0
        %638 = vmatmul.mubr.bf16.gmra.mxu0 %v503
        %v639 = vpop.f32.mrf.mxu0
        %v640 = vadd.f32 %v567, %v639
        %v641 = vpop.f32.mrf.mxu0
        %v642 = vpop.f32.mrf.mxu0
        %v643 = vadd.f32 %v570, %v642
        %v644 = vpop.f32.mrf.mxu0
        %645 = vmatprep.mubr.bf16.mxu0 0
        %646 = vmatmul.mubr.bf16.gmra.mxu0 %v506
        %v647 = vpop.f32.mrf.mxu0
        %v648 = vadd.f32 %v575, %v647
        %v649 = vpop.f32.mrf.mxu0
        %v650 = vpop.f32.mrf.mxu0
        %v651 = vadd.f32 %v578, %v650
        %v652 = vpop.f32.mrf.mxu0
        %653 = vdwg.mxu0
        %v654 = vmax.f32 %v616, 0.0
        %v655 = vmax.f32 %v619, 0.0
        %v656 = vmax.f32 %v624, 0.0
        %v657 = vmax.f32 %v627, 0.0
        %v658 = vmax.f32 %v632, 0.0
        %v659 = vmax.f32 %v635, 0.0
        %v660 = vmax.f32 %v640, 0.0
        %v661 = vmax.f32 %v643, 0.0
        %v662 = vmax.f32 %v648, 0.0
        %v663 = vmax.f32 %v651, 0.0
        %v664 = vpack.c.bf16 %v655, %v654
        %v665 = vpack.c.bf16 %v657, %v656
        %v666 = vpack.c.bf16 %v659, %v658
        %v667 = vpack.c.bf16 %v661, %v660
        %v668 = vpack.c.bf16 %v663, %v662
        %v674 = vunpack.c.l.b16 %v664
        %v675 = vunpack.c.h.b16 %v664
        %v676 = vunpack.c.l.b16 %v665
        %v677 = vunpack.c.h.b16 %v665
        %v678 = vunpack.c.l.b16 %v666
        %v679 = vunpack.c.h.b16 %v666
        %v680 = vunpack.c.l.b16 %v667
        %v681 = vunpack.c.h.b16 %v667
        %v682 = vunpack.c.l.b16 %v668
        %v683 = vunpack.c.h.b16 %v668
        %v684 = vpack.c.b16 %v674, %v674
        %v685 = vpack.c.b16 %v675, %v675
        %v686 = vpack.c.b16 %v676, %v676
        %v687 = vpack.c.b16 %v677, %v677
        %v688 = vpack.c.b16 %v678, %v678
        %v689 = vpack.c.b16 %v679, %v679
        %v690 = vpack.c.b16 %v680, %v680
        %v691 = vpack.c.b16 %v681, %v681
        %v692 = vpack.c.b16 %v682, %v682
        %v693 = vpack.c.b16 %v683, %v683
        %vm704 = vcmask 257024
        %705 = vst.msk [vmem:[%s215] sm:$0xf] %vm704, %v684
        %706 = vst.msk [vmem:[%s215 + $0x4] sm:$0xf] %vm704, %v685
        %707 = vst.msk [vmem:[%s215 + $0x8] sm:$0xf] %vm704, %v686
        %708 = vst.msk [vmem:[%s215 + $0xc] sm:$0xf] %vm704, %v687
        %709 = vst.msk [vmem:[%s215 + $0x10] sm:$0xf] %vm704, %v688
        %710 = vst.msk [vmem:[%s215 + $0x14] sm:$0xf] %vm704, %v689
        %711 = vst.msk [vmem:[%s215 + $0x18] sm:$0xf] %vm704, %v690
        %712 = vst.msk [vmem:[%s215 + $0x1c] sm:$0xf] %vm704, %v691
        %713 = vst.msk [vmem:[%s215 + $0x20] sm:$0xf] %vm704, %v692
        %714 = vst.msk [vmem:[%s215 + $0x24] sm:$0xf] %vm704, %v693
        %s715 = sand.u32 %s114, 1
        %s716 = sand.u32 %s114, 1
        %s717 = smul.addr %s716, 40
        %s718 = scalar_lea.vmem [#allocation2], %s717
        // Predicated region
        $region33: #{ircnn_forward.10} parent=31 // pred_check
          %p719 = pneg %p124
        $region34: #{ircnn_forward.10} parent=31 // pred_check_branch
          %721 = sbr.rel (%p719) target = $region36
        $region35: #{ircnn_forward.10} parent=31 // pred_region
          %s722 = smul.u32 10, %s18
          %s723 = ssub.s32 19, %s722
          %p724 = scmp.lt.s32.totalorder %s723, 10
          %s725 = scalar_select %p724, %s723, 10
          %s726 = smul.u32 64, %s725
          %p727 = scmp.ne.s32.totalorder 0, %s726
          %s728 = sadd.s32 %s19, %s722
          %s729 = smul.addr %s728, 4
          %s730 = scalar_lea.vmem %s3, %s729
          // Predicated region
          $region37: #{ircnn_forward.10} parent=35 // pred_check
            %p731 = pneg %p727
          $region38: #{ircnn_forward.10} parent=35 // pred_check_branch
            %733 = sbr.rel (%p731) target = $region40
          $region39: #{ircnn_forward.10} parent=35 // pred_region
            // Predicated region
            $region41: #{ircnn_forward.10} parent=39 // pred_check
              _
            $region42: #{ircnn_forward.10} parent=39 // pred_check_branch
              %735 = sbr.rel target = $region44
            $region43: #{ircnn_forward.10} parent=39 // pred_region
              // Predicated region
              $region63: #{ircnn_forward.10} parent=43 // pred_check
                _
              $region64: #{ircnn_forward.10} parent=43 // pred_check_branch
                %804 = sbr.rel (0) target = $region66
              $region65: #{ircnn_forward.10} parent=43 // pred_region
                %s806 = ssub.s32 16, 1
                %s807 = sdiv.u32.pop %s725, 10
                %s808 = srem.u32.pop %s725, 10
                // While loop
                $region67: #{ircnn_forward.10} parent=65 // loop_pre_header
                  _
                $region68: #{ircnn_forward.10} parent=65 // loop_header
                  %s810 = sphi 0, %s812
                  %p811 = scmp.ge.s32.totalorder %s810, %s807
                  %s815 = sphi 0, %s840
                  %s816 = sphi %s718, %s843
                  %s817 = sphi %s730, %s844
                $region69: #{ircnn_forward.10} parent=65 // loop_header_branch
                  %814 = sbr.rel (%p811) target = $region73
                $region70: #{ircnn_forward.10} parent=65 // loop_body
                  %v818 = vld [vmem:[%s816] sm:%s806]
                  %819 = vst [vmem:[%s817] sm:%s806] %v818
                  %v820 = vld [vmem:[%s816 + $0x4] sm:%s806]
                  %821 = vst [vmem:[%s817 + $0x4] sm:%s806] %v820
                  %v822 = vld [vmem:[%s816 + $0x8] sm:%s806]
                  %823 = vst [vmem:[%s817 + $0x8] sm:%s806] %v822
                  %v824 = vld [vmem:[%s816 + $0xc] sm:%s806]
                  %825 = vst [vmem:[%s817 + $0xc] sm:%s806] %v824
                  %v826 = vld [vmem:[%s816 + $0x10] sm:%s806]
                  %827 = vst [vmem:[%s817 + $0x10] sm:%s806] %v826
                  %v828 = vld [vmem:[%s816 + $0x14] sm:%s806]
                  %829 = vst [vmem:[%s817 + $0x14] sm:%s806] %v828
                  %v830 = vld [vmem:[%s816 + $0x18] sm:%s806]
                  %831 = vst [vmem:[%s817 + $0x18] sm:%s806] %v830
                  %v832 = vld [vmem:[%s816 + $0x1c] sm:%s806]
                  %833 = vst [vmem:[%s817 + $0x1c] sm:%s806] %v832
                  %v834 = vld [vmem:[%s816 + $0x20] sm:%s806]
                  %835 = vst [vmem:[%s817 + $0x20] sm:%s806] %v834
                  %v836 = vld [vmem:[%s816 + $0x24] sm:%s806]
                  %837 = vst [vmem:[%s817 + $0x24] sm:%s806] %v836
                  %s838 = sadd.s32 1, %s815
                  %p839 = scmp.ge.s32.totalorder %s838, %s807
                  %s840 = scalar_select %p839, 0, %s838
                  %s841 = smul.u32 %s840, 40
                  %s842 = smul.u32 %s840, 40
                  %s843 = scalar_lea.vmem %s718, %s841 [#allocation2]
                  %s844 = scalar_lea.vmem %s730, %s842
                $region71: #{ircnn_forward.10} parent=65 // loop_footer
                  %s812 = sadd.s32 %s810, 1
                $region72: #{ircnn_forward.10} parent=65 // loop_footer_branch
                  %809 = sbr.rel target = $region68
                $region73: #{ircnn_forward.10} parent=65 // loop_exit
                  _
                %s845 = sdiv.u32.pop %s725, 10
                %s846 = srem.u32.pop %s725, 10
                %s847 = smul.u32 %s845, 10
                %s848 = smul.u32 4, %s847
                %s849 = scalar_lea.vmem %s718, %s848 [#allocation2]
                %s850 = smul.u32 4, %s847
                %s851 = scalar_lea.vmem %s730, %s850
                // While loop
                $region74: #{ircnn_forward.10} parent=65 // loop_pre_header
                  _
                $region75: #{ircnn_forward.10} parent=65 // loop_header
                  %s853 = sphi 0, %s855
                  %p854 = scmp.ge.s32.totalorder %s853, %s846
                  %s858 = sphi 0, %s865
                  %s859 = sphi %s849, %s868
                  %s860 = sphi %s851, %s869
                $region76: #{ircnn_forward.10} parent=65 // loop_header_branch
                  %857 = sbr.rel (%p854) target = $region80
                $region77: #{ircnn_forward.10} parent=65 // loop_body
                  %v861 = vld [vmem:[%s859] sm:%s806]
                  %862 = vst [vmem:[%s860] sm:%s806] %v861
                  %s863 = sadd.s32 1, %s858
                  %p864 = scmp.ge.s32.totalorder %s863, %s846
                  %s865 = scalar_select %p864, 0, %s863
                  %s866 = smul.u32 %s865, 4
                  %s867 = smul.u32 %s865, 4
                  %s868 = scalar_lea.vmem %s849, %s866 [#allocation2]
                  %s869 = scalar_lea.vmem %s851, %s867
                $region78: #{ircnn_forward.10} parent=65 // loop_footer
                  %s855 = sadd.s32 %s853, 1
                $region79: #{ircnn_forward.10} parent=65 // loop_footer_branch
                  %852 = sbr.rel target = $region75
                $region80: #{ircnn_forward.10} parent=65 // loop_exit
                  _
              $region66: #{ircnn_forward.10} parent=43 // pred_fallthru
                _
            $region44: #{ircnn_forward.10} parent=39 // pred_fallthru
              _
            // Predicated region
            $region45: #{ircnn_forward.10} parent=39 // pred_check
              _
            $region46: #{ircnn_forward.10} parent=39 // pred_check_branch
              %737 = sbr.rel (0) target = $region48
            $region47: #{ircnn_forward.10} parent=39 // pred_region
              %s739 = ssub.s32 16, 1
              %s740 = sdiv.u32.pop %s725, 10
              %s741 = srem.u32.pop %s725, 10
              // While loop
              $region49: #{ircnn_forward.10} parent=47 // loop_pre_header
                _
              $region50: #{ircnn_forward.10} parent=47 // loop_header
                %s743 = sphi 0, %s745
                %p744 = scmp.ge.s32.totalorder %s743, %s740
                %s748 = sphi 0, %s773
                %s749 = sphi %s718, %s776
                %s750 = sphi %s730, %s777
              $region51: #{ircnn_forward.10} parent=47 // loop_header_branch
                %747 = sbr.rel (%p744) target = $region55
              $region52: #{ircnn_forward.10} parent=47 // loop_body
                %v751 = vld [vmem:[%s749] sm:%s739]
                %752 = vst [vmem:[%s750] sm:%s739] %v751
                %v753 = vld [vmem:[%s749 + $0x4] sm:%s739]
                %754 = vst [vmem:[%s750 + $0x4] sm:%s739] %v753
                %v755 = vld [vmem:[%s749 + $0x8] sm:%s739]
                %756 = vst [vmem:[%s750 + $0x8] sm:%s739] %v755
                %v757 = vld [vmem:[%s749 + $0xc] sm:%s739]
                %758 = vst [vmem:[%s750 + $0xc] sm:%s739] %v757
                %v759 = vld [vmem:[%s749 + $0x10] sm:%s739]
                %760 = vst [vmem:[%s750 + $0x10] sm:%s739] %v759
                %v761 = vld [vmem:[%s749 + $0x14] sm:%s739]
                %762 = vst [vmem:[%s750 + $0x14] sm:%s739] %v761
                %v763 = vld [vmem:[%s749 + $0x18] sm:%s739]
                %764 = vst [vmem:[%s750 + $0x18] sm:%s739] %v763
                %v765 = vld [vmem:[%s749 + $0x1c] sm:%s739]
                %766 = vst [vmem:[%s750 + $0x1c] sm:%s739] %v765
                %v767 = vld [vmem:[%s749 + $0x20] sm:%s739]
                %768 = vst [vmem:[%s750 + $0x20] sm:%s739] %v767
                %v769 = vld [vmem:[%s749 + $0x24] sm:%s739]
                %770 = vst [vmem:[%s750 + $0x24] sm:%s739] %v769
                %s771 = sadd.s32 1, %s748
                %p772 = scmp.ge.s32.totalorder %s771, %s740
                %s773 = scalar_select %p772, 0, %s771
                %s774 = smul.u32 %s773, 40
                %s775 = smul.u32 %s773, 40
                %s776 = scalar_lea.vmem %s718, %s774 [#allocation2]
                %s777 = scalar_lea.vmem %s730, %s775
              $region53: #{ircnn_forward.10} parent=47 // loop_footer
                %s745 = sadd.s32 %s743, 1
              $region54: #{ircnn_forward.10} parent=47 // loop_footer_branch
                %742 = sbr.rel target = $region50
              $region55: #{ircnn_forward.10} parent=47 // loop_exit
                _
              %s778 = sdiv.u32.pop %s725, 10
              %s779 = srem.u32.pop %s725, 10
              %s780 = smul.u32 %s778, 10
              %s781 = smul.u32 4, %s780
              %s782 = scalar_lea.vmem %s718, %s781 [#allocation2]
              %s783 = smul.u32 4, %s780
              %s784 = scalar_lea.vmem %s730, %s783
              // While loop
              $region56: #{ircnn_forward.10} parent=47 // loop_pre_header
                _
              $region57: #{ircnn_forward.10} parent=47 // loop_header
                %s786 = sphi 0, %s788
                %p787 = scmp.ge.s32.totalorder %s786, %s779
                %s791 = sphi 0, %s798
                %s792 = sphi %s782, %s801
                %s793 = sphi %s784, %s802
              $region58: #{ircnn_forward.10} parent=47 // loop_header_branch
                %790 = sbr.rel (%p787) target = $region62
              $region59: #{ircnn_forward.10} parent=47 // loop_body
                %v794 = vld [vmem:[%s792] sm:%s739]
                %795 = vst [vmem:[%s793] sm:%s739] %v794
                %s796 = sadd.s32 1, %s791
                %p797 = scmp.ge.s32.totalorder %s796, %s779
                %s798 = scalar_select %p797, 0, %s796
                %s799 = smul.u32 %s798, 4
                %s800 = smul.u32 %s798, 4
                %s801 = scalar_lea.vmem %s782, %s799 [#allocation2]
                %s802 = scalar_lea.vmem %s784, %s800
              $region60: #{ircnn_forward.10} parent=47 // loop_footer
                %s788 = sadd.s32 %s786, 1
              $region61: #{ircnn_forward.10} parent=47 // loop_footer_branch
                %785 = sbr.rel target = $region57
              $region62: #{ircnn_forward.10} parent=47 // loop_exit
                _
            $region48: #{ircnn_forward.10} parent=39 // pred_fallthru
              _
          $region40: #{ircnn_forward.10} parent=35 // pred_fallthru
            _
          %870 = vnop
        $region36: #{ircnn_forward.10} parent=31 // pred_fallthru
          _
      $region32: #{ircnn_forward.10} parent=5 // pred_fallthru
        _
      %p871 = scmp.le.s32.totalorder 2, %s9
      // Predicated region
      $region81: #{ircnn_forward.10} parent=5 // pred_check
        %p872 = pneg %p871
      $region82: #{ircnn_forward.10} parent=5 // pred_check_branch
        %874 = sbr.rel (%p872) target = $region84
      $region83: #{ircnn_forward.10} parent=5 // pred_region
        %s875 = ssub.s32 %s9, 2
        // Predicated region
        $region85: #{ircnn_forward.10} parent=83 // pred_check
          %p876 = pneg %p130
        $region86: #{ircnn_forward.10} parent=83 // pred_check_branch
          %878 = sbr.rel (%p876) target = $region88
        $region87: #{ircnn_forward.10} parent=83 // pred_region
          %s879 = sand.u32 %s115, 1
          %s880 = sand.u32 %s115, 1
          %s881 = smul.addr %s880, 40
          %s882 = scalar_lea.vmem [#allocation2], %s881
        $region88: #{ircnn_forward.10} parent=83 // pred_fallthru
          _
      $region84: #{ircnn_forward.10} parent=5 // pred_fallthru
        _
    $region6: #{ircnn_forward.10} parent=1 // loop_footer
      %s13 = sadd.s32 1, %s9
    $region7: #{ircnn_forward.10} parent=1 // loop_footer_branch
      %8 = sbr.rel target = $region3
    $region8: #{ircnn_forward.10} parent=1 // loop_exit
      _

// kernel: ircnn_forward.11
$region0: #{ircnn_forward.11}
  #allocation0 [shape = 'u32[]', space=smem, size = 0x4, offset = 0x4, fixed_abs, tag = 'smem constant byte address 0x4 - core index']
  #allocation1 [shape = 'u32[144,128]{1,0:T(1,128)}', space=vmem, size = 0x12000, scoped, tag = 'internal scratch']
  %s0 = inlined_call_operand.vmem [shape: bf16[150,288], index: 0, kind: input, shape index: {}]
  %s1 = inlined_call_operand.vmem [shape: bf16[288,64], index: 1, kind: input, shape index: {}]
  %s2 = inlined_call_operand.vmem [shape: f32[1,64], index: 2, kind: input, shape index: {}]
  %s3 = inlined_call_operand.vmem [shape: bf16[150,64], index: 3, kind: output, shape index: {}]
  %s4 = sld [smem:[#allocation0]]
  $region89: #{ircnn_forward.11} parent=0
    _
  %s6 = ssub.s32 1, %s4
  %s7 = scalar_select 0, %s6, %s4
  $region1: #{ircnn_forward.11} parent=0
    #allocation2 [shape = 'u8[40960]{0}', space=vmem, size = 0xa000, scoped, tag = 'output window, operand 0']
    loop: start=0, step=1, limit=4
    $region2: #{ircnn_forward.11} parent=1 // loop_pre_header
      _
    $region3: #{ircnn_forward.11} parent=1 // loop_header
      %s9 = sphi 0, %s13
      %p10 = scmp.ge.s32.totalorder %s9, 4
      %s16 = sphi 0, %s28
      %s17 = sphi 0, %s24
      %s18 = sphi 0, %s16
      %s19 = sphi 0, %s17
      %s20 = sphi 0, %s18
      %s21 = sphi 0, %s19
      %s31 = sphi 0, %s33
      %s34 = sphi 0, %s31
      %s35 = sphi 0, %s34
      %s51 = sphi 0, %s35
      %s57 = sphi 0, %s59
      %s60 = sphi 0, %s57
      %s61 = sphi 0, %s60
      %s77 = sphi 0, %s61
      %s83 = sphi 0, %s85
      %s86 = sphi 0, %s83
      %s87 = sphi 0, %s86
      %s103 = sphi 0, %s87
      %s111 = sphi 0, %s113
      %s114 = sphi 0, %s111
      %s115 = sphi 0, %s114
      %s131 = sphi 0, %s115
    $region4: #{ircnn_forward.11} parent=1 // loop_header_branch
      %12 = sbr.rel (%p10) target = $region8
    $region5: #{ircnn_forward.11} parent=1 // loop_body
      %s14 = ssub.s32 %s9, 1
      %s15 = ssub.s32 %s9, 2
      %s22 = sadd.s32 1, %s17
      %p23 = scmp.ge.s32.totalorder %s22, 1
      %s24 = scalar_select %p23, 0, %s22
      %s25 = sadd.s32 1, %s16
      %s26 = scalar_select %p23, %s25, %s16
      %p27 = scmp.ge.s32.totalorder %s26, 2
      %s28 = scalar_select %p27, 0, %s26
      %s29 = ssub.s32 %s16, %s28
      %p30 = scmp.eq.s32.totalorder %s29, 0
      %s32 = sadd.s32 %s31, 1
      %s33 = scalar_select %p30, %s31, %s32
      %p36 = pneg %p30
      %p37 = scmp.eq.s32.totalorder %s9, 1
      %p38 = por %p36, %p37
      %p39 = scmp.ne.s32.totalorder %s31, %s34
      %p40 = scmp.eq.s32.totalorder %s9, 0
      %p41 = por %p39, %p40
      %p42 = scmp.ne.s32.totalorder %s31, %s34
      %p43 = scmp.eq.s32.totalorder %s14, 1
      %p44 = por %p42, %p43
      %p45 = scmp.ne.s32.totalorder %s34, %s35
      %p46 = scmp.eq.s32.totalorder %s14, 0
      %p47 = por %p45, %p46
      %p48 = scmp.ne.s32.totalorder %s34, %s35
      %p49 = scmp.eq.s32.totalorder %s15, 1
      %p50 = por %p48, %p49
      %p52 = scmp.ne.s32.totalorder %s35, %s51
      %p53 = scmp.eq.s32.totalorder %s15, 0
      %p54 = por %p52, %p53
      %s55 = ssub.s32 %s17, %s24
      %p56 = scmp.eq.s32.totalorder %s55, 0
      %s58 = sadd.s32 %s57, 1
      %s59 = scalar_select %p56, %s57, %s58
      %p62 = pneg %p56
      %p63 = scmp.eq.s32.totalorder %s9, 1
      %p64 = por %p62, %p63
      %p65 = scmp.ne.s32.totalorder %s57, %s60
      %p66 = scmp.eq.s32.totalorder %s9, 0
      %p67 = por %p65, %p66
      %p68 = scmp.ne.s32.totalorder %s57, %s60
      %p69 = scmp.eq.s32.totalorder %s14, 1
      %p70 = por %p68, %p69
      %p71 = scmp.ne.s32.totalorder %s60, %s61
      %p72 = scmp.eq.s32.totalorder %s14, 0
      %p73 = por %p71, %p72
      %p74 = scmp.ne.s32.totalorder %s60, %s61
      %p75 = scmp.eq.s32.totalorder %s15, 1
      %p76 = por %p74, %p75
      %p78 = scmp.ne.s32.totalorder %s61, %s77
      %p79 = scmp.eq.s32.totalorder %s15, 0
      %p80 = por %p78, %p79
      %s81 = ssub.s32 %s17, %s24
      %p82 = scmp.eq.s32.totalorder %s81, 0
      %s84 = sadd.s32 %s83, 1
      %s85 = scalar_select %p82, %s83, %s84
      %p88 = pneg %p82
      %p89 = scmp.eq.s32.totalorder %s9, 1
      %p90 = por %p88, %p89
      %p91 = scmp.ne.s32.totalorder %s83, %s86
      %p92 = scmp.eq.s32.totalorder %s9, 0
      %p93 = por %p91, %p92
      %p94 = scmp.ne.s32.totalorder %s83, %s86
      %p95 = scmp.eq.s32.totalorder %s14, 1
      %p96 = por %p94, %p95
      %p97 = scmp.ne.s32.totalorder %s86, %s87
      %p98 = scmp.eq.s32.totalorder %s14, 0
      %p99 = por %p97, %p98
      %p100 = scmp.ne.s32.totalorder %s86, %s87
      %p101 = scmp.eq.s32.totalorder %s15, 1
      %p102 = por %p100, %p101
      %p104 = scmp.ne.s32.totalorder %s87, %s103
      %p105 = scmp.eq.s32.totalorder %s15, 0
      %p106 = por %p104, %p105
      %s107 = ssub.s32 %s16, %s28
      %s108 = ssub.s32 %s17, %s24
      %s109 = sor.u32 %s107, %s108
      %p110 = scmp.eq.s32.totalorder %s109, 0
      %s112 = sadd.s32 %s111, 1
      %s113 = scalar_select %p110, %s111, %s112
      %p116 = pneg %p110
      %p117 = scmp.eq.s32.totalorder %s9, 1
      %p118 = por %p116, %p117
      %p119 = scmp.ne.s32.totalorder %s111, %s114
      %p120 = scmp.eq.s32.totalorder %s9, 0
      %p121 = por %p119, %p120
      %p122 = scmp.ne.s32.totalorder %s111, %s114
      %p123 = scmp.eq.s32.totalorder %s14, 1
      %p124 = por %p122, %p123
      %p125 = scmp.ne.s32.totalorder %s114, %s115
      %p126 = scmp.eq.s32.totalorder %s14, 0
      %p127 = por %p125, %p126
      %p128 = scmp.ne.s32.totalorder %s114, %s115
      %p129 = scmp.eq.s32.totalorder %s15, 1
      %p130 = por %p128, %p129
      %p132 = scmp.ne.s32.totalorder %s115, %s131
      %p133 = scmp.eq.s32.totalorder %s15, 0
      %p134 = por %p132, %p133
      %p135 = scmp.le.s32.totalorder 1, %s9
      %p136 = scmp.lt.s32.totalorder %s9, 3
      %p137 = pnand %p135, %p136
      %p138 = pneg %p137
      // Predicated region
      $region9: #{ircnn_forward.11} parent=5 // pred_check
        _
      $region10: #{ircnn_forward.11} parent=5 // pred_check_branch
        %140 = sbr.rel (%p137) target = $region12
      $region11: #{ircnn_forward.11} parent=5 // pred_region
        %s141 = ssub.s32 %s9, 1
        // Predicated region
        $region13: #{ircnn_forward.11} parent=11 // pred_check
          %p142 = pneg %p73
        $region14: #{ircnn_forward.11} parent=11 // pred_check_branch
          %144 = sbr.rel (%p142) target = $region16
        $region15: #{ircnn_forward.11} parent=11 // pred_region
          %p145 = scmp.lt.s32.totalorder %s19, 0
          %s146 = scalar_select %p145, %s19, 0
          %s147 = smul.addr %s146, 4
          %s148 = scalar_lea.vmem %s1, %s147
        $region16: #{ircnn_forward.11} parent=11 // pred_fallthru
          _
        // Predicated region
        $region17: #{ircnn_forward.11} parent=11 // pred_check
          %p149 = pneg %p99
        $region18: #{ircnn_forward.11} parent=11 // pred_check_branch
          %151 = sbr.rel (%p149) target = $region20
        $region19: #{ircnn_forward.11} parent=11 // pred_region
          %p152 = scmp.lt.s32.totalorder %s19, 0
          %s153 = scalar_select %p152, %s19, 0
          %s154 = scalar_lea.vmem %s2, %s153
        $region20: #{ircnn_forward.11} parent=11 // pred_fallthru
          _
      $region12: #{ircnn_forward.11} parent=5 // pred_fallthru
        _
      %p155 = scmp.lt.s32.totalorder %s9, 2
      // Predicated region
      $region21: #{ircnn_forward.11} parent=5 // pred_check
        %p156 = pneg %p155
      $region22: #{ircnn_forward.11} parent=5 // pred_check_branch
        %158 = sbr.rel (%p156) target = $region24
      $region23: #{ircnn_forward.11} parent=5 // pred_region
        // Predicated region
        $region25: #{ircnn_forward.11} parent=23 // pred_check
          %p159 = pneg %p41
        $region26: #{ircnn_forward.11} parent=23 // pred_check_branch
          %161 = sbr.rel (%p159) target = $region28
        $region27: #{ircnn_forward.11} parent=23 // pred_region
          %s162 = smul.u32 10, %s16
          %s163 = ssub.s32 19, %s162
          %p164 = scmp.lt.s32.totalorder %s163, 10
          %s165 = scalar_select %p164, %s163, 10
          %s166 = smul.u32 64, %s165
          %s167 = smul.u32 %s166, 3
          %p168 = scmp.lt.s32.totalorder %s162, 18
          %s169 = scalar_select %p168, %s162, 18
          %s170 = smul.addr %s169, 3
          %s171 = smul.addr %s170, 4
          %s172 = scalar_lea.vmem %s0, %s171
          %s173 = smul.u32 10, %s16
          %s174 = ssub.s32 19, %s173
          %p175 = scmp.lt.s32.totalorder %s174, 10
          %s176 = scalar_select %p175, %s174, 10
          %s177 = smul.u32 64, %s176
          %s178 = smul.u32 %s177, 3
        $region28: #{ircnn_forward.11} parent=23 // pred_fallthru
          _
      $region24: #{ircnn_forward.11} parent=5 // pred_fallthru
        _
      %p179 = scmp.le.s32.totalorder 1, %s9
      %p180 = scmp.lt.s32.totalorder %s9, 3
      %p181 = pnand %p179, %p180
      %p182 = pneg %p181
      // Predicated region
      $region29: #{ircnn_forward.11} parent=5 // pred_check
        _
      $region30: #{ircnn_forward.11} parent=5 // pred_check_branch
        %184 = sbr.rel (%p181) target = $region32
      $region31: #{ircnn_forward.11} parent=5 // pred_region
        %s185 = ssub.s32 %s9, 1
        %s186 = smul.u32 10, %s18
        %s187 = ssub.s32 19, %s186
        %p188 = scmp.lt.s32.totalorder %s187, 10
        %s189 = scalar_select %p188, %s187, 10
        %s190 = smul.u32 64, %s189
        %s191 = smul.u32 %s190, 3
        %p192 = scmp.lt.s32.totalorder %s186, 18
        %s193 = scalar_select %p192, %s186, 18
        %s194 = smul.addr %s193, 3
        %s195 = smul.addr %s194, 4
        %s196 = scalar_lea.vmem %s0, %s195
        %p197 = pneg %p47
        %p198 = pneg %p44
        %p199 = scmp.lt.s32.totalorder %s19, 0
        %s200 = scalar_select %p199, %s19, 0
        %s201 = smul.addr %s200, 4
        %s202 = scalar_lea.vmem %s1, %s201
        %p203 = pneg %p73
        %p204 = pneg %p70
        %p205 = scmp.lt.s32.totalorder %s19, 0
        %s206 = scalar_select %p205, %s19, 0
        %s207 = scalar_lea.vmem %s2, %s206
        %p208 = pneg %p99
        %p209 = pneg %p96
        %p210 = pneg %p127
        %p211 = pneg %p124
        %s212 = sand.u32 %s114, 1
        %s213 = sand.u32 %s114, 1
        %s214 = smul.addr %s213, 40
        %s215 = scalar_lea.vmem [#allocation2], %s214
        %s216 = smul.u32 10, %s18
        %s217 = ssub.s32 19, %s216
        %p218 = scmp.lt.s32.totalorder %s217, 10
        %s219 = scalar_select %p218, %s217, 10
        %s220 = smul.u32 64, %s219
        %s221 = smul.u32 %s220, 3
        %p222 = scmp.lt.s32.totalorder %s216, 18
        %s223 = scalar_select %p222, %s216, 18
        %s224 = smul.addr %s223, 3
        %s225 = smul.addr %s224, 4
        %s226 = scalar_lea.vmem %s0, %s225
        %s227 = smul.u32 10, %s18
        %s228 = ssub.s32 19, %s227
        %p229 = scmp.lt.s32.totalorder %s228, 10
        %s230 = scalar_select %p229, %s228, 10
        %s231 = smul.u32 64, %s230
        %s232 = smul.u32 %s231, 3
        %p233 = scmp.lt.s32.totalorder %s19, 0
        %s234 = scalar_select %p233, %s19, 0
        %s235 = smul.addr %s234, 4
        %s236 = scalar_lea.vmem %s1, %s235
        %p237 = scmp.lt.s32.totalorder %s19, 0
        %s238 = scalar_select %p237, %s19, 0
        %s239 = scalar_lea.vmem %s2, %s238
        %s240 = smul.u32 10, %s18
        %s241 = ssub.s32 19, %s240
        %p242 = scmp.lt.s32.totalorder %s241, 10
        %s243 = scalar_select %p242, %s241, 10
        %s244 = smul.u32 64, %s243
        %v246 = vld [vmem:[%s226] sm:$0xff]
        %v247 = vld [vmem:[%s226 + $0x8] sm:$0xf]
        %v248 = vld [vmem:[%s226 + $0xc] sm:$0xff]
        %v249 = vld [vmem:[%s226 + $0x14] sm:$0xf]
        %v250 = vld [vmem:[%s226 + $0x18] sm:$0xff]
        %v251 = vld [vmem:[%s226 + $0x20] sm:$0xf]
        %v252 = vld [vmem:[%s226 + $0x24] sm:$0xff]
        %v253 = vld [vmem:[%s226 + $0x2c] sm:$0xf]
        %v254 = vld [vmem:[%s226 + $0x30] sm:$0xff]
        %v255 = vld [vmem:[%s226 + $0x38] sm:$0xf]
        %v256 = vld [vmem:[%s226 + $0x3c] sm:$0xff]
        %v257 = vld [vmem:[%s226 + $0x44] sm:$0xf]
        %v258 = vld [vmem:[%s226 + $0x48] sm:$0xff]
        %v259 = vld [vmem:[%s226 + $0x50] sm:$0xf]
        %v260 = vld [vmem:[%s226 + $0x54] sm:$0xff]
        %v261 = vld [vmem:[%s226 + $0x5c] sm:$0xf]
        %v262 = vld [vmem:[%s226 + $0x60] sm:$0xff]
        %v263 = vld [vmem:[%s226 + $0x68] sm:$0xf]
        %v264 = vld [vmem:[%s226 + $0x6c] sm:$0xff]
        %v265 = vld [vmem:[%s226 + $0x74] sm:$0xf]
        %v266 = vld [vmem:[%s236] sm:$0xf]
        %v267 = vld [vmem:[%s236 + $0x4] sm:$0xf]
        %v268 = vld [vmem:[%s236 + $0x8] sm:$0xf]
        %v269 = vld [vmem:[%s236 + $0xc] sm:$0xf]
        %v270 = vld [vmem:[%s236 + $0x10] sm:$0xf]
        %v271 = vld [vmem:[%s236 + $0x14] sm:$0xf]
        %v272 = vld [vmem:[%s236 + $0x18] sm:$0xf]
        %v273 = vld [vmem:[%s236 + $0x1c] sm:$0xf]
        %v274 = vld [vmem:[%s236 + $0x20] sm:$0xf]
        %v275 = vld [vmem:[%s236 + $0x24] sm:$0xf]
        %v276 = vld [vmem:[%s236 + $0x28] sm:$0xf]
        %v277 = vld [vmem:[%s236 + $0x2c] sm:$0xf]
        %v278 = vld [vmem:[%s236 + $0x30] sm:$0xf]
        %v279 = vld [vmem:[%s236 + $0x34] sm:$0xf]
        %v280 = vld [vmem:[%s236 + $0x38] sm:$0xf]
        %v281 = vld [vmem:[%s236 + $0x3c] sm:$0xf]
        %v282 = vld [vmem:[%s236 + $0x40] sm:$0xf]
        %v283 = vld [vmem:[%s236 + $0x44] sm:$0xf]
        %v284 = vld [vmem:[%s236 + $0x48] sm:$0xf]
        %v285 = vld [vmem:[%s236 + $0x4c] sm:$0xf]
        %v286 = vld [vmem:[%s236 + $0x50] sm:$0xf]
        %v287 = vld [vmem:[%s236 + $0x54] sm:$0xf]
        %v288 = vld [vmem:[%s236 + $0x58] sm:$0xf]
        %v289 = vld [vmem:[%s236 + $0x5c] sm:$0xf]
        %v290 = vld [vmem:[%s236 + $0x60] sm:$0xf]
        %v291 = vld [vmem:[%s236 + $0x64] sm:$0xf]
        %v292 = vld [vmem:[%s236 + $0x68] sm:$0xf]
        %v293 = vld [vmem:[%s236 + $0x6c] sm:$0xf]
        %v294 = vld [vmem:[%s236 + $0x70] sm:$0xf]
        %v295 = vld [vmem:[%s236 + $0x74] sm:$0xf]
        %v296 = vld [vmem:[%s236 + $0x78] sm:$0xf]
        %v297 = vld [vmem:[%s236 + $0x7c] sm:$0xf]
        %v298 = vld [vmem:[%s236 + $0x80] sm:$0xf]
        %v299 = vld [vmem:[%s236 + $0x84] sm:$0xf]
        %v300 = vld [vmem:[%s236 + $0x88] sm:$0xf]
        %v301 = vld [vmem:[%s236 + $0x8c] sm:$0xf]
        %v302 = vld [vmem:[%s239] sm:$0x1]
        %v304 = vlaneseq
        %v305 = vshrl.u32 %v304, 7
        %v306 = vsub.s32 0, %v305
        %v307 = vrot.slane %v302, %v306
        %v329 = vunpack.c.l.b16 %v246
        %v330 = vunpack.c.h.b16 %v246
        %v331 = vunpack.c.l.b16 %v247
        %v332 = vunpack.c.l.b16 %v248
        %v333 = vunpack.c.h.b16 %v248
        %v334 = vunpack.c.l.b16 %v249
        %v335 = vunpack.c.l.b16 %v250
        %v336 = vunpack.c.h.b16 %v250
        %v337 = vunpack.c.l.b16 %v251
        %v338 = vunpack.c.l.b16 %v252
        %v339 = vunpack.c.h.b16 %v252
        %v340 = vunpack.c.l.b16 %v253
        %v341 = vunpack.c.l.b16 %v254
        %v342 = vunpack.c.h.b16 %v254
        %v343 = vunpack.c.l.b16 %v255
        %v344 = vunpack.c.l.b16 %v256
        %v345 = vunpack.c.h.b16 %v256
        %v346 = vunpack.c.l.b16 %v257
        %v347 = vunpack.c.l.b16 %v258
        %v348 = vunpack.c.h.b16 %v258
        %v349 = vunpack.c.l.b16 %v259
        %v350 = vunpack.c.l.b16 %v260
        %v351 = vunpack.c.h.b16 %v260
        %v352 = vunpack.c.l.b16 %v261
        %v353 = vunpack.c.l.b16 %v262
        %v354 = vunpack.c.h.b16 %v262
        %v355 = vunpack.c.l.b16 %v263
        %v356 = vunpack.c.l.b16 %v264
        %v357 = vunpack.c.h.b16 %v264
        %v358 = vunpack.c.l.b16 %v265
        %v359 = vpack.c.b16 %v332, %v329
        %v360 = vpack.c.b16 %v333, %v330
        %v361 = vpack.c.b16 %v334, %v331
        %v362 = vpack.c.b16 %v338, %v335
        %v363 = vpack.c.b16 %v339, %v336
        %v364 = vpack.c.b16 %v340, %v337
        %v365 = vpack.c.b16 %v344, %v341
        %v366 = vpack.c.b16 %v345, %v342
        %v367 = vpack.c.b16 %v346, %v343
        %v368 = vpack.c.b16 %v350, %v347
        %v369 = vpack.c.b16 %v351, %v348
        %v370 = vpack.c.b16 %v352, %v349
        %v371 = vpack.c.b16 %v356, %v353
        %v372 = vpack.c.b16 %v357, %v354
        %v373 = vpack.c.b16 %v358, %v355
        %v420 = vunpack.c.l.b16 %v266
        %v421 = vunpack.c.l.b16 %v267
        %v422 = vunpack.c.l.b16 %v268
        %v423 = vunpack.c.l.b16 %v269
        %v424 = vunpack.c.l.b16 %v270
        %v425 = vunpack.c.l.b16 %v271
        %v426 = vunpack.c.l.b16 %v272
        %v427 = vunpack.c.l.b16 %v273
        %v428 = vunpack.c.l.b16 %v274
        %v429 = vunpack.c.l.b16 %v275
        %v430 = vunpack.c.l.b16 %v276
        %v431 = vunpack.c.l.b16 %v277
        %v432 = vunpack.c.l.b16 %v278
        %v433 = vunpack.c.l.b16 %v279
        %v434 = vunpack.c.l.b16 %v280
        %v435 = vunpack.c.l.b16 %v281
        %v436 = vunpack.c.l.b16 %v282
        %v437 = vunpack.c.l.b16 %v283
        %v438 = vunpack.c.l.b16 %v284
        %v439 = vunpack.c.l.b16 %v285
        %v440 = vunpack.c.l.b16 %v286
        %v441 = vunpack.c.l.b16 %v287
        %v442 = vunpack.c.l.b16 %v288
        %v443 = vunpack.c.l.b16 %v289
        %v444 = vunpack.c.l.b16 %v290
        %v445 = vunpack.c.l.b16 %v291
        %v446 = vunpack.c.l.b16 %v292
        %v447 = vunpack.c.l.b16 %v293
        %v448 = vunpack.c.l.b16 %v294
        %v449 = vunpack.c.l.b16 %v295
        %v450 = vunpack.c.l.b16 %v296
        %v451 = vunpack.c.l.b16 %v297
        %v452 = vunpack.c.l.b16 %v298
        %v453 = vunpack.c.l.b16 %v299
        %v454 = vunpack.c.l.b16 %v300
        %v455 = vunpack.c.l.b16 %v301
        %v456 = vpack.c.b16 %v421, %v420
        %v457 = vpack.c.b16 %v423, %v422
        %v458 = vpack.c.b16 %v425, %v424
        %v459 = vpack.c.b16 %v427, %v426
        %v460 = vpack.c.b16 %v429, %v428
        %v461 = vpack.c.b16 %v431, %v430
        %v462 = vpack.c.b16 %v433, %v432
        %v463 = vpack.c.b16 %v435, %v434
        %v464 = vpack.c.b16 %v437, %v436
        %v465 = vpack.c.b16 %v439, %v438
        %v466 = vpack.c.b16 %v441, %v440
        %v467 = vpack.c.b16 %v443, %v442
        %v468 = vpack.c.b16 %v445, %v444
        %v469 = vpack.c.b16 %v447, %v446
        %v470 = vpack.c.b16 %v449, %v448
        %v471 = vpack.c.b16 %v451, %v450
        %v472 = vpack.c.b16 %v453, %v452
        %v473 = vpack.c.b16 %v455, %v454
        %vm492 = vcmask 261120
        %v494 = vsel %vm492, %v361, 0
        %v497 = vsel %vm492, %v364, 0
        %v500 = vsel %vm492, %v367, 0
        %v503 = vsel %vm492, %v370, 0
        %v506 = vsel %vm492, %v373, 0
        %508 = vmatprep.subr.bf16.mxu0 0
        %509 = vmatpush1.bf16.msra.mxu0 %v463
        %510 = vmatprep.subr.bf16.mxu0 0
        %511 = vmatpush1.bf16.msra.mxu0 %v462
        %512 = vmatprep.subr.bf16.mxu0 0
        %513 = vmatpush1.bf16.msra.mxu0 %v461
        %514 = vmatprep.subr.bf16.mxu0 0
        %515 = vmatpush1.bf16.msra.mxu0 %v460
        %516 = vmatprep.subr.bf16.mxu0 0
        %517 = vmatpush1.bf16.msra.mxu0 %v459
        %518 = vmatprep.subr.bf16.mxu0 0
        %519 = vmatpush1.bf16.msra.mxu0 %v458
        %520 = vmatprep.subr.bf16.mxu0 0
        %521 = vmatpush1.bf16.msra.mxu0 %v457
        %522 = vmatprep.subr.bf16.mxu0 0
        %523 = vmatpush1.bf16.msra.mxu0 %v456
        %524 = vmatprep.subr.bf16.mxu0 0
        %525 = vmatpush2.bf16.msra.mxu0 %v471
        %526 = vmatprep.subr.bf16.mxu0 0
        %527 = vmatpush2.bf16.msra.mxu0 %v470
        %528 = vmatprep.subr.bf16.mxu0 0
        %529 = vmatpush2.bf16.msra.mxu0 %v469
        %530 = vmatprep.subr.bf16.mxu0 0
        %531 = vmatpush2.bf16.msra.mxu0 %v468
        %532 = vmatprep.subr.bf16.mxu0 0
        %533 = vmatpush2.bf16.msra.mxu0 %v467
        %534 = vmatprep.subr.bf16.mxu0 0
        %535 = vmatpush2.bf16.msra.mxu0 %v466
        %536 = vmatprep.subr.bf16.mxu0 0
        %537 = vmatpush2.bf16.msra.mxu0 %v465
        %538 = vmatprep.subr.bf16.mxu0 0
        %539 = vmatpush2.bf16.msra.mxu0 %v464
        %540 = vmatprep.mubr.bf16.mxu0 %v360
        %541 = vmatmul.mubr.bf16.gmra.mxu0 %v359
        %v542 = vpop.f32.mrf.mxu0
        %v543 = vadd.f32 %v307, %v542
        %v544 = vpop.f32.mrf.mxu0
        %v545 = vpop.f32.mrf.mxu0
        %v546 = vadd.f32 %v307, %v545
        %v547 = vpop.f32.mrf.mxu0
        %548 = vmatprep.mubr.bf16.mxu0 %v363
        %549 = vmatmul.mubr.bf16.gmra.mxu0 %v362
        %v550 = vpop.f32.mrf.mxu0
        %v551 = vadd.f32 %v307, %v550
        %v552 = vpop.f32.mrf.mxu0
        %v553 = vpop.f32.mrf.mxu0
        %v554 = vadd.f32 %v307, %v553
        %v555 = vpop.f32.mrf.mxu0
        %556 = vmatprep.mubr.bf16.mxu0 %v366
        %557 = vmatmul.mubr.bf16.gmra.mxu0 %v365
        %v558 = vpop.f32.mrf.mxu0
        %v559 = vadd.f32 %v307, %v558
        %v560 = vpop.f32.mrf.mxu0
        %v561 = vpop.f32.mrf.mxu0
        %v562 = vadd.f32 %v307, %v561
        %v563 = vpop.f32.mrf.mxu0
        %564 = vmatprep.mubr.bf16.mxu0 %v369
        %565 = vmatmul.mubr.bf16.gmra.mxu0 %v368
        %v566 = vpop.f32.mrf.mxu0
        %v567 = vadd.f32 %v307, %v566
        %v568 = vpop.f32.mrf.mxu0
        %v569 = vpop.f32.mrf.mxu0
        %v570 = vadd.f32 %v307, %v569
        %v571 = vpop.f32.mrf.mxu0
        %572 = vmatprep.mubr.bf16.mxu0 %v372
        %573 = vmatmul.mubr.bf16.gmra.mxu0 %v371
        %v574 = vpop.f32.mrf.mxu0
        %v575 = vadd.f32 %v307, %v574
        %v576 = vpop.f32.mrf.mxu0
        %v577 = vpop.f32.mrf.mxu0
        %v578 = vadd.f32 %v307, %v577
        %v579 = vpop.f32.mrf.mxu0
        %580 = vdwg.mxu0
        %581 = vmatprep.subr.bf16.mxu0 0
        %582 = vmatpush1.bf16.msra.mxu0 0
        %583 = vmatprep.subr.bf16.mxu0 0
        %584 = vmatpush1.bf16.msra.mxu0 0
        %585 = vmatprep.subr.bf16.mxu0 0
        %586 = vmatpush1.bf16.msra.mxu0 0
        %587 = vmatprep.subr.bf16.mxu0 0
        %588 = vmatpush1.bf16.msra.mxu0 0
        %589 = vmatprep.subr.bf16.mxu0 0
        %590 = vmatpush1.bf16.msra.mxu0 0
        %591 = vmatprep.subr.bf16.mxu0 0
        %592 = vmatpush1.bf16.msra.mxu0 0
        %593 = vmatprep.subr.bf16.mxu0 0
        %594 = vmatpush1.bf16.msra.mxu0 %v473
        %595 = vmatprep.subr.bf16.mxu0 0
        %596 = vmatpush1.bf16.msra.mxu0 %v472
        %597 = vmatprep.subr.bf16.mxu0 0
        %598 = vmatpush2.bf16.msra.mxu0 0
        %599 = vmatprep.subr.bf16.mxu0 0
        %600 = vmatpush2.bf16.msra.mxu0 0
        %601 = vmatprep.subr.bf16.mxu0 0
        %602 = vmatpush2.bf16.msra.mxu0 0
        %603 = vmatprep.subr.bf16.mxu0 0
        %604 = vmatpush2.bf16.msra.mxu0 0
        %605 = vmatprep.subr.bf16.mxu0 0
        %606 = vmatpush2.bf16.msra.mxu0 0
        %607 = vmatprep.subr.bf16.mxu0 0
        %608 = vmatpush2.bf16.msra.mxu0 0
        %609 = vmatprep.subr.bf16.mxu0 0
        %610 = vmatpush2.bf16.msra.mxu0 0
        %611 = vmatprep.subr.bf16.mxu0 0
        %612 = vmatpush2.bf16.msra.mxu0 0
        %613 = vmatprep.mubr.bf16.mxu0 0
        %614 = vmatmul.mubr.bf16.gmra.mxu0 %v494
        %v615 = vpop.f32.mrf.mxu0
        %v616 = vadd.f32 %v543, %v615
        %v617 = vpop.f32.mrf.mxu0
        %v618 = vpop.f32.mrf.mxu0
        %v619 = vadd.f32 %v546, %v618
        %v620 = vpop.f32.mrf.mxu0
        %621 = vmatprep.mubr.bf16.mxu0 0
        %622 = vmatmul.mubr.bf16.gmra.mxu0 %v497
        %v623 = vpop.f32.mrf.mxu0
        %v624 = vadd.f32 %v551, %v623
        %v625 = vpop.f32.mrf.mxu0
        %v626 = vpop.f32.mrf.mxu0
        %v627 = vadd.f32 %v554, %v626
        %v628 = vpop.f32.mrf.mxu0
        %629 = vmatprep.mubr.bf16.mxu0 0
        %630 = vmatmul.mubr.bf16.gmra.mxu0 %v500
        %v631 = vpop.f32.mrf.mxu0
        %v632 = vadd.f32 %v559, %v631
        %v633 = vpop.f32.mrf.mxu0
        %v634 = vpop.f32.mrf.mxu0
        %v635 = vadd.f32 %v562, %v634
        %v636 = vpop.f32.mrf.mxu0
        %637 = vmatprep.mubr.bf16.mxu0 0
        %638 = vmatmul.mubr.bf16.gmra.mxu0 %v503
        %v639 = vpop.f32.mrf.mxu0
        %v640 = vadd.f32 %v567, %v639
        %v641 = vpop.f32.mrf.mxu0
        %v642 = vpop.f32.mrf.mxu0
        %v643 = vadd.f32 %v570, %v642
        %v644 = vpop.f32.mrf.mxu0
        %645 = vmatprep.mubr.bf16.mxu0 0
        %646 = vmatmul.mubr.bf16.gmra.mxu0 %v506
        %v647 = vpop.f32.mrf.mxu0
        %v648 = vadd.f32 %v575, %v647
        %v649 = vpop.f32.mrf.mxu0
        %v650 = vpop.f32.mrf.mxu0
        %v651 = vadd.f32 %v578, %v650
        %v652 = vpop.f32.mrf.mxu0
        %653 = vdwg.mxu0
        %v654 = vmax.f32 %v616, 0.0
        %v655 = vmax.f32 %v619, 0.0
        %v656 = vmax.f32 %v624, 0.0
        %v657 = vmax.f32 %v627, 0.0
        %v658 = vmax.f32 %v632, 0.0
        %v659 = vmax.f32 %v635, 0.0
        %v660 = vmax.f32 %v640, 0.0
        %v661 = vmax.f32 %v643, 0.0
        %v662 = vmax.f32 %v648, 0.0
        %v663 = vmax.f32 %v651, 0.0
        %v664 = vpack.c.bf16 %v655, %v654
        %v665 = vpack.c.bf16 %v657, %v656
        %v666 = vpack.c.bf16 %v659, %v658
        %v667 = vpack.c.bf16 %v661, %v660
        %v668 = vpack.c.bf16 %v663, %v662
        %v674 = vunpack.c.l.b16 %v664
        %v675 = vunpack.c.h.b16 %v664
        %v676 = vunpack.c.l.b16 %v665
        %v677 = vunpack.c.h.b16 %v665
        %v678 = vunpack.c.l.b16 %v666
        %v679 = vunpack.c.h.b16 %v666
        %v680 = vunpack.c.l.b16 %v667
        %v681 = vunpack.c.h.b16 %v667
        %v682 = vunpack.c.l.b16 %v668
        %v683 = vunpack.c.h.b16 %v668
        %v684 = vpack.c.b16 %v674, %v674
        %v685 = vpack.c.b16 %v675, %v675
        %v686 = vpack.c.b16 %v676, %v676
        %v687 = vpack.c.b16 %v677, %v677
        %v688 = vpack.c.b16 %v678, %v678
        %v689 = vpack.c.b16 %v679, %v679
        %v690 = vpack.c.b16 %v680, %v680
        %v691 = vpack.c.b16 %v681, %v681
        %v692 = vpack.c.b16 %v682, %v682
        %v693 = vpack.c.b16 %v683, %v683
        %vm704 = vcmask 519168
        %705 = vst.msk [vmem:[%s215] sm:$0xf] %vm704, %v684
        %706 = vst.msk [vmem:[%s215 + $0x4] sm:$0xf] %vm704, %v685
        %707 = vst.msk [vmem:[%s215 + $0x8] sm:$0xf] %vm704, %v686
        %708 = vst.msk [vmem:[%s215 + $0xc] sm:$0xf] %vm704, %v687
        %709 = vst.msk [vmem:[%s215 + $0x10] sm:$0xf] %vm704, %v688
        %710 = vst.msk [vmem:[%s215 + $0x14] sm:$0xf] %vm704, %v689
        %711 = vst.msk [vmem:[%s215 + $0x18] sm:$0xf] %vm704, %v690
        %712 = vst.msk [vmem:[%s215 + $0x1c] sm:$0xf] %vm704, %v691
        %713 = vst.msk [vmem:[%s215 + $0x20] sm:$0xf] %vm704, %v692
        %714 = vst.msk [vmem:[%s215 + $0x24] sm:$0xf] %vm704, %v693
        %s715 = sand.u32 %s114, 1
        %s716 = sand.u32 %s114, 1
        %s717 = smul.addr %s716, 40
        %s718 = scalar_lea.vmem [#allocation2], %s717
        // Predicated region
        $region33: #{ircnn_forward.11} parent=31 // pred_check
          %p719 = pneg %p124
        $region34: #{ircnn_forward.11} parent=31 // pred_check_branch
          %721 = sbr.rel (%p719) target = $region36
        $region35: #{ircnn_forward.11} parent=31 // pred_region
          %s722 = smul.u32 10, %s18
          %s723 = ssub.s32 19, %s722
          %p724 = scmp.lt.s32.totalorder %s723, 10
          %s725 = scalar_select %p724, %s723, 10
          %s726 = smul.u32 64, %s725
          %p727 = scmp.ne.s32.totalorder 0, %s726
          %s728 = sadd.s32 %s19, %s722
          %s729 = smul.addr %s728, 4
          %s730 = scalar_lea.vmem %s3, %s729
          // Predicated region
          $region37: #{ircnn_forward.11} parent=35 // pred_check
            %p731 = pneg %p727
          $region38: #{ircnn_forward.11} parent=35 // pred_check_branch
            %733 = sbr.rel (%p731) target = $region40
          $region39: #{ircnn_forward.11} parent=35 // pred_region
            // Predicated region
            $region41: #{ircnn_forward.11} parent=39 // pred_check
              _
            $region42: #{ircnn_forward.11} parent=39 // pred_check_branch
              %735 = sbr.rel target = $region44
            $region43: #{ircnn_forward.11} parent=39 // pred_region
              // Predicated region
              $region63: #{ircnn_forward.11} parent=43 // pred_check
                _
              $region64: #{ircnn_forward.11} parent=43 // pred_check_branch
                %804 = sbr.rel (0) target = $region66
              $region65: #{ircnn_forward.11} parent=43 // pred_region
                %s806 = ssub.s32 16, 1
                %s807 = sdiv.u32.pop %s725, 10
                %s808 = srem.u32.pop %s725, 10
                // While loop
                $region67: #{ircnn_forward.11} parent=65 // loop_pre_header
                  _
                $region68: #{ircnn_forward.11} parent=65 // loop_header
                  %s810 = sphi 0, %s812
                  %p811 = scmp.ge.s32.totalorder %s810, %s807
                  %s815 = sphi 0, %s840
                  %s816 = sphi %s718, %s843
                  %s817 = sphi %s730, %s844
                $region69: #{ircnn_forward.11} parent=65 // loop_header_branch
                  %814 = sbr.rel (%p811) target = $region73
                $region70: #{ircnn_forward.11} parent=65 // loop_body
                  %v818 = vld [vmem:[%s816] sm:%s806]
                  %819 = vst [vmem:[%s817] sm:%s806] %v818
                  %v820 = vld [vmem:[%s816 + $0x4] sm:%s806]
                  %821 = vst [vmem:[%s817 + $0x4] sm:%s806] %v820
                  %v822 = vld [vmem:[%s816 + $0x8] sm:%s806]
                  %823 = vst [vmem:[%s817 + $0x8] sm:%s806] %v822
                  %v824 = vld [vmem:[%s816 + $0xc] sm:%s806]
                  %825 = vst [vmem:[%s817 + $0xc] sm:%s806] %v824
                  %v826 = vld [vmem:[%s816 + $0x10] sm:%s806]
                  %827 = vst [vmem:[%s817 + $0x10] sm:%s806] %v826
                  %v828 = vld [vmem:[%s816 + $0x14] sm:%s806]
                  %829 = vst [vmem:[%s817 + $0x14] sm:%s806] %v828
                  %v830 = vld [vmem:[%s816 + $0x18] sm:%s806]
                  %831 = vst [vmem:[%s817 + $0x18] sm:%s806] %v830
                  %v832 = vld [vmem:[%s816 + $0x1c] sm:%s806]
                  %833 = vst [vmem:[%s817 + $0x1c] sm:%s806] %v832
                  %v834 = vld [vmem:[%s816 + $0x20] sm:%s806]
                  %835 = vst [vmem:[%s817 + $0x20] sm:%s806] %v834
                  %v836 = vld [vmem:[%s816 + $0x24] sm:%s806]
                  %837 = vst [vmem:[%s817 + $0x24] sm:%s806] %v836
                  %s838 = sadd.s32 1, %s815
                  %p839 = scmp.ge.s32.totalorder %s838, %s807
                  %s840 = scalar_select %p839, 0, %s838
                  %s841 = smul.u32 %s840, 40
                  %s842 = smul.u32 %s840, 40
                  %s843 = scalar_lea.vmem %s718, %s841 [#allocation2]
                  %s844 = scalar_lea.vmem %s730, %s842
                $region71: #{ircnn_forward.11} parent=65 // loop_footer
                  %s812 = sadd.s32 %s810, 1
                $region72: #{ircnn_forward.11} parent=65 // loop_footer_branch
                  %809 = sbr.rel target = $region68
                $region73: #{ircnn_forward.11} parent=65 // loop_exit
                  _
                %s845 = sdiv.u32.pop %s725, 10
                %s846 = srem.u32.pop %s725, 10
                %s847 = smul.u32 %s845, 10
                %s848 = smul.u32 4, %s847
                %s849 = scalar_lea.vmem %s718, %s848 [#allocation2]
                %s850 = smul.u32 4, %s847
                %s851 = scalar_lea.vmem %s730, %s850
                // While loop
                $region74: #{ircnn_forward.11} parent=65 // loop_pre_header
                  _
                $region75: #{ircnn_forward.11} parent=65 // loop_header
                  %s853 = sphi 0, %s855
                  %p854 = scmp.ge.s32.totalorder %s853, %s846
                  %s858 = sphi 0, %s865
                  %s859 = sphi %s849, %s868
                  %s860 = sphi %s851, %s869
                $region76: #{ircnn_forward.11} parent=65 // loop_header_branch
                  %857 = sbr.rel (%p854) target = $region80
                $region77: #{ircnn_forward.11} parent=65 // loop_body
                  %v861 = vld [vmem:[%s859] sm:%s806]
                  %862 = vst [vmem:[%s860] sm:%s806] %v861
                  %s863 = sadd.s32 1, %s858
                  %p864 = scmp.ge.s32.totalorder %s863, %s846
                  %s865 = scalar_select %p864, 0, %s863
                  %s866 = smul.u32 %s865, 4
                  %s867 = smul.u32 %s865, 4
                  %s868 = scalar_lea.vmem %s849, %s866 [#allocation2]
                  %s869 = scalar_lea.vmem %s851, %s867
                $region78: #{ircnn_forward.11} parent=65 // loop_footer
                  %s855 = sadd.s32 %s853, 1
                $region79: #{ircnn_forward.11} parent=65 // loop_footer_branch
                  %852 = sbr.rel target = $region75
                $region80: #{ircnn_forward.11} parent=65 // loop_exit
                  _
              $region66: #{ircnn_forward.11} parent=43 // pred_fallthru
                _
            $region44: #{ircnn_forward.11} parent=39 // pred_fallthru
              _
            // Predicated region
            $region45: #{ircnn_forward.11} parent=39 // pred_check
              _
            $region46: #{ircnn_forward.11} parent=39 // pred_check_branch
              %737 = sbr.rel (0) target = $region48
            $region47: #{ircnn_forward.11} parent=39 // pred_region
              %s739 = ssub.s32 16, 1
              %s740 = sdiv.u32.pop %s725, 10
              %s741 = srem.u32.pop %s725, 10
              // While loop
              $region49: #{ircnn_forward.11} parent=47 // loop_pre_header
                _
              $region50: #{ircnn_forward.11} parent=47 // loop_header
                %s743 = sphi 0, %s745
                %p744 = scmp.ge.s32.totalorder %s743, %s740
                %s748 = sphi 0, %s773
                %s749 = sphi %s718, %s776
                %s750 = sphi %s730, %s777
              $region51: #{ircnn_forward.11} parent=47 // loop_header_branch
                %747 = sbr.rel (%p744) target = $region55
              $region52: #{ircnn_forward.11} parent=47 // loop_body
                %v751 = vld [vmem:[%s749] sm:%s739]
                %752 = vst [vmem:[%s750] sm:%s739] %v751
                %v753 = vld [vmem:[%s749 + $0x4] sm:%s739]
                %754 = vst [vmem:[%s750 + $0x4] sm:%s739] %v753
                %v755 = vld [vmem:[%s749 + $0x8] sm:%s739]
                %756 = vst [vmem:[%s750 + $0x8] sm:%s739] %v755
                %v757 = vld [vmem:[%s749 + $0xc] sm:%s739]
                %758 = vst [vmem:[%s750 + $0xc] sm:%s739] %v757
                %v759 = vld [vmem:[%s749 + $0x10] sm:%s739]
                %760 = vst [vmem:[%s750 + $0x10] sm:%s739] %v759
                %v761 = vld [vmem:[%s749 + $0x14] sm:%s739]
                %762 = vst [vmem:[%s750 + $0x14] sm:%s739] %v761
                %v763 = vld [vmem:[%s749 + $0x18] sm:%s739]
                %764 = vst [vmem:[%s750 + $0x18] sm:%s739] %v763
                %v765 = vld [vmem:[%s749 + $0x1c] sm:%s739]
                %766 = vst [vmem:[%s750 + $0x1c] sm:%s739] %v765
                %v767 = vld [vmem:[%s749 + $0x20] sm:%s739]
                %768 = vst [vmem:[%s750 + $0x20] sm:%s739] %v767
                %v769 = vld [vmem:[%s749 + $0x24] sm:%s739]
                %770 = vst [vmem:[%s750 + $0x24] sm:%s739] %v769
                %s771 = sadd.s32 1, %s748
                %p772 = scmp.ge.s32.totalorder %s771, %s740
                %s773 = scalar_select %p772, 0, %s771
                %s774 = smul.u32 %s773, 40
                %s775 = smul.u32 %s773, 40
                %s776 = scalar_lea.vmem %s718, %s774 [#allocation2]
                %s777 = scalar_lea.vmem %s730, %s775
              $region53: #{ircnn_forward.11} parent=47 // loop_footer
                %s745 = sadd.s32 %s743, 1
              $region54: #{ircnn_forward.11} parent=47 // loop_footer_branch
                %742 = sbr.rel target = $region50
              $region55: #{ircnn_forward.11} parent=47 // loop_exit
                _
              %s778 = sdiv.u32.pop %s725, 10
              %s779 = srem.u32.pop %s725, 10
              %s780 = smul.u32 %s778, 10
              %s781 = smul.u32 4, %s780
              %s782 = scalar_lea.vmem %s718, %s781 [#allocation2]
              %s783 = smul.u32 4, %s780
              %s784 = scalar_lea.vmem %s730, %s783
              // While loop
              $region56: #{ircnn_forward.11} parent=47 // loop_pre_header
                _
              $region57: #{ircnn_forward.11} parent=47 // loop_header
                %s786 = sphi 0, %s788
                %p787 = scmp.ge.s32.totalorder %s786, %s779
                %s791 = sphi 0, %s798
                %s792 = sphi %s782, %s801
                %s793 = sphi %s784, %s802
              $region58: #{ircnn_forward.11} parent=47 // loop_header_branch
                %790 = sbr.rel (%p787) target = $region62
              $region59: #{ircnn_forward.11} parent=47 // loop_body
                %v794 = vld [vmem:[%s792] sm:%s739]
                %795 = vst [vmem:[%s793] sm:%s739] %v794
                %s796 = sadd.s32 1, %s791
                %p797 = scmp.ge.s32.totalorder %s796, %s779
                %s798 = scalar_select %p797, 0, %s796
                %s799 = smul.u32 %s798, 4
                %s800 = smul.u32 %s798, 4
                %s801 = scalar_lea.vmem %s782, %s799 [#allocation2]
                %s802 = scalar_lea.vmem %s784, %s800
              $region60: #{ircnn_forward.11} parent=47 // loop_footer
                %s788 = sadd.s32 %s786, 1
              $region61: #{ircnn_forward.11} parent=47 // loop_footer_branch
                %785 = sbr.rel target = $region57
              $region62: #{ircnn_forward.11} parent=47 // loop_exit
                _
            $region48: #{ircnn_forward.11} parent=39 // pred_fallthru
              _
          $region40: #{ircnn_forward.11} parent=35 // pred_fallthru
            _
          %870 = vnop
        $region36: #{ircnn_forward.11} parent=31 // pred_fallthru
          _
      $region32: #{ircnn_forward.11} parent=5 // pred_fallthru
        _
      %p871 = scmp.le.s32.totalorder 2, %s9
      // Predicated region
      $region81: #{ircnn_forward.11} parent=5 // pred_check
        %p872 = pneg %p871
      $region82: #{ircnn_forward.11} parent=5 // pred_check_branch
        %874 = sbr.rel (%p872) target = $region84
      $region83: #{ircnn_forward.11} parent=5 // pred_region
        %s875 = ssub.s32 %s9, 2
        // Predicated region
        $region85: #{ircnn_forward.11} parent=83 // pred_check
          %p876 = pneg %p130
        $region86: #{ircnn_forward.11} parent=83 // pred_check_branch
          %878 = sbr.rel (%p876) target = $region88
        $region87: #{ircnn_forward.11} parent=83 // pred_region
          %s879 = sand.u32 %s115, 1
          %s880 = sand.u32 %s115, 1
          %s881 = smul.addr %s880, 40
          %s882 = scalar_lea.vmem [#allocation2], %s881
        $region88: #{ircnn_forward.11} parent=83 // pred_fallthru
          _
      $region84: #{ircnn_forward.11} parent=5 // pred_fallthru
        _
    $region6: #{ircnn_forward.11} parent=1 // loop_footer
      %s13 = sadd.s32 1, %s9
    $region7: #{ircnn_forward.11} parent=1 // loop_footer_branch
      %8 = sbr.rel target = $region3
    $region8: #{ircnn_forward.11} parent=1 // loop_exit
      _

// kernel: ircnn_forward.12
$region0: #{ircnn_forward.12}
  #allocation0 [shape = 'u32[]', space=smem, size = 0x4, offset = 0x4, fixed_abs, tag = 'smem constant byte address 0x4 - core index']
  #allocation1 [shape = 'u32[144,128]{1,0:T(1,128)}', space=vmem, size = 0x12000, scoped, tag = 'internal scratch']
  %s0 = inlined_call_operand.vmem [shape: bf16[54,576], index: 0, kind: input, shape index: {}]
  %s1 = inlined_call_operand.vmem [shape: bf16[576,64], index: 1, kind: input, shape index: {}]
  %s2 = inlined_call_operand.vmem [shape: f32[1,64], index: 2, kind: input, shape index: {}]
  %s3 = inlined_call_operand.vmem [shape: bf16[54,64], index: 3, kind: output, shape index: {}]
  %s4 = sld [smem:[#allocation0]]
  $region22: #{ircnn_forward.12} parent=0
    _
  %s6 = ssub.s32 1, %s4
  %s7 = scalar_select 0, %s6, %s4
  // Predicated region
  $region2: #{ircnn_forward.12} parent=0 // pred_check
    _
  $region3: #{ircnn_forward.12} parent=0 // pred_check_branch
    %9 = sbr.rel (0) target = $region5
  $region4: #{ircnn_forward.12} parent=0 // pred_region
    _
  $region5: #{ircnn_forward.12} parent=0 // pred_fallthru
    _
  // Predicated region
  $region6: #{ircnn_forward.12} parent=0 // pred_check
    _
  $region7: #{ircnn_forward.12} parent=0 // pred_check_branch
    %11 = sbr.rel (0) target = $region9
  $region8: #{ircnn_forward.12} parent=0 // pred_region
    _
  $region9: #{ircnn_forward.12} parent=0 // pred_fallthru
    _
  // Predicated region
  $region10: #{ircnn_forward.12} parent=0 // pred_check
    _
  $region11: #{ircnn_forward.12} parent=0 // pred_check_branch
    %13 = sbr.rel (0) target = $region13
  $region12: #{ircnn_forward.12} parent=0 // pred_region
    _
  $region13: #{ircnn_forward.12} parent=0 // pred_fallthru
    _
  %v15 = vld [vmem:[%s0] sm:$0xff]
  %v16 = vld [vmem:[%s0 + $0x8] sm:$0xff]
  %v17 = vld [vmem:[%s0 + $0x10] sm:$0xf]
  %v18 = vld [vmem:[%s0 + $0x14] sm:$0xff]
  %v19 = vld [vmem:[%s0 + $0x1c] sm:$0xff]
  %v20 = vld [vmem:[%s0 + $0x24] sm:$0xf]
  %v21 = vld [vmem:[%s0 + $0x28] sm:$0xff]
  %v22 = vld [vmem:[%s0 + $0x30] sm:$0xff]
  %v23 = vld [vmem:[%s0 + $0x38] sm:$0xf]
  %v24 = vld [vmem:[%s0 + $0x3c] sm:$0xff]
  %v25 = vld [vmem:[%s0 + $0x44] sm:$0xff]
  %v26 = vld [vmem:[%s0 + $0x4c] sm:$0xf]
  %v27 = vld [vmem:[%s0 + $0x50] sm:$0xff]
  %v28 = vld [vmem:[%s0 + $0x58] sm:$0xff]
  %v29 = vld [vmem:[%s0 + $0x60] sm:$0xf]
  %v30 = vld [vmem:[%s0 + $0x64] sm:$0xff]
  %v31 = vld [vmem:[%s0 + $0x6c] sm:$0xff]
  %v32 = vld [vmem:[%s0 + $0x74] sm:$0xf]
  %v33 = vld [vmem:[%s0 + $0x78] sm:$0x77]
  %v34 = vld [vmem:[%s0 + $0x80] sm:$0x77]
  %v35 = vld [vmem:[%s0 + $0x88] sm:$0x7]
  %v36 = vld [vmem:[%s1] sm:$0xf]
  %v37 = vld [vmem:[%s1 + $0x4] sm:$0xf]
  %v38 = vld [vmem:[%s1 + $0x8] sm:$0xf]
  %v39 = vld [vmem:[%s1 + $0xc] sm:$0xf]
  %v40 = vld [vmem:[%s1 + $0x10] sm:$0xf]
  %v41 = vld [vmem:[%s1 + $0x14] sm:$0xf]
  %v42 = vld [vmem:[%s1 + $0x18] sm:$0xf]
  %v43 = vld [vmem:[%s1 + $0x1c] sm:$0xf]
  %v44 = vld [vmem:[%s1 + $0x20] sm:$0xf]
  %v45 = vld [vmem:[%s1 + $0x24] sm:$0xf]
  %v46 = vld [vmem:[%s1 + $0x28] sm:$0xf]
  %v47 = vld [vmem:[%s1 + $0x2c] sm:$0xf]
  %v48 = vld [vmem:[%s1 + $0x30] sm:$0xf]
  %v49 = vld [vmem:[%s1 + $0x34] sm:$0xf]
  %v50 = vld [vmem:[%s1 + $0x38] sm:$0xf]
  %v51 = vld [vmem:[%s1 + $0x3c] sm:$0xf]
  %v52 = vld [vmem:[%s1 + $0x40] sm:$0xf]
  %v53 = vld [vmem:[%s1 + $0x44] sm:$0xf]
  %v54 = vld [vmem:[%s1 + $0x48] sm:$0xf]
  %v55 = vld [vmem:[%s1 + $0x4c] sm:$0xf]
  %v56 = vld [vmem:[%s1 + $0x50] sm:$0xf]
  %v57 = vld [vmem:[%s1 + $0x54] sm:$0xf]
  %v58 = vld [vmem:[%s1 + $0x58] sm:$0xf]
  %v59 = vld [vmem:[%s1 + $0x5c] sm:$0xf]
  %v60 = vld [vmem:[%s1 + $0x60] sm:$0xf]
  %v61 = vld [vmem:[%s1 + $0x64] sm:$0xf]
  %v62 = vld [vmem:[%s1 + $0x68] sm:$0xf]
  %v63 = vld [vmem:[%s1 + $0x6c] sm:$0xf]
  %v64 = vld [vmem:[%s1 + $0x70] sm:$0xf]
  %v65 = vld [vmem:[%s1 + $0x74] sm:$0xf]
  %v66 = vld [vmem:[%s1 + $0x78] sm:$0xf]
  %v67 = vld [vmem:[%s1 + $0x7c] sm:$0xf]
  %v68 = vld [vmem:[%s1 + $0x80] sm:$0xf]
  %v69 = vld [vmem:[%s1 + $0x84] sm:$0xf]
  %v70 = vld [vmem:[%s1 + $0x88] sm:$0xf]
  %v71 = vld [vmem:[%s1 + $0x8c] sm:$0xf]
  %v72 = vld [vmem:[%s1 + $0x90] sm:$0xf]
  %v73 = vld [vmem:[%s1 + $0x94] sm:$0xf]
  %v74 = vld [vmem:[%s1 + $0x98] sm:$0xf]
  %v75 = vld [vmem:[%s1 + $0x9c] sm:$0xf]
  %v76 = vld [vmem:[%s1 + $0xa0] sm:$0xf]
  %v77 = vld [vmem:[%s1 + $0xa4] sm:$0xf]
  %v78 = vld [vmem:[%s1 + $0xa8] sm:$0xf]
  %v79 = vld [vmem:[%s1 + $0xac] sm:$0xf]
  %v80 = vld [vmem:[%s1 + $0xb0] sm:$0xf]
  %v81 = vld [vmem:[%s1 + $0xb4] sm:$0xf]
  %v82 = vld [vmem:[%s1 + $0xb8] sm:$0xf]
  %v83 = vld [vmem:[%s1 + $0xbc] sm:$0xf]
  %v84 = vld [vmem:[%s1 + $0xc0] sm:$0xf]
  %v85 = vld [vmem:[%s1 + $0xc4] sm:$0xf]
  %v86 = vld [vmem:[%s1 + $0xc8] sm:$0xf]
  %v87 = vld [vmem:[%s1 + $0xcc] sm:$0xf]
  %v88 = vld [vmem:[%s1 + $0xd0] sm:$0xf]
  %v89 = vld [vmem:[%s1 + $0xd4] sm:$0xf]
  %v90 = vld [vmem:[%s1 + $0xd8] sm:$0xf]
  %v91 = vld [vmem:[%s1 + $0xdc] sm:$0xf]
  %v92 = vld [vmem:[%s1 + $0xe0] sm:$0xf]
  %v93 = vld [vmem:[%s1 + $0xe4] sm:$0xf]
  %v94 = vld [vmem:[%s1 + $0xe8] sm:$0xf]
  %v95 = vld [vmem:[%s1 + $0xec] sm:$0xf]
  %v96 = vld [vmem:[%s1 + $0xf0] sm:$0xf]
  %v97 = vld [vmem:[%s1 + $0xf4] sm:$0xf]
  %v98 = vld [vmem:[%s1 + $0xf8] sm:$0xf]
  %v99 = vld [vmem:[%s1 + $0xfc] sm:$0xf]
  %v100 = vld [vmem:[%s1 + $0x100] sm:$0xf]
  %v101 = vld [vmem:[%s1 + $0x104] sm:$0xf]
  %v102 = vld [vmem:[%s1 + $0x108] sm:$0xf]
  %v103 = vld [vmem:[%s1 + $0x10c] sm:$0xf]
  %v104 = vld [vmem:[%s1 + $0x110] sm:$0xf]
  %v105 = vld [vmem:[%s1 + $0x114] sm:$0xf]
  %v106 = vld [vmem:[%s1 + $0x118] sm:$0xf]
  %v107 = vld [vmem:[%s1 + $0x11c] sm:$0xf]
  %v108 = vld [vmem:[%s2] sm:$0x1]
  %v110 = vlaneseq
  %v111 = vshrl.u32 %v110, 7
  %v112 = vsub.s32 0, %v111
  %v113 = vrot.slane %v108, %v112
  %v136 = vunpack.c.l.b16 %v15
  %v137 = vunpack.c.h.b16 %v15
  %v138 = vunpack.c.l.b16 %v16
  %v139 = vunpack.c.h.b16 %v16
  %v140 = vunpack.c.l.b16 %v17
  %v141 = vunpack.c.l.b16 %v18
  %v142 = vunpack.c.h.b16 %v18
  %v143 = vunpack.c.l.b16 %v19
  %v144 = vunpack.c.h.b16 %v19
  %v145 = vunpack.c.l.b16 %v20
  %v146 = vunpack.c.l.b16 %v21
  %v147 = vunpack.c.h.b16 %v21
  %v148 = vunpack.c.l.b16 %v22
  %v149 = vunpack.c.h.b16 %v22
  %v150 = vunpack.c.l.b16 %v23
  %v151 = vunpack.c.l.b16 %v24
  %v152 = vunpack.c.h.b16 %v24
  %v153 = vunpack.c.l.b16 %v25
  %v154 = vunpack.c.h.b16 %v25
  %v155 = vunpack.c.l.b16 %v26
  %v156 = vunpack.c.l.b16 %v27
  %v157 = vunpack.c.h.b16 %v27
  %v158 = vunpack.c.l.b16 %v28
  %v159 = vunpack.c.h.b16 %v28
  %v160 = vunpack.c.l.b16 %v29
  %v161 = vunpack.c.l.b16 %v30
  %v162 = vunpack.c.h.b16 %v30
  %v163 = vunpack.c.l.b16 %v31
  %v164 = vunpack.c.h.b16 %v31
  %v165 = vunpack.c.l.b16 %v32
  %v166 = vunpack.c.l.b16 %v33
  %v167 = vunpack.c.h.b16 %v33
  %v168 = vunpack.c.l.b16 %v34
  %v169 = vunpack.c.h.b16 %v34
  %v170 = vunpack.c.l.b16 %v35
  %v171 = vpack.c.b16 %v141, %v136
  %v172 = vpack.c.b16 %v142, %v137
  %v173 = vpack.c.b16 %v143, %v138
  %v174 = vpack.c.b16 %v144, %v139
  %v175 = vpack.c.b16 %v145, %v140
  %v176 = vpack.c.b16 %v151, %v146
  %v177 = vpack.c.b16 %v152, %v147
  %v178 = vpack.c.b16 %v153, %v148
  %v179 = vpack.c.b16 %v154, %v149
  %v180 = vpack.c.b16 %v155, %v150
  %v181 = vpack.c.b16 %v161, %v156
  %v182 = vpack.c.b16 %v162, %v157
  %v183 = vpack.c.b16 %v163, %v158
  %v184 = vpack.c.b16 %v164, %v159
  %v185 = vpack.c.b16 %v165, %v160
  %v186 = vpack.c.b16 %v166, %v166
  %v187 = vpack.c.b16 %v167, %v167
  %v188 = vpack.c.b16 %v168, %v168
  %v189 = vpack.c.b16 %v169, %v169
  %v190 = vpack.c.b16 %v170, %v170
  %v279 = vunpack.c.l.b16 %v36
  %v280 = vunpack.c.l.b16 %v37
  %v281 = vunpack.c.l.b16 %v38
  %v282 = vunpack.c.l.b16 %v39
  %v283 = vunpack.c.l.b16 %v40
  %v284 = vunpack.c.l.b16 %v41
  %v285 = vunpack.c.l.b16 %v42
  %v286 = vunpack.c.l.b16 %v43
  %v287 = vunpack.c.l.b16 %v44
  %v288 = vunpack.c.l.b16 %v45
  %v289 = vunpack.c.l.b16 %v46
  %v290 = vunpack.c.l.b16 %v47
  %v291 = vunpack.c.l.b16 %v48
  %v292 = vunpack.c.l.b16 %v49
  %v293 = vunpack.c.l.b16 %v50
  %v294 = vunpack.c.l.b16 %v51
  %v295 = vunpack.c.l.b16 %v52
  %v296 = vunpack.c.l.b16 %v53
  %v297 = vunpack.c.l.b16 %v54
  %v298 = vunpack.c.l.b16 %v55
  %v299 = vunpack.c.l.b16 %v56
  %v300 = vunpack.c.l.b16 %v57
  %v301 = vunpack.c.l.b16 %v58
  %v302 = vunpack.c.l.b16 %v59
  %v303 = vunpack.c.l.b16 %v60
  %v304 = vunpack.c.l.b16 %v61
  %v305 = vunpack.c.l.b16 %v62
  %v306 = vunpack.c.l.b16 %v63
  %v307 = vunpack.c.l.b16 %v64
  %v308 = vunpack.c.l.b16 %v65
  %v309 = vunpack.c.l.b16 %v66
  %v310 = vunpack.c.l.b16 %v67
  %v311 = vunpack.c.l.b16 %v68
  %v312 = vunpack.c.l.b16 %v69
  %v313 = vunpack.c.l.b16 %v70
  %v314 = vunpack.c.l.b16 %v71
  %v315 = vunpack.c.l.b16 %v72
  %v316 = vunpack.c.l.b16 %v73
  %v317 = vunpack.c.l.b16 %v74
  %v318 = vunpack.c.l.b16 %v75
  %v319 = vunpack.c.l.b16 %v76
  %v320 = vunpack.c.l.b16 %v77
  %v321 = vunpack.c.l.b16 %v78
  %v322 = vunpack.c.l.b16 %v79
  %v323 = vunpack.c.l.b16 %v80
  %v324 = vunpack.c.l.b16 %v81
  %v325 = vunpack.c.l.b16 %v82
  %v326 = vunpack.c.l.b16 %v83
  %v327 = vunpack.c.l.b16 %v84
  %v328 = vunpack.c.l.b16 %v85
  %v329 = vunpack.c.l.b16 %v86
  %v330 = vunpack.c.l.b16 %v87
  %v331 = vunpack.c.l.b16 %v88
  %v332 = vunpack.c.l.b16 %v89
  %v333 = vunpack.c.l.b16 %v90
  %v334 = vunpack.c.l.b16 %v91
  %v335 = vunpack.c.l.b16 %v92
  %v336 = vunpack.c.l.b16 %v93
  %v337 = vunpack.c.l.b16 %v94
  %v338 = vunpack.c.l.b16 %v95
  %v339 = vunpack.c.l.b16 %v96
  %v340 = vunpack.c.l.b16 %v97
  %v341 = vunpack.c.l.b16 %v98
  %v342 = vunpack.c.l.b16 %v99
  %v343 = vunpack.c.l.b16 %v100
  %v344 = vunpack.c.l.b16 %v101
  %v345 = vunpack.c.l.b16 %v102
  %v346 = vunpack.c.l.b16 %v103
  %v347 = vunpack.c.l.b16 %v104
  %v348 = vunpack.c.l.b16 %v105
  %v349 = vunpack.c.l.b16 %v106
  %v350 = vunpack.c.l.b16 %v107
  %v351 = vpack.c.b16 %v280, %v279
  %v352 = vpack.c.b16 %v282, %v281
  %v353 = vpack.c.b16 %v284, %v283
  %v354 = vpack.c.b16 %v286, %v285
  %v355 = vpack.c.b16 %v288, %v287
  %v356 = vpack.c.b16 %v290, %v289
  %v357 = vpack.c.b16 %v292, %v291
  %v358 = vpack.c.b16 %v294, %v293
  %v359 = vpack.c.b16 %v296, %v295
  %v360 = vpack.c.b16 %v298, %v297
  %v361 = vpack.c.b16 %v300, %v299
  %v362 = vpack.c.b16 %v302, %v301
  %v363 = vpack.c.b16 %v304, %v303
  %v364 = vpack.c.b16 %v306, %v305
  %v365 = vpack.c.b16 %v308, %v307
  %v366 = vpack.c.b16 %v310, %v309
  %v367 = vpack.c.b16 %v312, %v311
  %v368 = vpack.c.b16 %v314, %v313
  %v369 = vpack.c.b16 %v316, %v315
  %v370 = vpack.c.b16 %v318, %v317
  %v371 = vpack.c.b16 %v320, %v319
  %v372 = vpack.c.b16 %v322, %v321
  %v373 = vpack.c.b16 %v324, %v323
  %v374 = vpack.c.b16 %v326, %v325
  %v375 = vpack.c.b16 %v328, %v327
  %v376 = vpack.c.b16 %v330, %v329
  %v377 = vpack.c.b16 %v332, %v331
  %v378 = vpack.c.b16 %v334, %v333
  %v379 = vpack.c.b16 %v336, %v335
  %v380 = vpack.c.b16 %v338, %v337
  %v381 = vpack.c.b16 %v340, %v339
  %v382 = vpack.c.b16 %v342, %v341
  %v383 = vpack.c.b16 %v344, %v343
  %v384 = vpack.c.b16 %v346, %v345
  %v385 = vpack.c.b16 %v348, %v347
  %v386 = vpack.c.b16 %v350, %v349
  %vm423 = vcmask 523264
  %v425 = vsel %vm423, %v175, 0
  %v428 = vsel %vm423, %v180, 0
  %v431 = vsel %vm423, %v185, 0
  %v434 = vsel %vm423, %v190, 0
  %436 = vmatprep.subr.bf16.mxu0 0
  %437 = vmatpush1.bf16.msra.mxu0 %v358
  %438 = vmatprep.subr.bf16.mxu0 0
  %439 = vmatpush1.bf16.msra.mxu0 %v357
  %440 = vmatprep.subr.bf16.mxu0 0
  %441 = vmatpush1.bf16.msra.mxu0 %v356
  %442 = vmatprep.subr.bf16.mxu0 0
  %443 = vmatpush1.bf16.msra.mxu0 %v355
  %444 = vmatprep.subr.bf16.mxu0 0
  %445 = vmatpush1.bf16.msra.mxu0 %v354
  %446 = vmatprep.subr.bf16.mxu0 0
  %447 = vmatpush1.bf16.msra.mxu0 %v353
  %448 = vmatprep.subr.bf16.mxu0 0
  %449 = vmatpush1.bf16.msra.mxu0 %v352
  %450 = vmatprep.subr.bf16.mxu0 0
  %451 = vmatpush1.bf16.msra.mxu0 %v351
  %452 = vmatprep.subr.bf16.mxu0 0
  %453 = vmatpush2.bf16.msra.mxu0 %v366
  %454 = vmatprep.subr.bf16.mxu0 0
  %455 = vmatpush2.bf16.msra.mxu0 %v365
  %456 = vmatprep.subr.bf16.mxu0 0
  %457 = vmatpush2.bf16.msra.mxu0 %v364
  %458 = vmatprep.subr.bf16.mxu0 0
  %459 = vmatpush2.bf16.msra.mxu0 %v363
  %460 = vmatprep.subr.bf16.mxu0 0
  %461 = vmatpush2.bf16.msra.mxu0 %v362
  %462 = vmatprep.subr.bf16.mxu0 0
  %463 = vmatpush2.bf16.msra.mxu0 %v361
  %464 = vmatprep.subr.bf16.mxu0 0
  %465 = vmatpush2.bf16.msra.mxu0 %v360
  %466 = vmatprep.subr.bf16.mxu0 0
  %467 = vmatpush2.bf16.msra.mxu0 %v359
  %468 = vmatprep.mubr.bf16.mxu0 %v172
  %469 = vmatmul.mubr.bf16.gmra.mxu0 %v171
  %v470 = vpop.f32.mrf.mxu0
  %v471 = vadd.f32 %v113, %v470
  %v472 = vpop.f32.mrf.mxu0
  %v473 = vpop.f32.mrf.mxu0
  %v474 = vadd.f32 %v113, %v473
  %v475 = vpop.f32.mrf.mxu0
  %476 = vmatprep.mubr.bf16.mxu0 %v177
  %477 = vmatmul.mubr.bf16.gmra.mxu0 %v176
  %v478 = vpop.f32.mrf.mxu0
  %v479 = vadd.f32 %v113, %v478
  %v480 = vpop.f32.mrf.mxu0
  %v481 = vpop.f32.mrf.mxu0
  %v482 = vadd.f32 %v113, %v481
  %v483 = vpop.f32.mrf.mxu0
  %484 = vmatprep.mubr.bf16.mxu0 %v182
  %485 = vmatmul.mubr.bf16.gmra.mxu0 %v181
  %v486 = vpop.f32.mrf.mxu0
  %v487 = vadd.f32 %v113, %v486
  %v488 = vpop.f32.mrf.mxu0
  %v489 = vpop.f32.mrf.mxu0
  %v490 = vadd.f32 %v113, %v489
  %v491 = vpop.f32.mrf.mxu0
  %492 = vmatprep.mubr.bf16.mxu0 %v187
  %493 = vmatmul.mubr.bf16.gmra.mxu0 %v186
  %v494 = vpop.f32.mrf.mxu0
  %v495 = vadd.f32 %v113, %v494
  %v496 = vpop.f32.mrf.mxu0
  %v497 = vpop.f32.mrf.mxu0
  %v498 = vpop.f32.mrf.mxu0
  %499 = vdwg.mxu0
  %500 = vmatprep.subr.bf16.mxu0 0
  %501 = vmatpush1.bf16.msra.mxu0 %v374
  %502 = vmatprep.subr.bf16.mxu0 0
  %503 = vmatpush1.bf16.msra.mxu0 %v373
  %504 = vmatprep.subr.bf16.mxu0 0
  %505 = vmatpush1.bf16.msra.mxu0 %v372
  %506 = vmatprep.subr.bf16.mxu0 0
  %507 = vmatpush1.bf16.msra.mxu0 %v371
  %508 = vmatprep.subr.bf16.mxu0 0
  %509 = vmatpush1.bf16.msra.mxu0 %v370
  %510 = vmatprep.subr.bf16.mxu0 0
  %511 = vmatpush1.bf16.msra.mxu0 %v369
  %512 = vmatprep.subr.bf16.mxu0 0
  %513 = vmatpush1.bf16.msra.mxu0 %v368
  %514 = vmatprep.subr.bf16.mxu0 0
  %515 = vmatpush1.bf16.msra.mxu0 %v367
  %516 = vmatprep.subr.bf16.mxu0 0
  %517 = vmatpush2.bf16.msra.mxu0 %v382
  %518 = vmatprep.subr.bf16.mxu0 0
  %519 = vmatpush2.bf16.msra.mxu0 %v381
  %520 = vmatprep.subr.bf16.mxu0 0
  %521 = vmatpush2.bf16.msra.mxu0 %v380
  %522 = vmatprep.subr.bf16.mxu0 0
  %523 = vmatpush2.bf16.msra.mxu0 %v379
  %524 = vmatprep.subr.bf16.mxu0 0
  %525 = vmatpush2.bf16.msra.mxu0 %v378
  %526 = vmatprep.subr.bf16.mxu0 0
  %527 = vmatpush2.bf16.msra.mxu0 %v377
  %528 = vmatprep.subr.bf16.mxu0 0
  %529 = vmatpush2.bf16.msra.mxu0 %v376
  %530 = vmatprep.subr.bf16.mxu0 0
  %531 = vmatpush2.bf16.msra.mxu0 %v375
  %532 = vmatprep.mubr.bf16.mxu0 %v174
  %533 = vmatmul.mubr.bf16.gmra.mxu0 %v173
  %v534 = vpop.f32.mrf.mxu0
  %v535 = vadd.f32 %v471, %v534
  %v536 = vpop.f32.mrf.mxu0
  %v537 = vpop.f32.mrf.mxu0
  %v538 = vadd.f32 %v474, %v537
  %v539 = vpop.f32.mrf.mxu0
  %540 = vmatprep.mubr.bf16.mxu0 %v179
  %541 = vmatmul.mubr.bf16.gmra.mxu0 %v178
  %v542 = vpop.f32.mrf.mxu0
  %v543 = vadd.f32 %v479, %v542
  %v544 = vpop.f32.mrf.mxu0
  %v545 = vpop.f32.mrf.mxu0
  %v546 = vadd.f32 %v482, %v545
  %v547 = vpop.f32.mrf.mxu0
  %548 = vmatprep.mubr.bf16.mxu0 %v184
  %549 = vmatmul.mubr.bf16.gmra.mxu0 %v183
  %v550 = vpop.f32.mrf.mxu0
  %v551 = vadd.f32 %v487, %v550
  %v552 = vpop.f32.mrf.mxu0
  %v553 = vpop.f32.mrf.mxu0
  %v554 = vadd.f32 %v490, %v553
  %v555 = vpop.f32.mrf.mxu0
  %556 = vmatprep.mubr.bf16.mxu0 %v189
  %557 = vmatmul.mubr.bf16.gmra.mxu0 %v188
  %v558 = vpop.f32.mrf.mxu0
  %v559 = vadd.f32 %v495, %v558
  %v560 = vpop.f32.mrf.mxu0
  %v561 = vpop.f32.mrf.mxu0
  %v562 = vpop.f32.mrf.mxu0
  %563 = vdwg.mxu0
  %564 = vmatprep.subr.bf16.mxu0 0
  %565 = vmatpush1.bf16.msra.mxu0 0
  %566 = vmatprep.subr.bf16.mxu0 0
  %567 = vmatpush1.bf16.msra.mxu0 0
  %568 = vmatprep.subr.bf16.mxu0 0
  %569 = vmatpush1.bf16.msra.mxu0 0
  %570 = vmatprep.subr.bf16.mxu0 0
  %571 = vmatpush1.bf16.msra.mxu0 0
  %572 = vmatprep.subr.bf16.mxu0 0
  %573 = vmatpush1.bf16.msra.mxu0 %v386
  %574 = vmatprep.subr.bf16.mxu0 0
  %575 = vmatpush1.bf16.msra.mxu0 %v385
  %576 = vmatprep.subr.bf16.mxu0 0
  %577 = vmatpush1.bf16.msra.mxu0 %v384
  %578 = vmatprep.subr.bf16.mxu0 0
  %579 = vmatpush1.bf16.msra.mxu0 %v383
  %580 = vmatprep.subr.bf16.mxu0 0
  %581 = vmatpush2.bf16.msra.mxu0 0
  %582 = vmatprep.subr.bf16.mxu0 0
  %583 = vmatpush2.bf16.msra.mxu0 0
  %584 = vmatprep.subr.bf16.mxu0 0
  %585 = vmatpush2.bf16.msra.mxu0 0
  %586 = vmatprep.subr.bf16.mxu0 0
  %587 = vmatpush2.bf16.msra.mxu0 0
  %588 = vmatprep.subr.bf16.mxu0 0
  %589 = vmatpush2.bf16.msra.mxu0 0
  %590 = vmatprep.subr.bf16.mxu0 0
  %591 = vmatpush2.bf16.msra.mxu0 0
  %592 = vmatprep.subr.bf16.mxu0 0
  %593 = vmatpush2.bf16.msra.mxu0 0
  %594 = vmatprep.subr.bf16.mxu0 0
  %595 = vmatpush2.bf16.msra.mxu0 0
  %596 = vmatprep.mubr.bf16.mxu0 0
  %597 = vmatmul.mubr.bf16.gmra.mxu0 %v425
  %v598 = vpop.f32.mrf.mxu0
  %v599 = vadd.f32 %v535, %v598
  %v600 = vpop.f32.mrf.mxu0
  %v601 = vpop.f32.mrf.mxu0
  %v602 = vadd.f32 %v538, %v601
  %v603 = vpop.f32.mrf.mxu0
  %604 = vmatprep.mubr.bf16.mxu0 0
  %605 = vmatmul.mubr.bf16.gmra.mxu0 %v428
  %v606 = vpop.f32.mrf.mxu0
  %v607 = vadd.f32 %v543, %v606
  %v608 = vpop.f32.mrf.mxu0
  %v609 = vpop.f32.mrf.mxu0
  %v610 = vadd.f32 %v546, %v609
  %v611 = vpop.f32.mrf.mxu0
  %612 = vmatprep.mubr.bf16.mxu0 0
  %613 = vmatmul.mubr.bf16.gmra.mxu0 %v431
  %v614 = vpop.f32.mrf.mxu0
  %v615 = vadd.f32 %v551, %v614
  %v616 = vpop.f32.mrf.mxu0
  %v617 = vpop.f32.mrf.mxu0
  %v618 = vadd.f32 %v554, %v617
  %v619 = vpop.f32.mrf.mxu0
  %620 = vmatprep.mubr.bf16.mxu0 0
  %621 = vmatmul.mubr.bf16.gmra.mxu0 %v434
  %v622 = vpop.f32.mrf.mxu0
  %v623 = vadd.f32 %v559, %v622
  %v624 = vpop.f32.mrf.mxu0
  %v625 = vpop.f32.mrf.mxu0
  %v626 = vpop.f32.mrf.mxu0
  %627 = vdwg.mxu0
  %v628 = vmax.f32 %v599, 0.0
  %v629 = vmax.f32 %v602, 0.0
  %v630 = vmax.f32 %v607, 0.0
  %v631 = vmax.f32 %v610, 0.0
  %v632 = vmax.f32 %v615, 0.0
  %v633 = vmax.f32 %v618, 0.0
  %v634 = vmax.f32 %v623, 0.0
  %v635 = vpack.c.bf16 %v629, %v628
  %v636 = vpack.c.bf16 %v631, %v630
  %v637 = vpack.c.bf16 %v633, %v632
  %v638 = vpack.c.bf16 %v634, %v634
  %v643 = vunpack.c.l.b16 %v635
  %v644 = vunpack.c.h.b16 %v635
  %v645 = vunpack.c.l.b16 %v636
  %v646 = vunpack.c.h.b16 %v636
  %v647 = vunpack.c.l.b16 %v637
  %v648 = vunpack.c.h.b16 %v637
  %v649 = vunpack.c.l.b16 %v638
  %v650 = vpack.c.b16 %v643, %v643
  %v651 = vpack.c.b16 %v644, %v644
  %v652 = vpack.c.b16 %v645, %v645
  %v653 = vpack.c.b16 %v646, %v646
  %v654 = vpack.c.b16 %v647, %v647
  %v655 = vpack.c.b16 %v648, %v648
  %v656 = vpack.c.b16 %v649, %v649
  %vm664 = vcmask 519168
  %665 = vst.msk [vmem:[%s3] sm:$0xf] %vm664, %v650
  %666 = vst.msk [vmem:[%s3 + $0x4] sm:$0xf] %vm664, %v651
  %667 = vst.msk [vmem:[%s3 + $0x8] sm:$0xf] %vm664, %v652
  %668 = vst.msk [vmem:[%s3 + $0xc] sm:$0xf] %vm664, %v653
  %669 = vst.msk [vmem:[%s3 + $0x10] sm:$0xf] %vm664, %v654
  %670 = vst.msk [vmem:[%s3 + $0x14] sm:$0xf] %vm664, %v655
  %vm671 = vcmask 518144
  %672 = vst.msk [vmem:[%s3 + $0x18] sm:$0x7] %vm671, %v656
  // Predicated region
  $region14: #{ircnn_forward.12} parent=0 // pred_check
    _
  $region15: #{ircnn_forward.12} parent=0 // pred_check_branch
    %674 = sbr.rel (0) target = $region17
  $region16: #{ircnn_forward.12} parent=0 // pred_region
    _
  $region17: #{ircnn_forward.12} parent=0 // pred_fallthru
    _
  // Predicated region
  $region18: #{ircnn_forward.12} parent=0 // pred_check
    _
  $region19: #{ircnn_forward.12} parent=0 // pred_check_branch
    %676 = sbr.rel (0) target = $region21
  $region20: #{ircnn_forward.12} parent=0 // pred_region
    _
  $region21: #{ircnn_forward.12} parent=0 // pred_fallthru
    _

// kernel: ircnn_forward.13
$region0: #{ircnn_forward.13}
  #allocation0 [shape = 'u32[]', space=smem, size = 0x4, offset = 0x4, fixed_abs, tag = 'smem constant byte address 0x4 - core index']
  #allocation1 [shape = 'u32[144,128]{1,0:T(1,128)}', space=vmem, size = 0x12000, scoped, tag = 'internal scratch']
  %s0 = inlined_call_operand.vmem [shape: bf16[6,576], index: 0, kind: input, shape index: {}]
  %s1 = inlined_call_operand.vmem [shape: bf16[576,64], index: 1, kind: input, shape index: {}]
  %s2 = inlined_call_operand.vmem [shape: f32[1,64], index: 2, kind: input, shape index: {}]
  %s3 = inlined_call_operand.vmem [shape: bf16[6,64], index: 3, kind: output, shape index: {}]
  %s4 = sld [smem:[#allocation0]]
  $region22: #{ircnn_forward.13} parent=0
    _
  %s6 = ssub.s32 1, %s4
  %s7 = scalar_select 0, %s6, %s4
  // Predicated region
  $region2: #{ircnn_forward.13} parent=0 // pred_check
    _
  $region3: #{ircnn_forward.13} parent=0 // pred_check_branch
    %9 = sbr.rel (0) target = $region5
  $region4: #{ircnn_forward.13} parent=0 // pred_region
    _
  $region5: #{ircnn_forward.13} parent=0 // pred_fallthru
    _
  // Predicated region
  $region6: #{ircnn_forward.13} parent=0 // pred_check
    _
  $region7: #{ircnn_forward.13} parent=0 // pred_check_branch
    %11 = sbr.rel (0) target = $region9
  $region8: #{ircnn_forward.13} parent=0 // pred_region
    _
  $region9: #{ircnn_forward.13} parent=0 // pred_fallthru
    _
  // Predicated region
  $region10: #{ircnn_forward.13} parent=0 // pred_check
    _
  $region11: #{ircnn_forward.13} parent=0 // pred_check_branch
    %13 = sbr.rel (0) target = $region13
  $region12: #{ircnn_forward.13} parent=0 // pred_region
    _
  $region13: #{ircnn_forward.13} parent=0 // pred_fallthru
    _
  %v15 = vld [vmem:[%s0] sm:$0x77]
  %v16 = vld [vmem:[%s0 + $0x8] sm:$0x77]
  %v17 = vld [vmem:[%s0 + $0x10] sm:$0x7]
  %v18 = vld [vmem:[%s1] sm:$0xf]
  %v19 = vld [vmem:[%s1 + $0x4] sm:$0xf]
  %v20 = vld [vmem:[%s1 + $0x8] sm:$0xf]
  %v21 = vld [vmem:[%s1 + $0xc] sm:$0xf]
  %v22 = vld [vmem:[%s1 + $0x10] sm:$0xf]
  %v23 = vld [vmem:[%s1 + $0x14] sm:$0xf]
  %v24 = vld [vmem:[%s1 + $0x18] sm:$0xf]
  %v25 = vld [vmem:[%s1 + $0x1c] sm:$0xf]
  %v26 = vld [vmem:[%s1 + $0x20] sm:$0xf]
  %v27 = vld [vmem:[%s1 + $0x24] sm:$0xf]
  %v28 = vld [vmem:[%s1 + $0x28] sm:$0xf]
  %v29 = vld [vmem:[%s1 + $0x2c] sm:$0xf]
  %v30 = vld [vmem:[%s1 + $0x30] sm:$0xf]
  %v31 = vld [vmem:[%s1 + $0x34] sm:$0xf]
  %v32 = vld [vmem:[%s1 + $0x38] sm:$0xf]
  %v33 = vld [vmem:[%s1 + $0x3c] sm:$0xf]
  %v34 = vld [vmem:[%s1 + $0x40] sm:$0xf]
  %v35 = vld [vmem:[%s1 + $0x44] sm:$0xf]
  %v36 = vld [vmem:[%s1 + $0x48] sm:$0xf]
  %v37 = vld [vmem:[%s1 + $0x4c] sm:$0xf]
  %v38 = vld [vmem:[%s1 + $0x50] sm:$0xf]
  %v39 = vld [vmem:[%s1 + $0x54] sm:$0xf]
  %v40 = vld [vmem:[%s1 + $0x58] sm:$0xf]
  %v41 = vld [vmem:[%s1 + $0x5c] sm:$0xf]
  %v42 = vld [vmem:[%s1 + $0x60] sm:$0xf]
  %v43 = vld [vmem:[%s1 + $0x64] sm:$0xf]
  %v44 = vld [vmem:[%s1 + $0x68] sm:$0xf]
  %v45 = vld [vmem:[%s1 + $0x6c] sm:$0xf]
  %v46 = vld [vmem:[%s1 + $0x70] sm:$0xf]
  %v47 = vld [vmem:[%s1 + $0x74] sm:$0xf]
  %v48 = vld [vmem:[%s1 + $0x78] sm:$0xf]
  %v49 = vld [vmem:[%s1 + $0x7c] sm:$0xf]
  %v50 = vld [vmem:[%s1 + $0x80] sm:$0xf]
  %v51 = vld [vmem:[%s1 + $0x84] sm:$0xf]
  %v52 = vld [vmem:[%s1 + $0x88] sm:$0xf]
  %v53 = vld [vmem:[%s1 + $0x8c] sm:$0xf]
  %v54 = vld [vmem:[%s1 + $0x90] sm:$0xf]
  %v55 = vld [vmem:[%s1 + $0x94] sm:$0xf]
  %v56 = vld [vmem:[%s1 + $0x98] sm:$0xf]
  %v57 = vld [vmem:[%s1 + $0x9c] sm:$0xf]
  %v58 = vld [vmem:[%s1 + $0xa0] sm:$0xf]
  %v59 = vld [vmem:[%s1 + $0xa4] sm:$0xf]
  %v60 = vld [vmem:[%s1 + $0xa8] sm:$0xf]
  %v61 = vld [vmem:[%s1 + $0xac] sm:$0xf]
  %v62 = vld [vmem:[%s1 + $0xb0] sm:$0xf]
  %v63 = vld [vmem:[%s1 + $0xb4] sm:$0xf]
  %v64 = vld [vmem:[%s1 + $0xb8] sm:$0xf]
  %v65 = vld [vmem:[%s1 + $0xbc] sm:$0xf]
  %v66 = vld [vmem:[%s1 + $0xc0] sm:$0xf]
  %v67 = vld [vmem:[%s1 + $0xc4] sm:$0xf]
  %v68 = vld [vmem:[%s1 + $0xc8] sm:$0xf]
  %v69 = vld [vmem:[%s1 + $0xcc] sm:$0xf]
  %v70 = vld [vmem:[%s1 + $0xd0] sm:$0xf]
  %v71 = vld [vmem:[%s1 + $0xd4] sm:$0xf]
  %v72 = vld [vmem:[%s1 + $0xd8] sm:$0xf]
  %v73 = vld [vmem:[%s1 + $0xdc] sm:$0xf]
  %v74 = vld [vmem:[%s1 + $0xe0] sm:$0xf]
  %v75 = vld [vmem:[%s1 + $0xe4] sm:$0xf]
  %v76 = vld [vmem:[%s1 + $0xe8] sm:$0xf]
  %v77 = vld [vmem:[%s1 + $0xec] sm:$0xf]
  %v78 = vld [vmem:[%s1 + $0xf0] sm:$0xf]
  %v79 = vld [vmem:[%s1 + $0xf4] sm:$0xf]
  %v80 = vld [vmem:[%s1 + $0xf8] sm:$0xf]
  %v81 = vld [vmem:[%s1 + $0xfc] sm:$0xf]
  %v82 = vld [vmem:[%s1 + $0x100] sm:$0xf]
  %v83 = vld [vmem:[%s1 + $0x104] sm:$0xf]
  %v84 = vld [vmem:[%s1 + $0x108] sm:$0xf]
  %v85 = vld [vmem:[%s1 + $0x10c] sm:$0xf]
  %v86 = vld [vmem:[%s1 + $0x110] sm:$0xf]
  %v87 = vld [vmem:[%s1 + $0x114] sm:$0xf]
  %v88 = vld [vmem:[%s1 + $0x118] sm:$0xf]
  %v89 = vld [vmem:[%s1 + $0x11c] sm:$0xf]
  %v90 = vld [vmem:[%s2] sm:$0x1]
  %v92 = vlaneseq
  %v93 = vshrl.u32 %v92, 7
  %v94 = vsub.s32 0, %v93
  %v95 = vrot.slane %v90, %v94
  %v100 = vunpack.c.l.b16 %v15
  %v101 = vunpack.c.h.b16 %v15
  %v102 = vunpack.c.l.b16 %v16
  %v103 = vunpack.c.h.b16 %v16
  %v104 = vunpack.c.l.b16 %v17
  %v105 = vpack.c.b16 %v100, %v100
  %v106 = vpack.c.b16 %v101, %v101
  %v107 = vpack.c.b16 %v102, %v102
  %v108 = vpack.c.b16 %v103, %v103
  %v109 = vpack.c.b16 %v104, %v104
  %v186 = vunpack.c.l.b16 %v18
  %v187 = vunpack.c.l.b16 %v19
  %v188 = vunpack.c.l.b16 %v20
  %v189 = vunpack.c.l.b16 %v21
  %v190 = vunpack.c.l.b16 %v22
  %v191 = vunpack.c.l.b16 %v23
  %v192 = vunpack.c.l.b16 %v24
  %v193 = vunpack.c.l.b16 %v25
  %v194 = vunpack.c.l.b16 %v26
  %v195 = vunpack.c.l.b16 %v27
  %v196 = vunpack.c.l.b16 %v28
  %v197 = vunpack.c.l.b16 %v29
  %v198 = vunpack.c.l.b16 %v30
  %v199 = vunpack.c.l.b16 %v31
  %v200 = vunpack.c.l.b16 %v32
  %v201 = vunpack.c.l.b16 %v33
  %v202 = vunpack.c.l.b16 %v34
  %v203 = vunpack.c.l.b16 %v35
  %v204 = vunpack.c.l.b16 %v36
  %v205 = vunpack.c.l.b16 %v37
  %v206 = vunpack.c.l.b16 %v38
  %v207 = vunpack.c.l.b16 %v39
  %v208 = vunpack.c.l.b16 %v40
  %v209 = vunpack.c.l.b16 %v41
  %v210 = vunpack.c.l.b16 %v42
  %v211 = vunpack.c.l.b16 %v43
  %v212 = vunpack.c.l.b16 %v44
  %v213 = vunpack.c.l.b16 %v45
  %v214 = vunpack.c.l.b16 %v46
  %v215 = vunpack.c.l.b16 %v47
  %v216 = vunpack.c.l.b16 %v48
  %v217 = vunpack.c.l.b16 %v49
  %v218 = vunpack.c.l.b16 %v50
  %v219 = vunpack.c.l.b16 %v51
  %v220 = vunpack.c.l.b16 %v52
  %v221 = vunpack.c.l.b16 %v53
  %v222 = vunpack.c.l.b16 %v54
  %v223 = vunpack.c.l.b16 %v55
  %v224 = vunpack.c.l.b16 %v56
  %v225 = vunpack.c.l.b16 %v57
  %v226 = vunpack.c.l.b16 %v58
  %v227 = vunpack.c.l.b16 %v59
  %v228 = vunpack.c.l.b16 %v60
  %v229 = vunpack.c.l.b16 %v61
  %v230 = vunpack.c.l.b16 %v62
  %v231 = vunpack.c.l.b16 %v63
  %v232 = vunpack.c.l.b16 %v64
  %v233 = vunpack.c.l.b16 %v65
  %v234 = vunpack.c.l.b16 %v66
  %v235 = vunpack.c.l.b16 %v67
  %v236 = vunpack.c.l.b16 %v68
  %v237 = vunpack.c.l.b16 %v69
  %v238 = vunpack.c.l.b16 %v70
  %v239 = vunpack.c.l.b16 %v71
  %v240 = vunpack.c.l.b16 %v72
  %v241 = vunpack.c.l.b16 %v73
  %v242 = vunpack.c.l.b16 %v74
  %v243 = vunpack.c.l.b16 %v75
  %v244 = vunpack.c.l.b16 %v76
  %v245 = vunpack.c.l.b16 %v77
  %v246 = vunpack.c.l.b16 %v78
  %v247 = vunpack.c.l.b16 %v79
  %v248 = vunpack.c.l.b16 %v80
  %v249 = vunpack.c.l.b16 %v81
  %v250 = vunpack.c.l.b16 %v82
  %v251 = vunpack.c.l.b16 %v83
  %v252 = vunpack.c.l.b16 %v84
  %v253 = vunpack.c.l.b16 %v85
  %v254 = vunpack.c.l.b16 %v86
  %v255 = vunpack.c.l.b16 %v87
  %v256 = vunpack.c.l.b16 %v88
  %v257 = vunpack.c.l.b16 %v89
  %v258 = vpack.c.b16 %v187, %v186
  %v259 = vpack.c.b16 %v189, %v188
  %v260 = vpack.c.b16 %v191, %v190
  %v261 = vpack.c.b16 %v193, %v192
  %v262 = vpack.c.b16 %v195, %v194
  %v263 = vpack.c.b16 %v197, %v196
  %v264 = vpack.c.b16 %v199, %v198
  %v265 = vpack.c.b16 %v201, %v200
  %v266 = vpack.c.b16 %v203, %v202
  %v267 = vpack.c.b16 %v205, %v204
  %v268 = vpack.c.b16 %v207, %v206
  %v269 = vpack.c.b16 %v209, %v208
  %v270 = vpack.c.b16 %v211, %v210
  %v271 = vpack.c.b16 %v213, %v212
  %v272 = vpack.c.b16 %v215, %v214
  %v273 = vpack.c.b16 %v217, %v216
  %v274 = vpack.c.b16 %v219, %v218
  %v275 = vpack.c.b16 %v221, %v220
  %v276 = vpack.c.b16 %v223, %v222
  %v277 = vpack.c.b16 %v225, %v224
  %v278 = vpack.c.b16 %v227, %v226
  %v279 = vpack.c.b16 %v229, %v228
  %v280 = vpack.c.b16 %v231, %v230
  %v281 = vpack.c.b16 %v233, %v232
  %v282 = vpack.c.b16 %v235, %v234
  %v283 = vpack.c.b16 %v237, %v236
  %v284 = vpack.c.b16 %v239, %v238
  %v285 = vpack.c.b16 %v241, %v240
  %v286 = vpack.c.b16 %v243, %v242
  %v287 = vpack.c.b16 %v245, %v244
  %v288 = vpack.c.b16 %v247, %v246
  %v289 = vpack.c.b16 %v249, %v248
  %v290 = vpack.c.b16 %v251, %v250
  %v291 = vpack.c.b16 %v253, %v252
  %v292 = vpack.c.b16 %v255, %v254
  %v293 = vpack.c.b16 %v257, %v256
  %vm330 = vcmask 523264
  %v332 = vsel %vm330, %v109, 0
  %334 = vmatprep.subr.bf16.mxu0 0
  %335 = vmatpush1.bf16.msra.mxu0 %v265
  %336 = vmatprep.subr.bf16.mxu0 0
  %337 = vmatpush1.bf16.msra.mxu0 %v264
  %338 = vmatprep.subr.bf16.mxu0 0
  %339 = vmatpush1.bf16.msra.mxu0 %v263
  %340 = vmatprep.subr.bf16.mxu0 0
  %341 = vmatpush1.bf16.msra.mxu0 %v262
  %342 = vmatprep.subr.bf16.mxu0 0
  %343 = vmatpush1.bf16.msra.mxu0 %v261
  %344 = vmatprep.subr.bf16.mxu0 0
  %345 = vmatpush1.bf16.msra.mxu0 %v260
  %346 = vmatprep.subr.bf16.mxu0 0
  %347 = vmatpush1.bf16.msra.mxu0 %v259
  %348 = vmatprep.subr.bf16.mxu0 0
  %349 = vmatpush1.bf16.msra.mxu0 %v258
  %350 = vmatprep.subr.bf16.mxu0 0
  %351 = vmatpush2.bf16.msra.mxu0 %v273
  %352 = vmatprep.subr.bf16.mxu0 0
  %353 = vmatpush2.bf16.msra.mxu0 %v272
  %354 = vmatprep.subr.bf16.mxu0 0
  %355 = vmatpush2.bf16.msra.mxu0 %v271
  %356 = vmatprep.subr.bf16.mxu0 0
  %357 = vmatpush2.bf16.msra.mxu0 %v270
  %358 = vmatprep.subr.bf16.mxu0 0
  %359 = vmatpush2.bf16.msra.mxu0 %v269
  %360 = vmatprep.subr.bf16.mxu0 0
  %361 = vmatpush2.bf16.msra.mxu0 %v268
  %362 = vmatprep.subr.bf16.mxu0 0
  %363 = vmatpush2.bf16.msra.mxu0 %v267
  %364 = vmatprep.subr.bf16.mxu0 0
  %365 = vmatpush2.bf16.msra.mxu0 %v266
  %366 = vmatprep.mubr.bf16.mxu0 %v106
  %367 = vmatmul.mubr.bf16.gmra.mxu0 %v105
  %v368 = vpop.f32.mrf.mxu0
  %v369 = vadd.f32 %v95, %v368
  %v370 = vpop.f32.mrf.mxu0
  %v371 = vpop.f32.mrf.mxu0
  %v372 = vpop.f32.mrf.mxu0
  %373 = vdwg.mxu0
  %374 = vmatprep.subr.bf16.mxu0 0
  %375 = vmatpush1.bf16.msra.mxu0 %v281
  %376 = vmatprep.subr.bf16.mxu0 0
  %377 = vmatpush1.bf16.msra.mxu0 %v280
  %378 = vmatprep.subr.bf16.mxu0 0
  %379 = vmatpush1.bf16.msra.mxu0 %v279
  %380 = vmatprep.subr.bf16.mxu0 0
  %381 = vmatpush1.bf16.msra.mxu0 %v278
  %382 = vmatprep.subr.bf16.mxu0 0
  %383 = vmatpush1.bf16.msra.mxu0 %v277
  %384 = vmatprep.subr.bf16.mxu0 0
  %385 = vmatpush1.bf16.msra.mxu0 %v276
  %386 = vmatprep.subr.bf16.mxu0 0
  %387 = vmatpush1.bf16.msra.mxu0 %v275
  %388 = vmatprep.subr.bf16.mxu0 0
  %389 = vmatpush1.bf16.msra.mxu0 %v274
  %390 = vmatprep.subr.bf16.mxu0 0
  %391 = vmatpush2.bf16.msra.mxu0 %v289
  %392 = vmatprep.subr.bf16.mxu0 0
  %393 = vmatpush2.bf16.msra.mxu0 %v288
  %394 = vmatprep.subr.bf16.mxu0 0
  %395 = vmatpush2.bf16.msra.mxu0 %v287
  %396 = vmatprep.subr.bf16.mxu0 0
  %397 = vmatpush2.bf16.msra.mxu0 %v286
  %398 = vmatprep.subr.bf16.mxu0 0
  %399 = vmatpush2.bf16.msra.mxu0 %v285
  %400 = vmatprep.subr.bf16.mxu0 0
  %401 = vmatpush2.bf16.msra.mxu0 %v284
  %402 = vmatprep.subr.bf16.mxu0 0
  %403 = vmatpush2.bf16.msra.mxu0 %v283
  %404 = vmatprep.subr.bf16.mxu0 0
  %405 = vmatpush2.bf16.msra.mxu0 %v282
  %406 = vmatprep.mubr.bf16.mxu0 %v108
  %407 = vmatmul.mubr.bf16.gmra.mxu0 %v107
  %v408 = vpop.f32.mrf.mxu0
  %v409 = vadd.f32 %v369, %v408
  %v410 = vpop.f32.mrf.mxu0
  %v411 = vpop.f32.mrf.mxu0
  %v412 = vpop.f32.mrf.mxu0
  %413 = vdwg.mxu0
  %414 = vmatprep.subr.bf16.mxu0 0
  %415 = vmatpush1.bf16.msra.mxu0 0
  %416 = vmatprep.subr.bf16.mxu0 0
  %417 = vmatpush1.bf16.msra.mxu0 0
  %418 = vmatprep.subr.bf16.mxu0 0
  %419 = vmatpush1.bf16.msra.mxu0 0
  %420 = vmatprep.subr.bf16.mxu0 0
  %421 = vmatpush1.bf16.msra.mxu0 0
  %422 = vmatprep.subr.bf16.mxu0 0
  %423 = vmatpush1.bf16.msra.mxu0 %v293
  %424 = vmatprep.subr.bf16.mxu0 0
  %425 = vmatpush1.bf16.msra.mxu0 %v292
  %426 = vmatprep.subr.bf16.mxu0 0
  %427 = vmatpush1.bf16.msra.mxu0 %v291
  %428 = vmatprep.subr.bf16.mxu0 0
  %429 = vmatpush1.bf16.msra.mxu0 %v290
  %430 = vmatprep.subr.bf16.mxu0 0
  %431 = vmatpush2.bf16.msra.mxu0 0
  %432 = vmatprep.subr.bf16.mxu0 0
  %433 = vmatpush2.bf16.msra.mxu0 0
  %434 = vmatprep.subr.bf16.mxu0 0
  %435 = vmatpush2.bf16.msra.mxu0 0
  %436 = vmatprep.subr.bf16.mxu0 0
  %437 = vmatpush2.bf16.msra.mxu0 0
  %438 = vmatprep.subr.bf16.mxu0 0
  %439 = vmatpush2.bf16.msra.mxu0 0
  %440 = vmatprep.subr.bf16.mxu0 0
  %441 = vmatpush2.bf16.msra.mxu0 0
  %442 = vmatprep.subr.bf16.mxu0 0
  %443 = vmatpush2.bf16.msra.mxu0 0
  %444 = vmatprep.subr.bf16.mxu0 0
  %445 = vmatpush2.bf16.msra.mxu0 0
  %446 = vmatprep.mubr.bf16.mxu0 0
  %447 = vmatmul.mubr.bf16.gmra.mxu0 %v332
  %v448 = vpop.f32.mrf.mxu0
  %v449 = vadd.f32 %v409, %v448
  %v450 = vpop.f32.mrf.mxu0
  %v451 = vpop.f32.mrf.mxu0
  %v452 = vpop.f32.mrf.mxu0
  %453 = vdwg.mxu0
  %v454 = vmax.f32 %v449, 0.0
  %v455 = vpack.c.bf16 %v454, %v454
  %vm456 = vcmask 518144
  %457 = vst.msk [vmem:[%s3] sm:$0x7] %vm456, %v455
  // Predicated region
  $region14: #{ircnn_forward.13} parent=0 // pred_check
    _
  $region15: #{ircnn_forward.13} parent=0 // pred_check_branch
    %459 = sbr.rel (0) target = $region17
  $region16: #{ircnn_forward.13} parent=0 // pred_region
    _
  $region17: #{ircnn_forward.13} parent=0 // pred_fallthru
    _
  // Predicated region
  $region18: #{ircnn_forward.13} parent=0 // pred_check
    _
  $region19: #{ircnn_forward.13} parent=0 // pred_check_branch
    %461 = sbr.rel (0) target = $region21
  $region20: #{ircnn_forward.13} parent=0 // pred_region
    _
  $region21: #{ircnn_forward.13} parent=0 // pred_fallthru
    _

// kernel: ircnn_forward.14
$region0: #{ircnn_forward.14}
  #allocation0 [shape = 'u32[]', space=smem, size = 0x4, offset = 0x4, fixed_abs, tag = 'smem constant byte address 0x4 - core index']
  #allocation1 [shape = 'u32[144,128]{1,0:T(1,128)}', space=vmem, size = 0x12000, scoped, tag = 'internal scratch']
  %s0 = inlined_call_operand.vmem [shape: bf16[6,576], index: 0, kind: input, shape index: {}]
  %s1 = inlined_call_operand.vmem [shape: bf16[576,32], index: 1, kind: input, shape index: {}]
  %s2 = inlined_call_operand.vmem [shape: f32[1,32], index: 2, kind: input, shape index: {}]
  %s3 = inlined_call_operand.vmem [shape: f32[6,32], index: 3, kind: output, shape index: {}]
  %s4 = sld [smem:[#allocation0]]
  $region22: #{ircnn_forward.14} parent=0
    _
  %s6 = ssub.s32 1, %s4
  %s7 = scalar_select 0, %s6, %s4
  // Predicated region
  $region2: #{ircnn_forward.14} parent=0 // pred_check
    _
  $region3: #{ircnn_forward.14} parent=0 // pred_check_branch
    %9 = sbr.rel (0) target = $region5
  $region4: #{ircnn_forward.14} parent=0 // pred_region
    _
  $region5: #{ircnn_forward.14} parent=0 // pred_fallthru
    _
  // Predicated region
  $region6: #{ircnn_forward.14} parent=0 // pred_check
    _
  $region7: #{ircnn_forward.14} parent=0 // pred_check_branch
    %11 = sbr.rel (0) target = $region9
  $region8: #{ircnn_forward.14} parent=0 // pred_region
    _
  $region9: #{ircnn_forward.14} parent=0 // pred_fallthru
    _
  // Predicated region
  $region10: #{ircnn_forward.14} parent=0 // pred_check
    _
  $region11: #{ircnn_forward.14} parent=0 // pred_check_branch
    %13 = sbr.rel (0) target = $region13
  $region12: #{ircnn_forward.14} parent=0 // pred_region
    _
  $region13: #{ircnn_forward.14} parent=0 // pred_fallthru
    _
  %v15 = vld [vmem:[%s0] sm:$0x77]
  %v16 = vld [vmem:[%s0 + $0x8] sm:$0x77]
  %v17 = vld [vmem:[%s0 + $0x10] sm:$0x7]
  %v18 = vld [vmem:[%s1] sm:$0xf]
  %v19 = vld [vmem:[%s1 + $0x4] sm:$0xf]
  %v20 = vld [vmem:[%s1 + $0x8] sm:$0xf]
  %v21 = vld [vmem:[%s1 + $0xc] sm:$0xf]
  %v22 = vld [vmem:[%s1 + $0x10] sm:$0xf]
  %v23 = vld [vmem:[%s1 + $0x14] sm:$0xf]
  %v24 = vld [vmem:[%s1 + $0x18] sm:$0xf]
  %v25 = vld [vmem:[%s1 + $0x1c] sm:$0xf]
  %v26 = vld [vmem:[%s1 + $0x20] sm:$0xf]
  %v27 = vld [vmem:[%s1 + $0x24] sm:$0xf]
  %v28 = vld [vmem:[%s1 + $0x28] sm:$0xf]
  %v29 = vld [vmem:[%s1 + $0x2c] sm:$0xf]
  %v30 = vld [vmem:[%s1 + $0x30] sm:$0xf]
  %v31 = vld [vmem:[%s1 + $0x34] sm:$0xf]
  %v32 = vld [vmem:[%s1 + $0x38] sm:$0xf]
  %v33 = vld [vmem:[%s1 + $0x3c] sm:$0xf]
  %v34 = vld [vmem:[%s1 + $0x40] sm:$0xf]
  %v35 = vld [vmem:[%s1 + $0x44] sm:$0xf]
  %v36 = vld [vmem:[%s1 + $0x48] sm:$0xf]
  %v37 = vld [vmem:[%s1 + $0x4c] sm:$0xf]
  %v38 = vld [vmem:[%s1 + $0x50] sm:$0xf]
  %v39 = vld [vmem:[%s1 + $0x54] sm:$0xf]
  %v40 = vld [vmem:[%s1 + $0x58] sm:$0xf]
  %v41 = vld [vmem:[%s1 + $0x5c] sm:$0xf]
  %v42 = vld [vmem:[%s1 + $0x60] sm:$0xf]
  %v43 = vld [vmem:[%s1 + $0x64] sm:$0xf]
  %v44 = vld [vmem:[%s1 + $0x68] sm:$0xf]
  %v45 = vld [vmem:[%s1 + $0x6c] sm:$0xf]
  %v46 = vld [vmem:[%s1 + $0x70] sm:$0xf]
  %v47 = vld [vmem:[%s1 + $0x74] sm:$0xf]
  %v48 = vld [vmem:[%s1 + $0x78] sm:$0xf]
  %v49 = vld [vmem:[%s1 + $0x7c] sm:$0xf]
  %v50 = vld [vmem:[%s1 + $0x80] sm:$0xf]
  %v51 = vld [vmem:[%s1 + $0x84] sm:$0xf]
  %v52 = vld [vmem:[%s1 + $0x88] sm:$0xf]
  %v53 = vld [vmem:[%s1 + $0x8c] sm:$0xf]
  %v54 = vld [vmem:[%s1 + $0x90] sm:$0xf]
  %v55 = vld [vmem:[%s1 + $0x94] sm:$0xf]
  %v56 = vld [vmem:[%s1 + $0x98] sm:$0xf]
  %v57 = vld [vmem:[%s1 + $0x9c] sm:$0xf]
  %v58 = vld [vmem:[%s1 + $0xa0] sm:$0xf]
  %v59 = vld [vmem:[%s1 + $0xa4] sm:$0xf]
  %v60 = vld [vmem:[%s1 + $0xa8] sm:$0xf]
  %v61 = vld [vmem:[%s1 + $0xac] sm:$0xf]
  %v62 = vld [vmem:[%s1 + $0xb0] sm:$0xf]
  %v63 = vld [vmem:[%s1 + $0xb4] sm:$0xf]
  %v64 = vld [vmem:[%s1 + $0xb8] sm:$0xf]
  %v65 = vld [vmem:[%s1 + $0xbc] sm:$0xf]
  %v66 = vld [vmem:[%s1 + $0xc0] sm:$0xf]
  %v67 = vld [vmem:[%s1 + $0xc4] sm:$0xf]
  %v68 = vld [vmem:[%s1 + $0xc8] sm:$0xf]
  %v69 = vld [vmem:[%s1 + $0xcc] sm:$0xf]
  %v70 = vld [vmem:[%s1 + $0xd0] sm:$0xf]
  %v71 = vld [vmem:[%s1 + $0xd4] sm:$0xf]
  %v72 = vld [vmem:[%s1 + $0xd8] sm:$0xf]
  %v73 = vld [vmem:[%s1 + $0xdc] sm:$0xf]
  %v74 = vld [vmem:[%s1 + $0xe0] sm:$0xf]
  %v75 = vld [vmem:[%s1 + $0xe4] sm:$0xf]
  %v76 = vld [vmem:[%s1 + $0xe8] sm:$0xf]
  %v77 = vld [vmem:[%s1 + $0xec] sm:$0xf]
  %v78 = vld [vmem:[%s1 + $0xf0] sm:$0xf]
  %v79 = vld [vmem:[%s1 + $0xf4] sm:$0xf]
  %v80 = vld [vmem:[%s1 + $0xf8] sm:$0xf]
  %v81 = vld [vmem:[%s1 + $0xfc] sm:$0xf]
  %v82 = vld [vmem:[%s1 + $0x100] sm:$0xf]
  %v83 = vld [vmem:[%s1 + $0x104] sm:$0xf]
  %v84 = vld [vmem:[%s1 + $0x108] sm:$0xf]
  %v85 = vld [vmem:[%s1 + $0x10c] sm:$0xf]
  %v86 = vld [vmem:[%s1 + $0x110] sm:$0xf]
  %v87 = vld [vmem:[%s1 + $0x114] sm:$0xf]
  %v88 = vld [vmem:[%s1 + $0x118] sm:$0xf]
  %v89 = vld [vmem:[%s1 + $0x11c] sm:$0xf]
  %v90 = vld [vmem:[%s2] sm:$0x1]
  %v92 = vlaneseq
  %v93 = vshrl.u32 %v92, 7
  %v94 = vsub.s32 0, %v93
  %v95 = vrot.slane %v90, %v94
  %v100 = vunpack.c.l.b16 %v15
  %v101 = vunpack.c.h.b16 %v15
  %v102 = vunpack.c.l.b16 %v16
  %v103 = vunpack.c.h.b16 %v16
  %v104 = vunpack.c.l.b16 %v17
  %v105 = vpack.c.b16 %v100, %v100
  %v106 = vpack.c.b16 %v101, %v101
  %v107 = vpack.c.b16 %v102, %v102
  %v108 = vpack.c.b16 %v103, %v103
  %v109 = vpack.c.b16 %v104, %v104
  %v186 = vunpack.c.l.b16 %v18
  %v187 = vunpack.c.l.b16 %v19
  %v188 = vunpack.c.l.b16 %v20
  %v189 = vunpack.c.l.b16 %v21
  %v190 = vunpack.c.l.b16 %v22
  %v191 = vunpack.c.l.b16 %v23
  %v192 = vunpack.c.l.b16 %v24
  %v193 = vunpack.c.l.b16 %v25
  %v194 = vunpack.c.l.b16 %v26
  %v195 = vunpack.c.l.b16 %v27
  %v196 = vunpack.c.l.b16 %v28
  %v197 = vunpack.c.l.b16 %v29
  %v198 = vunpack.c.l.b16 %v30
  %v199 = vunpack.c.l.b16 %v31
  %v200 = vunpack.c.l.b16 %v32
  %v201 = vunpack.c.l.b16 %v33
  %v202 = vunpack.c.l.b16 %v34
  %v203 = vunpack.c.l.b16 %v35
  %v204 = vunpack.c.l.b16 %v36
  %v205 = vunpack.c.l.b16 %v37
  %v206 = vunpack.c.l.b16 %v38
  %v207 = vunpack.c.l.b16 %v39
  %v208 = vunpack.c.l.b16 %v40
  %v209 = vunpack.c.l.b16 %v41
  %v210 = vunpack.c.l.b16 %v42
  %v211 = vunpack.c.l.b16 %v43
  %v212 = vunpack.c.l.b16 %v44
  %v213 = vunpack.c.l.b16 %v45
  %v214 = vunpack.c.l.b16 %v46
  %v215 = vunpack.c.l.b16 %v47
  %v216 = vunpack.c.l.b16 %v48
  %v217 = vunpack.c.l.b16 %v49
  %v218 = vunpack.c.l.b16 %v50
  %v219 = vunpack.c.l.b16 %v51
  %v220 = vunpack.c.l.b16 %v52
  %v221 = vunpack.c.l.b16 %v53
  %v222 = vunpack.c.l.b16 %v54
  %v223 = vunpack.c.l.b16 %v55
  %v224 = vunpack.c.l.b16 %v56
  %v225 = vunpack.c.l.b16 %v57
  %v226 = vunpack.c.l.b16 %v58
  %v227 = vunpack.c.l.b16 %v59
  %v228 = vunpack.c.l.b16 %v60
  %v229 = vunpack.c.l.b16 %v61
  %v230 = vunpack.c.l.b16 %v62
  %v231 = vunpack.c.l.b16 %v63
  %v232 = vunpack.c.l.b16 %v64
  %v233 = vunpack.c.l.b16 %v65
  %v234 = vunpack.c.l.b16 %v66
  %v235 = vunpack.c.l.b16 %v67
  %v236 = vunpack.c.l.b16 %v68
  %v237 = vunpack.c.l.b16 %v69
  %v238 = vunpack.c.l.b16 %v70
  %v239 = vunpack.c.l.b16 %v71
  %v240 = vunpack.c.l.b16 %v72
  %v241 = vunpack.c.l.b16 %v73
  %v242 = vunpack.c.l.b16 %v74
  %v243 = vunpack.c.l.b16 %v75
  %v244 = vunpack.c.l.b16 %v76
  %v245 = vunpack.c.l.b16 %v77
  %v246 = vunpack.c.l.b16 %v78
  %v247 = vunpack.c.l.b16 %v79
  %v248 = vunpack.c.l.b16 %v80
  %v249 = vunpack.c.l.b16 %v81
  %v250 = vunpack.c.l.b16 %v82
  %v251 = vunpack.c.l.b16 %v83
  %v252 = vunpack.c.l.b16 %v84
  %v253 = vunpack.c.l.b16 %v85
  %v254 = vunpack.c.l.b16 %v86
  %v255 = vunpack.c.l.b16 %v87
  %v256 = vunpack.c.l.b16 %v88
  %v257 = vunpack.c.l.b16 %v89
  %v258 = vpack.c.b16 %v187, %v186
  %v259 = vpack.c.b16 %v189, %v188
  %v260 = vpack.c.b16 %v191, %v190
  %v261 = vpack.c.b16 %v193, %v192
  %v262 = vpack.c.b16 %v195, %v194
  %v263 = vpack.c.b16 %v197, %v196
  %v264 = vpack.c.b16 %v199, %v198
  %v265 = vpack.c.b16 %v201, %v200
  %v266 = vpack.c.b16 %v203, %v202
  %v267 = vpack.c.b16 %v205, %v204
  %v268 = vpack.c.b16 %v207, %v206
  %v269 = vpack.c.b16 %v209, %v208
  %v270 = vpack.c.b16 %v211, %v210
  %v271 = vpack.c.b16 %v213, %v212
  %v272 = vpack.c.b16 %v215, %v214
  %v273 = vpack.c.b16 %v217, %v216
  %v274 = vpack.c.b16 %v219, %v218
  %v275 = vpack.c.b16 %v221, %v220
  %v276 = vpack.c.b16 %v223, %v222
  %v277 = vpack.c.b16 %v225, %v224
  %v278 = vpack.c.b16 %v227, %v226
  %v279 = vpack.c.b16 %v229, %v228
  %v280 = vpack.c.b16 %v231, %v230
  %v281 = vpack.c.b16 %v233, %v232
  %v282 = vpack.c.b16 %v235, %v234
  %v283 = vpack.c.b16 %v237, %v236
  %v284 = vpack.c.b16 %v239, %v238
  %v285 = vpack.c.b16 %v241, %v240
  %v286 = vpack.c.b16 %v243, %v242
  %v287 = vpack.c.b16 %v245, %v244
  %v288 = vpack.c.b16 %v247, %v246
  %v289 = vpack.c.b16 %v249, %v248
  %v290 = vpack.c.b16 %v251, %v250
  %v291 = vpack.c.b16 %v253, %v252
  %v292 = vpack.c.b16 %v255, %v254
  %v293 = vpack.c.b16 %v257, %v256
  %vm330 = vcmask 523264
  %v332 = vsel %vm330, %v109, 0
  %334 = vmatprep.subr.bf16.mxu0 0
  %335 = vmatpush1.bf16.msra.mxu0 %v265
  %336 = vmatprep.subr.bf16.mxu0 0
  %337 = vmatpush1.bf16.msra.mxu0 %v264
  %338 = vmatprep.subr.bf16.mxu0 0
  %339 = vmatpush1.bf16.msra.mxu0 %v263
  %340 = vmatprep.subr.bf16.mxu0 0
  %341 = vmatpush1.bf16.msra.mxu0 %v262
  %342 = vmatprep.subr.bf16.mxu0 0
  %343 = vmatpush1.bf16.msra.mxu0 %v261
  %344 = vmatprep.subr.bf16.mxu0 0
  %345 = vmatpush1.bf16.msra.mxu0 %v260
  %346 = vmatprep.subr.bf16.mxu0 0
  %347 = vmatpush1.bf16.msra.mxu0 %v259
  %348 = vmatprep.subr.bf16.mxu0 0
  %349 = vmatpush1.bf16.msra.mxu0 %v258
  %350 = vmatprep.subr.bf16.mxu0 0
  %351 = vmatpush2.bf16.msra.mxu0 %v273
  %352 = vmatprep.subr.bf16.mxu0 0
  %353 = vmatpush2.bf16.msra.mxu0 %v272
  %354 = vmatprep.subr.bf16.mxu0 0
  %355 = vmatpush2.bf16.msra.mxu0 %v271
  %356 = vmatprep.subr.bf16.mxu0 0
  %357 = vmatpush2.bf16.msra.mxu0 %v270
  %358 = vmatprep.subr.bf16.mxu0 0
  %359 = vmatpush2.bf16.msra.mxu0 %v269
  %360 = vmatprep.subr.bf16.mxu0 0
  %361 = vmatpush2.bf16.msra.mxu0 %v268
  %362 = vmatprep.subr.bf16.mxu0 0
  %363 = vmatpush2.bf16.msra.mxu0 %v267
  %364 = vmatprep.subr.bf16.mxu0 0
  %365 = vmatpush2.bf16.msra.mxu0 %v266
  %366 = vmatprep.mubr.bf16.mxu0 %v106
  %367 = vmatmul.mubr.bf16.gmra.mxu0 %v105
  %v368 = vpop.f32.mrf.mxu0
  %v369 = vadd.f32 %v95, %v368
  %v370 = vpop.f32.mrf.mxu0
  %v371 = vpop.f32.mrf.mxu0
  %v372 = vpop.f32.mrf.mxu0
  %373 = vdwg.mxu0
  %374 = vmatprep.subr.bf16.mxu0 0
  %375 = vmatpush1.bf16.msra.mxu0 %v281
  %376 = vmatprep.subr.bf16.mxu0 0
  %377 = vmatpush1.bf16.msra.mxu0 %v280
  %378 = vmatprep.subr.bf16.mxu0 0
  %379 = vmatpush1.bf16.msra.mxu0 %v279
  %380 = vmatprep.subr.bf16.mxu0 0
  %381 = vmatpush1.bf16.msra.mxu0 %v278
  %382 = vmatprep.subr.bf16.mxu0 0
  %383 = vmatpush1.bf16.msra.mxu0 %v277
  %384 = vmatprep.subr.bf16.mxu0 0
  %385 = vmatpush1.bf16.msra.mxu0 %v276
  %386 = vmatprep.subr.bf16.mxu0 0
  %387 = vmatpush1.bf16.msra.mxu0 %v275
  %388 = vmatprep.subr.bf16.mxu0 0
  %389 = vmatpush1.bf16.msra.mxu0 %v274
  %390 = vmatprep.subr.bf16.mxu0 0
  %391 = vmatpush2.bf16.msra.mxu0 %v289
  %392 = vmatprep.subr.bf16.mxu0 0
  %393 = vmatpush2.bf16.msra.mxu0 %v288
  %394 = vmatprep.subr.bf16.mxu0 0
  %395 = vmatpush2.bf16.msra.mxu0 %v287
  %396 = vmatprep.subr.bf16.mxu0 0
  %397 = vmatpush2.bf16.msra.mxu0 %v286
  %398 = vmatprep.subr.bf16.mxu0 0
  %399 = vmatpush2.bf16.msra.mxu0 %v285
  %400 = vmatprep.subr.bf16.mxu0 0
  %401 = vmatpush2.bf16.msra.mxu0 %v284
  %402 = vmatprep.subr.bf16.mxu0 0
  %403 = vmatpush2.bf16.msra.mxu0 %v283
  %404 = vmatprep.subr.bf16.mxu0 0
  %405 = vmatpush2.bf16.msra.mxu0 %v282
  %406 = vmatprep.mubr.bf16.mxu0 %v108
  %407 = vmatmul.mubr.bf16.gmra.mxu0 %v107
  %v408 = vpop.f32.mrf.mxu0
  %v409 = vadd.f32 %v369, %v408
  %v410 = vpop.f32.mrf.mxu0
  %v411 = vpop.f32.mrf.mxu0
  %v412 = vpop.f32.mrf.mxu0
  %413 = vdwg.mxu0
  %414 = vmatprep.subr.bf16.mxu0 0
  %415 = vmatpush1.bf16.msra.mxu0 0
  %416 = vmatprep.subr.bf16.mxu0 0
  %417 = vmatpush1.bf16.msra.mxu0 0
  %418 = vmatprep.subr.bf16.mxu0 0
  %419 = vmatpush1.bf16.msra.mxu0 0
  %420 = vmatprep.subr.bf16.mxu0 0
  %421 = vmatpush1.bf16.msra.mxu0 0
  %422 = vmatprep.subr.bf16.mxu0 0
  %423 = vmatpush1.bf16.msra.mxu0 %v293
  %424 = vmatprep.subr.bf16.mxu0 0
  %425 = vmatpush1.bf16.msra.mxu0 %v292
  %426 = vmatprep.subr.bf16.mxu0 0
  %427 = vmatpush1.bf16.msra.mxu0 %v291
  %428 = vmatprep.subr.bf16.mxu0 0
  %429 = vmatpush1.bf16.msra.mxu0 %v290
  %430 = vmatprep.subr.bf16.mxu0 0
  %431 = vmatpush2.bf16.msra.mxu0 0
  %432 = vmatprep.subr.bf16.mxu0 0
  %433 = vmatpush2.bf16.msra.mxu0 0
  %434 = vmatprep.subr.bf16.mxu0 0
  %435 = vmatpush2.bf16.msra.mxu0 0
  %436 = vmatprep.subr.bf16.mxu0 0
  %437 = vmatpush2.bf16.msra.mxu0 0
  %438 = vmatprep.subr.bf16.mxu0 0
  %439 = vmatpush2.bf16.msra.mxu0 0
  %440 = vmatprep.subr.bf16.mxu0 0
  %441 = vmatpush2.bf16.msra.mxu0 0
  %442 = vmatprep.subr.bf16.mxu0 0
  %443 = vmatpush2.bf16.msra.mxu0 0
  %444 = vmatprep.subr.bf16.mxu0 0
  %445 = vmatpush2.bf16.msra.mxu0 0
  %446 = vmatprep.mubr.bf16.mxu0 0
  %447 = vmatmul.mubr.bf16.gmra.mxu0 %v332
  %v448 = vpop.f32.mrf.mxu0
  %v449 = vadd.f32 %v409, %v448
  %v450 = vpop.f32.mrf.mxu0
  %v451 = vpop.f32.mrf.mxu0
  %v452 = vpop.f32.mrf.mxu0
  %453 = vdwg.mxu0
  %vm454 = vcmask 259072
  %455 = vst.msk [vmem:[%s3] sm:$0x3f] %vm454, %v449
  // Predicated region
  $region14: #{ircnn_forward.14} parent=0 // pred_check
    _
  $region15: #{ircnn_forward.14} parent=0 // pred_check_branch
    %457 = sbr.rel (0) target = $region17
  $region16: #{ircnn_forward.14} parent=0 // pred_region
    _
  $region17: #{ircnn_forward.14} parent=0 // pred_fallthru
    _
  // Predicated region
  $region18: #{ircnn_forward.14} parent=0 // pred_check
    _
  $region19: #{ircnn_forward.14} parent=0 // pred_check_branch
    %459 = sbr.rel (0) target = $region21
  $region20: #{ircnn_forward.14} parent=0 // pred_region
    _
  $region21: #{ircnn_forward.14} parent=0 // pred_fallthru
    _

// kernel: ircnn_forward.15
$region0: #{ircnn_forward.15}
  #allocation0 [shape = 'u32[]', space=smem, size = 0x4, offset = 0x4, fixed_abs, tag = 'smem constant byte address 0x4 - core index']
  #allocation1 [shape = 'u32[144,128]{1,0:T(1,128)}', space=vmem, size = 0x12000, scoped, tag = 'internal scratch']
  #allocation2 [shape = 'f32[2,8]{1,0:T(2,128)}', space=vmem, size = 0x400, scoped, tag = 'scratch operand']
  #allocation3 [shape = 'f32[2,8]{1,0:T(2,128)}', space=vmem, size = 0x400, scoped, tag = 'scratch operand']
  %s0 = inlined_call_operand.vmem [shape: f32[3,2,32], index: 0, kind: input, shape index: {}]
  %s1 = inlined_call_operand.vmem [shape: f32[3,2,1], index: 1, kind: input, shape index: {}]
  %s2 = inlined_call_operand.vmem [shape: f32[3,2,1], index: 2, kind: input, shape index: {}]
  %s3 = inlined_call_operand.vmem [shape: bf16[8,32], index: 3, kind: input, shape index: {}]
  %s4 = inlined_call_operand.vmem [shape: f32[8,32], index: 4, kind: input, shape index: {}]
  %s5 = inlined_call_operand.vmem [shape: f32[1,32], index: 5, kind: input, shape index: {}]
  %s6 = inlined_call_operand.vmem [shape: f32[32,5], index: 6, kind: input, shape index: {}]
  %s7 = inlined_call_operand.vmem [shape: f32[1,5], index: 7, kind: input, shape index: {}]
  %s8 = inlined_call_operand.hbm [shape: f32[2,5], index: 8, kind: output, shape index: {}]
  %s9 = sld [smem:[#allocation0]]
  $region73: #{ircnn_forward.15} parent=0
    _
  %s11 = ssub.s32 1, %s9
  %s12 = scalar_select 0, %s11, %s9
  $region1: #{ircnn_forward.15} parent=0
    #allocation4 [shape = 'u8[1024]{0}', space=vmem, size = 0x400, scoped, tag = 'output window, operand 0, single buffered']
    #allocation5 [shape = 's32[2]{0}', space=sflag, size = 0x8, scoped, tag = 'scoped memory for ircnn_forward.15']
    %13 = vsyncpa [#allocation5], 0
    loop: start=0, step=1, limit=5
    $region2: #{ircnn_forward.15} parent=1 // loop_pre_header
      _
    $region3: #{ircnn_forward.15} parent=1 // loop_header
      %s15 = sphi 0, %s19
      %p16 = scmp.ge.s32.totalorder %s15, 5
      %s25 = sphi 0, %s27
      %s28 = sphi 0, %s25
      %s29 = sphi 0, %s28
      %s45 = sphi 0, %s29
      %s51 = sphi 0, %s53
      %s54 = sphi 0, %s51
      %s55 = sphi 0, %s54
      %s71 = sphi 0, %s55
      %s77 = sphi 0, %s79
      %s80 = sphi 0, %s77
      %s81 = sphi 0, %s80
      %s97 = sphi 0, %s81
      %s101 = sphi 0, %s101
      %s103 = sphi 0, %s101
      %s104 = sphi 0, %s103
      %s118 = sphi 0, %s104
      %s122 = sphi 0, %s122
      %s124 = sphi 0, %s122
      %s125 = sphi 0, %s124
      %s139 = sphi 0, %s125
      %s143 = sphi 0, %s143
      %s145 = sphi 0, %s143
      %s146 = sphi 0, %s145
      %s160 = sphi 0, %s146
      %s164 = sphi 0, %s164
      %s166 = sphi 0, %s164
      %s167 = sphi 0, %s166
      %s181 = sphi 0, %s167
      %s185 = sphi 0, %s185
      %s187 = sphi 0, %s185
      %s188 = sphi 0, %s187
      %s202 = sphi 0, %s188
      %s206 = sphi 0, %s206
      %s208 = sphi 0, %s206
      %s209 = sphi 0, %s208
      %s223 = sphi 0, %s209
    $region4: #{ircnn_forward.15} parent=1 // loop_header_branch
      %18 = sbr.rel (%p16) target = $region8
    $region5: #{ircnn_forward.15} parent=1 // loop_body
      %s20 = ssub.s32 %s15, 1
      %s21 = ssub.s32 %s15, 2
      %s22 = sadd.s32 %s15, 1
      %s23 = ssub.s32 %s15, %s22
      %p24 = scmp.eq.s32.totalorder %s23, 0
      %s26 = sadd.s32 %s25, 1
      %s27 = scalar_select %p24, %s25, %s26
      %p30 = pneg %p24
      %p31 = scmp.eq.s32.totalorder %s15, 2
      %p32 = por %p30, %p31
      %p33 = scmp.ne.s32.totalorder %s25, %s28
      %p34 = scmp.eq.s32.totalorder %s15, 0
      %p35 = por %p33, %p34
      %p36 = scmp.ne.s32.totalorder %s25, %s28
      %p37 = scmp.eq.s32.totalorder %s20, 2
      %p38 = por %p36, %p37
      %p39 = scmp.ne.s32.totalorder %s28, %s29
      %p40 = scmp.eq.s32.totalorder %s20, 0
      %p41 = por %p39, %p40
      %p42 = scmp.ne.s32.totalorder %s28, %s29
      %p43 = scmp.eq.s32.totalorder %s21, 2
      %p44 = por %p42, %p43
      %p46 = scmp.ne.s32.totalorder %s29, %s45
      %p47 = scmp.eq.s32.totalorder %s21, 0
      %p48 = por %p46, %p47
      %s49 = ssub.s32 %s15, %s22
      %p50 = scmp.eq.s32.totalorder %s49, 0
      %s52 = sadd.s32 %s51, 1
      %s53 = scalar_select %p50, %s51, %s52
      %p56 = pneg %p50
      %p57 = scmp.eq.s32.totalorder %s15, 2
      %p58 = por %p56, %p57
      %p59 = scmp.ne.s32.totalorder %s51, %s54
      %p60 = scmp.eq.s32.totalorder %s15, 0
      %p61 = por %p59, %p60
      %p62 = scmp.ne.s32.totalorder %s51, %s54
      %p63 = scmp.eq.s32.totalorder %s20, 2
      %p64 = por %p62, %p63
      %p65 = scmp.ne.s32.totalorder %s54, %s55
      %p66 = scmp.eq.s32.totalorder %s20, 0
      %p67 = por %p65, %p66
      %p68 = scmp.ne.s32.totalorder %s54, %s55
      %p69 = scmp.eq.s32.totalorder %s21, 2
      %p70 = por %p68, %p69
      %p72 = scmp.ne.s32.totalorder %s55, %s71
      %p73 = scmp.eq.s32.totalorder %s21, 0
      %p74 = por %p72, %p73
      %s75 = ssub.s32 %s15, %s22
      %p76 = scmp.eq.s32.totalorder %s75, 0
      %s78 = sadd.s32 %s77, 1
      %s79 = scalar_select %p76, %s77, %s78
      %p82 = pneg %p76
      %p83 = scmp.eq.s32.totalorder %s15, 2
      %p84 = por %p82, %p83
      %p85 = scmp.ne.s32.totalorder %s77, %s80
      %p86 = scmp.eq.s32.totalorder %s15, 0
      %p87 = por %p85, %p86
      %p88 = scmp.ne.s32.totalorder %s77, %s80
      %p89 = scmp.eq.s32.totalorder %s20, 2
      %p90 = por %p88, %p89
      %p91 = scmp.ne.s32.totalorder %s80, %s81
      %p92 = scmp.eq.s32.totalorder %s20, 0
      %p93 = por %p91, %p92
      %p94 = scmp.ne.s32.totalorder %s80, %s81
      %p95 = scmp.eq.s32.totalorder %s21, 2
      %p96 = por %p94, %p95
      %p98 = scmp.ne.s32.totalorder %s81, %s97
      %p99 = scmp.eq.s32.totalorder %s21, 0
      %p100 = por %p98, %p99
      %s102 = sadd.s32 %s101, 1
      %p105 = scmp.eq.s32.totalorder %s15, 2
      %p106 = scmp.ne.s32.totalorder %s101, %s103
      %p107 = scmp.eq.s32.totalorder %s15, 0
      %p108 = por %p106, %p107
      %p109 = scmp.ne.s32.totalorder %s101, %s103
      %p110 = scmp.eq.s32.totalorder %s20, 2
      %p111 = por %p109, %p110
      %p112 = scmp.ne.s32.totalorder %s103, %s104
      %p113 = scmp.eq.s32.totalorder %s20, 0
      %p114 = por %p112, %p113
      %p115 = scmp.ne.s32.totalorder %s103, %s104
      %p116 = scmp.eq.s32.totalorder %s21, 2
      %p117 = por %p115, %p116
      %p119 = scmp.ne.s32.totalorder %s104, %s118
      %p120 = scmp.eq.s32.totalorder %s21, 0
      %p121 = por %p119, %p120
      %s123 = sadd.s32 %s122, 1
      %p126 = scmp.eq.s32.totalorder %s15, 2
      %p127 = scmp.ne.s32.totalorder %s122, %s124
      %p128 = scmp.eq.s32.totalorder %s15, 0
      %p129 = por %p127, %p128
      %p130 = scmp.ne.s32.totalorder %s122, %s124
      %p131 = scmp.eq.s32.totalorder %s20, 2
      %p132 = por %p130, %p131
      %p133 = scmp.ne.s32.totalorder %s124, %s125
      %p134 = scmp.eq.s32.totalorder %s20, 0
      %p135 = por %p133, %p134
      %p136 = scmp.ne.s32.totalorder %s124, %s125
      %p137 = scmp.eq.s32.totalorder %s21, 2
      %p138 = por %p136, %p137
      %p140 = scmp.ne.s32.totalorder %s125, %s139
      %p141 = scmp.eq.s32.totalorder %s21, 0
      %p142 = por %p140, %p141
      %s144 = sadd.s32 %s143, 1
      %p147 = scmp.eq.s32.totalorder %s15, 2
      %p148 = scmp.ne.s32.totalorder %s143, %s145
      %p149 = scmp.eq.s32.totalorder %s15, 0
      %p150 = por %p148, %p149
      %p151 = scmp.ne.s32.totalorder %s143, %s145
      %p152 = scmp.eq.s32.totalorder %s20, 2
      %p153 = por %p151, %p152
      %p154 = scmp.ne.s32.totalorder %s145, %s146
      %p155 = scmp.eq.s32.totalorder %s20, 0
      %p156 = por %p154, %p155
      %p157 = scmp.ne.s32.totalorder %s145, %s146
      %p158 = scmp.eq.s32.totalorder %s21, 2
      %p159 = por %p157, %p158
      %p161 = scmp.ne.s32.totalorder %s146, %s160
      %p162 = scmp.eq.s32.totalorder %s21, 0
      %p163 = por %p161, %p162
      %s165 = sadd.s32 %s164, 1
      %p168 = scmp.eq.s32.totalorder %s15, 2
      %p169 = scmp.ne.s32.totalorder %s164, %s166
      %p170 = scmp.eq.s32.totalorder %s15, 0
      %p171 = por %p169, %p170
      %p172 = scmp.ne.s32.totalorder %s164, %s166
      %p173 = scmp.eq.s32.totalorder %s20, 2
      %p174 = por %p172, %p173
      %p175 = scmp.ne.s32.totalorder %s166, %s167
      %p176 = scmp.eq.s32.totalorder %s20, 0
      %p177 = por %p175, %p176
      %p178 = scmp.ne.s32.totalorder %s166, %s167
      %p179 = scmp.eq.s32.totalorder %s21, 2
      %p180 = por %p178, %p179
      %p182 = scmp.ne.s32.totalorder %s167, %s181
      %p183 = scmp.eq.s32.totalorder %s21, 0
      %p184 = por %p182, %p183
      %s186 = sadd.s32 %s185, 1
      %p189 = scmp.eq.s32.totalorder %s15, 2
      %p190 = scmp.ne.s32.totalorder %s185, %s187
      %p191 = scmp.eq.s32.totalorder %s15, 0
      %p192 = por %p190, %p191
      %p193 = scmp.ne.s32.totalorder %s185, %s187
      %p194 = scmp.eq.s32.totalorder %s20, 2
      %p195 = por %p193, %p194
      %p196 = scmp.ne.s32.totalorder %s187, %s188
      %p197 = scmp.eq.s32.totalorder %s20, 0
      %p198 = por %p196, %p197
      %p199 = scmp.ne.s32.totalorder %s187, %s188
      %p200 = scmp.eq.s32.totalorder %s21, 2
      %p201 = por %p199, %p200
      %p203 = scmp.ne.s32.totalorder %s188, %s202
      %p204 = scmp.eq.s32.totalorder %s21, 0
      %p205 = por %p203, %p204
      %s207 = sadd.s32 %s206, 1
      %p210 = scmp.eq.s32.totalorder %s15, 2
      %p211 = scmp.ne.s32.totalorder %s206, %s208
      %p212 = scmp.eq.s32.totalorder %s15, 0
      %p213 = por %p211, %p212
      %p214 = scmp.ne.s32.totalorder %s206, %s208
      %p215 = scmp.eq.s32.totalorder %s20, 2
      %p216 = por %p214, %p215
      %p217 = scmp.ne.s32.totalorder %s208, %s209
      %p218 = scmp.eq.s32.totalorder %s20, 0
      %p219 = por %p217, %p218
      %p220 = scmp.ne.s32.totalorder %s208, %s209
      %p221 = scmp.eq.s32.totalorder %s21, 2
      %p222 = por %p220, %p221
      %p224 = scmp.ne.s32.totalorder %s209, %s223
      %p225 = scmp.eq.s32.totalorder %s21, 0
      %p226 = por %p224, %p225
      %p227 = scmp.le.s32.totalorder 1, %s15
      %p228 = scmp.lt.s32.totalorder %s15, 4
      %p229 = pnand %p227, %p228
      %p230 = pneg %p229
      // Predicated region
      $region9: #{ircnn_forward.15} parent=5 // pred_check
        _
      $region10: #{ircnn_forward.15} parent=5 // pred_check_branch
        %232 = sbr.rel (%p229) target = $region12
      $region11: #{ircnn_forward.15} parent=5 // pred_region
        %s233 = ssub.s32 %s15, 1
        // Predicated region
        $region13: #{ircnn_forward.15} parent=11 // pred_check
          %p234 = pneg %p114
        $region14: #{ircnn_forward.15} parent=11 // pred_check_branch
          %236 = sbr.rel (%p234) target = $region16
        $region15: #{ircnn_forward.15} parent=11 // pred_region
          _
        $region16: #{ircnn_forward.15} parent=11 // pred_fallthru
          _
        // Predicated region
        $region17: #{ircnn_forward.15} parent=11 // pred_check
          %p237 = pneg %p135
        $region18: #{ircnn_forward.15} parent=11 // pred_check_branch
          %239 = sbr.rel (%p237) target = $region20
        $region19: #{ircnn_forward.15} parent=11 // pred_region
          _
        $region20: #{ircnn_forward.15} parent=11 // pred_fallthru
          _
        // Predicated region
        $region21: #{ircnn_forward.15} parent=11 // pred_check
          %p240 = pneg %p156
        $region22: #{ircnn_forward.15} parent=11 // pred_check_branch
          %242 = sbr.rel (%p240) target = $region24
        $region23: #{ircnn_forward.15} parent=11 // pred_region
          _
        $region24: #{ircnn_forward.15} parent=11 // pred_fallthru
          _
        // Predicated region
        $region25: #{ircnn_forward.15} parent=11 // pred_check
          %p243 = pneg %p177
        $region26: #{ircnn_forward.15} parent=11 // pred_check_branch
          %245 = sbr.rel (%p243) target = $region28
        $region27: #{ircnn_forward.15} parent=11 // pred_region
          _
        $region28: #{ircnn_forward.15} parent=11 // pred_fallthru
          _
        // Predicated region
        $region29: #{ircnn_forward.15} parent=11 // pred_check
          %p246 = pneg %p198
        $region30: #{ircnn_forward.15} parent=11 // pred_check_branch
          %248 = sbr.rel (%p246) target = $region32
        $region31: #{ircnn_forward.15} parent=11 // pred_region
          _
        $region32: #{ircnn_forward.15} parent=11 // pred_fallthru
          _
      $region12: #{ircnn_forward.15} parent=5 // pred_fallthru
        _
      %p249 = scmp.lt.s32.totalorder %s15, 3
      // Predicated region
      $region33: #{ircnn_forward.15} parent=5 // pred_check
        %p250 = pneg %p249
      $region34: #{ircnn_forward.15} parent=5 // pred_check_branch
        %252 = sbr.rel (%p250) target = $region36
      $region35: #{ircnn_forward.15} parent=5 // pred_region
        // Predicated region
        $region37: #{ircnn_forward.15} parent=35 // pred_check
          %p253 = pneg %p35
        $region38: #{ircnn_forward.15} parent=35 // pred_check_branch
          %255 = sbr.rel (%p253) target = $region40
        $region39: #{ircnn_forward.15} parent=35 // pred_region
          %p256 = scmp.lt.s32.totalorder %s15, 2
          %s257 = scalar_select %p256, %s15, 2
          %s258 = smul.addr %s257, 2
          %s259 = scalar_lea.vmem %s0, %s258
        $region40: #{ircnn_forward.15} parent=35 // pred_fallthru
          _
        // Predicated region
        $region41: #{ircnn_forward.15} parent=35 // pred_check
          %p260 = pneg %p61
        $region42: #{ircnn_forward.15} parent=35 // pred_check_branch
          %262 = sbr.rel (%p260) target = $region44
        $region43: #{ircnn_forward.15} parent=35 // pred_region
          %p263 = scmp.lt.s32.totalorder %s15, 2
          %s264 = scalar_select %p263, %s15, 2
          %s265 = smul.addr %s264, 2
          %s266 = scalar_lea.vmem %s1, %s265
        $region44: #{ircnn_forward.15} parent=35 // pred_fallthru
          _
        // Predicated region
        $region45: #{ircnn_forward.15} parent=35 // pred_check
          %p267 = pneg %p87
        $region46: #{ircnn_forward.15} parent=35 // pred_check_branch
          %269 = sbr.rel (%p267) target = $region48
        $region47: #{ircnn_forward.15} parent=35 // pred_region
          %p270 = scmp.lt.s32.totalorder %s15, 2
          %s271 = scalar_select %p270, %s15, 2
          %s272 = smul.addr %s271, 2
          %s273 = scalar_lea.vmem %s2, %s272
        $region48: #{ircnn_forward.15} parent=35 // pred_fallthru
          _
      $region36: #{ircnn_forward.15} parent=5 // pred_fallthru
        _
      %p274 = scmp.le.s32.totalorder 1, %s15
      %p275 = scmp.lt.s32.totalorder %s15, 4
      %p276 = pnand %p274, %p275
      %p277 = pneg %p276
      // Predicated region
      $region49: #{ircnn_forward.15} parent=5 // pred_check
        _
      $region50: #{ircnn_forward.15} parent=5 // pred_check_branch
        %279 = sbr.rel (%p276) target = $region52
      $region51: #{ircnn_forward.15} parent=5 // pred_region
        %s280 = ssub.s32 %s15, 1
        %p281 = scmp.lt.s32.totalorder %s20, 2
        %s282 = scalar_select %p281, %s20, 2
        %s283 = smul.addr %s282, 2
        %s284 = scalar_lea.vmem %s0, %s283
        %p285 = pneg %p41
        %p286 = pneg %p38
        %p287 = scmp.lt.s32.totalorder %s20, 2
        %s288 = scalar_select %p287, %s20, 2
        %s289 = smul.addr %s288, 2
        %s290 = scalar_lea.vmem %s1, %s289
        %p291 = pneg %p67
        %p292 = pneg %p64
        %p293 = scmp.lt.s32.totalorder %s20, 2
        %s294 = scalar_select %p293, %s20, 2
        %s295 = smul.addr %s294, 2
        %s296 = scalar_lea.vmem %s2, %s295
        %p297 = pneg %p93
        %p298 = pneg %p90
        %p299 = pneg %p114
        %p300 = pneg %p111
        %p301 = pneg %p135
        %p302 = pneg %p132
        %p303 = pneg %p156
        %p304 = pneg %p153
        %p305 = pneg %p177
        %p306 = pneg %p174
        %p307 = pneg %p198
        %p308 = pneg %p195
        %p309 = pneg %p219
        %p310 = pneg %p216
        %p311 = scmp.lt.s32.totalorder %s20, 2
        %s312 = scalar_select %p311, %s20, 2
        %s313 = smul.addr %s312, 2
        %s314 = scalar_lea.vmem %s0, %s313
        %p315 = scmp.lt.s32.totalorder %s20, 2
        %s316 = scalar_select %p315, %s20, 2
        %s317 = smul.addr %s316, 2
        %s318 = scalar_lea.vmem %s1, %s317
        %p319 = scmp.lt.s32.totalorder %s20, 2
        %s320 = scalar_select %p319, %s20, 2
        %s321 = smul.addr %s320, 2
        %s322 = scalar_lea.vmem %s2, %s321
        %p324 = scmp.eq.s32.totalorder %s20, 0
        // Predicated region
        $region53: #{ircnn_forward.15} parent=51 // pred_check
          %p325 = pneg %p324
        $region54: #{ircnn_forward.15} parent=51 // pred_check_branch
          %327 = sbr.rel (%p325) target = $region56
        $region55: #{ircnn_forward.15} parent=51 // pred_region
          %vm328 = vcmask 58368
          %329 = vst.msk [vmem:[#allocation2] sm:$0x3] %vm328, 0.0
          %330 = vst.msk [vmem:[#allocation3] sm:$0x3] %vm328, 0.0
        $region56: #{ircnn_forward.15} parent=51 // pred_fallthru
          _
        %v331 = vld [vmem:[#allocation2] sm:$0x3]
        %v332 = vld [vmem:[%s318] sm:$0x3]
        %334 = vset.pattern.permute.xlu0 0
        %335 = vperm.xlu0 %334, %v332
        %v336 = vpop.permute.xlu0 %335
        %v338 = vmul.f32 %v331, %v336
        %v339 = vld [vmem:[#allocation3] sm:$0x3]
        %v340 = vld [vmem:[%s322] sm:$0x3]
        %342 = vset.pattern.permute.xlu0 0
        %343 = vperm.xlu0 %342, %v340
        %v344 = vpop.permute.xlu0 %343
        %v346 = vmul.f32 %v339, %v344
        %v347 = vld [vmem:[%s314] sm:$0x3]
        %v348 = vpack.c.bf16 %v338, %v338
        %v349 = vld [vmem:[%s3] sm:$0xf]
        %vm350 = vcmask 64512
        %v352 = vsel %vm350, %v348, 0
        %vm354 = vcmask 1043456
        %v356 = vsel %vm354, %v349, 0
        %358 = vmatprep.subr.bf16.mxu0 0
        %359 = vmatpush1.bf16.msra.mxu0 0
        %360 = vmatprep.subr.bf16.mxu0 0
        %361 = vmatpush1.bf16.msra.mxu0 0
        %362 = vmatprep.subr.bf16.mxu0 0
        %363 = vmatpush1.bf16.msra.mxu0 0
        %364 = vmatprep.subr.bf16.mxu0 0
        %365 = vmatpush1.bf16.msra.mxu0 0
        %366 = vmatprep.subr.bf16.mxu0 0
        %367 = vmatpush1.bf16.msra.mxu0 0
        %368 = vmatprep.subr.bf16.mxu0 0
        %369 = vmatpush1.bf16.msra.mxu0 0
        %370 = vmatprep.subr.bf16.mxu0 0
        %371 = vmatpush1.bf16.msra.mxu0 0
        %372 = vmatprep.subr.bf16.mxu0 0
        %373 = vmatpush1.bf16.msra.mxu0 %v356
        %374 = vmatprep.subr.bf16.mxu0 0
        %375 = vmatpush2.bf16.msra.mxu0 0
        %376 = vmatprep.subr.bf16.mxu0 0
        %377 = vmatpush2.bf16.msra.mxu0 0
        %378 = vmatprep.subr.bf16.mxu0 0
        %379 = vmatpush2.bf16.msra.mxu0 0
        %380 = vmatprep.subr.bf16.mxu0 0
        %381 = vmatpush2.bf16.msra.mxu0 0
        %382 = vmatprep.subr.bf16.mxu0 0
        %383 = vmatpush2.bf16.msra.mxu0 0
        %384 = vmatprep.subr.bf16.mxu0 0
        %385 = vmatpush2.bf16.msra.mxu0 0
        %386 = vmatprep.subr.bf16.mxu0 0
        %387 = vmatpush2.bf16.msra.mxu0 0
        %388 = vmatprep.subr.bf16.mxu0 0
        %389 = vmatpush2.bf16.msra.mxu0 0
        %390 = vmatprep.mubr.bf16.mxu0 0
        %391 = vmatmul.mubr.bf16.gmra.mxu0 %v352
        %v392 = vpop.f32.mrf.mxu0
        %v393 = vadd.f32 0.0, %v392
        %v394 = vpop.f32.mrf.mxu0
        %v395 = vpop.f32.mrf.mxu0
        %v396 = vpop.f32.mrf.mxu0
        %397 = vdwg.mxu0
        %v398 = vadd.f32 %v347, %v393
        %v399 = vxor.u32 %v398, 2147483648
        %v400 = vmul.f32 %v399, 1.442695
        %v401 = vpow.pop %v400
        %v402 = vadd.f32 %v401, 1.0
        %v403 = vrcp.pop %v402
        %v404 = vmul.f32 1.0, %v403
        %v405 = vtanh.pop %v398
        %407 = vrot.lane.b32.xlu0 %v346, 8
        %v408 = vpop.permute.xlu0 %407
        %v410 = vmul.f32 %v404, %v408
        %412 = vrot.lane.b32.xlu0 %v405, 112
        %v413 = vpop.permute.xlu0 %412
        %v415 = vmul.f32 %v404, %v413
        %417 = vrot.lane.b32.xlu0 %v415, 8
        %v418 = vpop.permute.xlu0 %417
        %v420 = vadd.f32 %v410, %v418
        %v421 = vtanh.pop %v420
        %423 = vrot.lane.b32.xlu0 %v421, 16
        %v424 = vpop.permute.xlu0 %423
        %v426 = vmul.f32 %v404, %v424
        %428 = vrot.lane.b32.xlu0 %v420, 120
        %v429 = vpop.permute.xlu0 %428
        %vm431 = vcmask 58368
        %432 = vst.msk [vmem:[#allocation3] sm:$0x3] %vm431, %v429
        %434 = vrot.lane.b32.xlu0 %v426, 104
        %v435 = vpop.permute.xlu0 %434
        %437 = vst.msk [vmem:[#allocation2] sm:$0x3] %vm431, %v435
        %p438 = scmp.eq.s32.totalorder %s20, 2
        // Predicated region
        $region57: #{ircnn_forward.15} parent=51 // pred_check
          %p439 = pneg %p438
        $region58: #{ircnn_forward.15} parent=51 // pred_check_branch
          %441 = sbr.rel (%p439) target = $region60
        $region59: #{ircnn_forward.15} parent=51 // pred_region
          %v442 = vld [vmem:[%s4] sm:$0xff]
          %v443 = vld [vmem:[%s5] sm:$0x1]
          %v445 = vlaneseq
          %v446 = vshrl.u32 %v445, 7
          %v447 = vsub.s32 0, %v446
          %v448 = vrot.slane %v443, %v447
          %v450 = vsel %vm350, %v435, 0
          %452 = vmatprep.subr.mxu0 0.0
          %453 = vmatpush1.msra.mxu0 0.0
          %454 = vmatprep.subr.mxu0 0.0
          %455 = vmatpush1.msra.mxu0 0.0
          %456 = vmatprep.subr.mxu0 0.0
          %457 = vmatpush1.msra.mxu0 0.0
          %458 = vmatprep.subr.mxu0 0.0
          %459 = vmatpush1.msra.mxu0 0.0
          %460 = vmatprep.subr.mxu0 0.0
          %461 = vmatpush1.msra.mxu0 0.0
          %462 = vmatprep.subr.mxu0 0.0
          %463 = vmatpush1.msra.mxu0 0.0
          %464 = vmatprep.subr.mxu0 0.0
          %465 = vmatpush1.msra.mxu0 0.0
          %466 = vmatprep.subr.mxu0 0.0
          %467 = vmatpush1.msra.mxu0 0.0
          %468 = vmatprep.subr.mxu0 0.0
          %469 = vmatpush1.msra.mxu0 0.0
          %470 = vmatprep.subr.mxu0 0.0
          %471 = vmatpush1.msra.mxu0 0.0
          %472 = vmatprep.subr.mxu0 0.0
          %473 = vmatpush1.msra.mxu0 0.0
          %474 = vmatprep.subr.mxu0 0.0
          %475 = vmatpush1.msra.mxu0 0.0
          %476 = vmatprep.subr.mxu0 0.0
          %477 = vmatpush1.msra.mxu0 0.0
          %478 = vmatprep.subr.mxu0 0.0
          %479 = vmatpush1.msra.mxu0 0.0
          %480 = vmatprep.subr.mxu0 0.0
          %481 = vmatpush1.msra.mxu0 0.0
          %482 = vmatprep.subr.mxu0 0.0
          %483 = vmatpush1.msra.mxu0 %v442
          %484 = vmatprep.subr.mxu0 0.0
          %485 = vmatpush2.msra.mxu0 0.0
          %486 = vmatprep.subr.mxu0 0.0
          %487 = vmatpush2.msra.mxu0 0.0
          %488 = vmatprep.subr.mxu0 0.0
          %489 = vmatpush2.msra.mxu0 0.0
          %490 = vmatprep.subr.mxu0 0.0
          %491 = vmatpush2.msra.mxu0 0.0
          %492 = vmatprep.subr.mxu0 0.0
          %493 = vmatpush2.msra.mxu0 0.0
          %494 = vmatprep.subr.mxu0 0.0
          %495 = vmatpush2.msra.mxu0 0.0
          %496 = vmatprep.subr.mxu0 0.0
          %497 = vmatpush2.msra.mxu0 0.0
          %498 = vmatprep.subr.mxu0 0.0
          %499 = vmatpush2.msra.mxu0 0.0
          %500 = vmatprep.subr.mxu0 0.0
          %501 = vmatpush2.msra.mxu0 0.0
          %502 = vmatprep.subr.mxu0 0.0
          %503 = vmatpush2.msra.mxu0 0.0
          %504 = vmatprep.subr.mxu0 0.0
          %505 = vmatpush2.msra.mxu0 0.0
          %506 = vmatprep.subr.mxu0 0.0
          %507 = vmatpush2.msra.mxu0 0.0
          %508 = vmatprep.subr.mxu0 0.0
          %509 = vmatpush2.msra.mxu0 0.0
          %510 = vmatprep.subr.mxu0 0.0
          %511 = vmatpush2.msra.mxu0 0.0
          %512 = vmatprep.subr.mxu0 0.0
          %513 = vmatpush2.msra.mxu0 0.0
          %514 = vmatprep.subr.mxu0 0.0
          %515 = vmatpush2.msra.mxu0 0.0
          %516 = vmatprep.mubr.f32.mxu0 0.0
          %517 = vmatmul.mubr.f32.gmra.mxu0 %v450
          %v518 = vpop.f32.mrf.mxu0
          %v519 = vadd.f32 %v448, %v518
          %v520 = vpop.f32.mrf.mxu0
          %521 = vdwg.mxu0
          %v522 = vmax.f32 %v519, 0.0
          %v523 = vld [vmem:[%s6] sm:$0xff]
          %v524 = vld [vmem:[%s6 + $0x8] sm:$0xff]
          %v525 = vld [vmem:[%s6 + $0x10] sm:$0xff]
          %v526 = vld [vmem:[%s6 + $0x18] sm:$0xff]
          %v527 = vld [vmem:[%s7] sm:$0x1]
          %v529 = vlaneseq
          %v530 = vshrl.u32 %v529, 7
          %v531 = vsub.s32 0, %v530
          %v532 = vrot.slane %v527, %v531
          %vm534 = vcmask 261120
          %v536 = vsel %vm534, %v522, 0
          %538 = vmatprep.subr.mxu0 0.0
          %539 = vmatpush1.msra.mxu0 0.0
          %540 = vmatprep.subr.mxu0 0.0
          %541 = vmatpush1.msra.mxu0 0.0
          %542 = vmatprep.subr.mxu0 0.0
          %543 = vmatpush1.msra.mxu0 0.0
          %544 = vmatprep.subr.mxu0 0.0
          %545 = vmatpush1.msra.mxu0 0.0
          %546 = vmatprep.subr.mxu0 0.0
          %547 = vmatpush1.msra.mxu0 0.0
          %548 = vmatprep.subr.mxu0 0.0
          %549 = vmatpush1.msra.mxu0 0.0
          %550 = vmatprep.subr.mxu0 0.0
          %551 = vmatpush1.msra.mxu0 0.0
          %552 = vmatprep.subr.mxu0 0.0
          %553 = vmatpush1.msra.mxu0 0.0
          %554 = vmatprep.subr.mxu0 0.0
          %555 = vmatpush1.msra.mxu0 0.0
          %556 = vmatprep.subr.mxu0 0.0
          %557 = vmatpush1.msra.mxu0 0.0
          %558 = vmatprep.subr.mxu0 0.0
          %559 = vmatpush1.msra.mxu0 0.0
          %560 = vmatprep.subr.mxu0 0.0
          %561 = vmatpush1.msra.mxu0 0.0
          %562 = vmatprep.subr.mxu0 0.0
          %563 = vmatpush1.msra.mxu0 %v526
          %564 = vmatprep.subr.mxu0 0.0
          %565 = vmatpush1.msra.mxu0 %v525
          %566 = vmatprep.subr.mxu0 0.0
          %567 = vmatpush1.msra.mxu0 %v524
          %568 = vmatprep.subr.mxu0 0.0
          %569 = vmatpush1.msra.mxu0 %v523
          %570 = vmatprep.subr.mxu0 0.0
          %571 = vmatpush2.msra.mxu0 0.0
          %572 = vmatprep.subr.mxu0 0.0
          %573 = vmatpush2.msra.mxu0 0.0
          %574 = vmatprep.subr.mxu0 0.0
          %575 = vmatpush2.msra.mxu0 0.0
          %576 = vmatprep.subr.mxu0 0.0
          %577 = vmatpush2.msra.mxu0 0.0
          %578 = vmatprep.subr.mxu0 0.0
          %579 = vmatpush2.msra.mxu0 0.0
          %580 = vmatprep.subr.mxu0 0.0
          %581 = vmatpush2.msra.mxu0 0.0
          %582 = vmatprep.subr.mxu0 0.0
          %583 = vmatpush2.msra.mxu0 0.0
          %584 = vmatprep.subr.mxu0 0.0
          %585 = vmatpush2.msra.mxu0 0.0
          %586 = vmatprep.subr.mxu0 0.0
          %587 = vmatpush2.msra.mxu0 0.0
          %588 = vmatprep.subr.mxu0 0.0
          %589 = vmatpush2.msra.mxu0 0.0
          %590 = vmatprep.subr.mxu0 0.0
          %591 = vmatpush2.msra.mxu0 0.0
          %592 = vmatprep.subr.mxu0 0.0
          %593 = vmatpush2.msra.mxu0 0.0
          %594 = vmatprep.subr.mxu0 0.0
          %595 = vmatpush2.msra.mxu0 0.0
          %596 = vmatprep.subr.mxu0 0.0
          %597 = vmatpush2.msra.mxu0 0.0
          %598 = vmatprep.subr.mxu0 0.0
          %599 = vmatpush2.msra.mxu0 0.0
          %600 = vmatprep.subr.mxu0 0.0
          %601 = vmatpush2.msra.mxu0 0.0
          %602 = vmatprep.mubr.f32.mxu0 0.0
          %603 = vmatmul.mubr.f32.gmra.mxu0 %v536
          %v604 = vpop.f32.mrf.mxu0
          %v605 = vadd.f32 %v532, %v604
          %v606 = vpop.f32.mrf.mxu0
          %607 = vdwg.mxu0
          %v608 = vmax.f32 %v605, 0.0
          %vm609 = vcmask 33792
          %610 = vst.msk [vmem:[#allocation4] sm:$0x3] %vm609, %v608
        $region60: #{ircnn_forward.15} parent=51 // pred_fallthru
          _
        // Predicated region
        $region61: #{ircnn_forward.15} parent=51 // pred_check
          %p611 = pneg %p216
        $region62: #{ircnn_forward.15} parent=51 // pred_check_branch
          %613 = sbr.rel (%p611) target = $region64
        $region63: #{ircnn_forward.15} parent=51 // pred_region
          %s615 = ssub.s32 32, 32
          %616 = vsyncadd [#allocation5], %s615
          %s618 = sshll.u32 [#allocation4], 4
          %s619 = int_to_ptr.vmem [resolvable:$true] %s618
          %621 = dma.vmem_to_hbm [thread:$0]  %s619, 32, %s8, [#allocation5]
        $region64: #{ircnn_forward.15} parent=51 // pred_fallthru
          _
        // Predicated region
        $region65: #{ircnn_forward.15} parent=51 // pred_check
          %p622 = pneg %p216
        $region66: #{ircnn_forward.15} parent=51 // pred_check_branch
          %624 = sbr.rel (%p622) target = $region68
        $region67: #{ircnn_forward.15} parent=51 // pred_region
          %625 = dma.done [#allocation5], 32
        $region68: #{ircnn_forward.15} parent=51 // pred_fallthru
          _
      $region52: #{ircnn_forward.15} parent=5 // pred_fallthru
        _
      %p626 = scmp.le.s32.totalorder 2, %s15
      // Predicated region
      $region69: #{ircnn_forward.15} parent=5 // pred_check
        %p627 = pneg %p626
      $region70: #{ircnn_forward.15} parent=5 // pred_check_branch
        %629 = sbr.rel (%p627) target = $region72
      $region71: #{ircnn_forward.15} parent=5 // pred_region
        %s630 = ssub.s32 %s15, 2
      $region72: #{ircnn_forward.15} parent=5 // pred_fallthru
        _
    $region6: #{ircnn_forward.15} parent=1 // loop_footer
      %s19 = sadd.s32 1, %s15
    $region7: #{ircnn_forward.15} parent=1 // loop_footer_branch
      %14 = sbr.rel target = $region3
    $region8: #{ircnn_forward.15} parent=1 // loop_exit
      _
    %631 = vsyncpa [#allocation5], 1
    %s632 = scalar_lea.sflag [#allocation5], 1
    %633 = vsyncpa %s632, 1

</llo_original>
